<compile_context>
chip_gen: v7x
topology: tpu7x:2x2x1
jax: 0.10.0
libtpu: 0.0.40
codegen_flags: <defaults>
</compile_context>

<pallas_src>
import math

import jax
import jax.numpy as jnp
from jax.experimental import pallas as pl
from jax.experimental.pallas import tpu as pltpu

NUM_HEADS = 2
LN_EPS = 1e-12


def _layer_norm(x, gamma, beta):
    mu = jnp.mean(x, axis=-1, keepdims=True)
    var = jnp.mean((x - mu) ** 2, axis=-1, keepdims=True)
    return (x - mu) * jax.lax.rsqrt(var + LN_EPS) * gamma + beta


# ---------------------------------------------------------------------------
# Fused kernel: all encoder layers + classifier head in one pallas_call.
# grid = (batch_tiles, num_layers); activations persist in VMEM scratch.
# ---------------------------------------------------------------------------
def fused_encoder_kernel(x_ref, bias_ref,
                         wq_ref, bq_ref, wk_ref, bk_ref, wv_ref, bv_ref,
                         wo_ref, bo_ref, ln1_g_ref, ln1_b_ref,
                         w1_ref, b1_ref, w2_ref, b2_ref,
                         ln2_g_ref, ln2_b_ref,
                         cw1_ref, cb1_ref, cw2_ref, cb2_ref,
                         out_ref, acc_ref):
    l = pl.program_id(1)
    n_layers = pl.num_programs(1)
    b_blk, S, H = x_ref.shape
    R = b_blk * S
    hd = H // NUM_HEADS

    # Load embeddings into the resident activation slab at the first layer.
    @pl.when(l == 0)
    def _():
        acc_ref[...] = x_ref[...].reshape(R, H).astype(jnp.float32)

    x_rows = acc_ref[...]                              # (R, H) f32, VMEM-resident
    x_bf = x_rows.astype(jnp.bfloat16)
    bias = bias_ref[...]                               # (b_blk, 1, S) f32

    # --- self-attention ----------------------------------------------------
    # QKV projections over the full (R, H) row slab (batch folded into M).
    # 1/sqrt(head_dim) is pre-folded into wq/bq at init time.
    q = jnp.dot(x_bf, wq_ref[0], preferred_element_type=jnp.float32) + bq_ref[0]
    k = jnp.dot(x_bf, wk_ref[0], preferred_element_type=jnp.float32) + bk_ref[0]
    v = jnp.dot(x_bf, wv_ref[0], preferred_element_type=jnp.float32) + bv_ref[0]

    # bf16 MXU inputs, f32 accumulation for the attention einsums.
    q = q.astype(jnp.bfloat16)
    k = k.astype(jnp.bfloat16)
    v = v.astype(jnp.bfloat16)

    # Per-head attention via static 64-lane slices — no split-head transposes.
    # TODO(synk): at large S use flash-style K-blocking (lower S threshold on
    # v7x, 64 MiB VMEM) instead of the full (b_blk, S, S) score tensor.
    ctx_heads = []
    for h in range(NUM_HEADS):
        sl = slice(h * hd, (h + 1) * hd)
        qh = q[:, sl].reshape(b_blk, S, hd)
        kh = k[:, sl].reshape(b_blk, S, hd)
        vh = v[:, sl].reshape(b_blk, S, hd)
        s = jnp.einsum('bqd,bkd->bqk', qh, kh,
                       preferred_element_type=jnp.float32)       # (b_blk, S, S)
        s = s + bias                                             # additive mask
        m = jnp.max(s, axis=-1, keepdims=True)
        e = jnp.exp(s - m)
        # EUP reciprocal: ~1e-3-level normalization error vs. exact divide
        # (acceptable for inference; validate with approx=False if needed).
        p = e * pl.reciprocal(jnp.sum(e, axis=-1, keepdims=True), approx=True)
        ch = jnp.einsum('bqk,bkd->bqd', p.astype(jnp.bfloat16), vh,
                        preferred_element_type=jnp.float32)      # (b_blk, S, hd)
        ctx_heads.append(ch.reshape(R, hd))
    ctx = jnp.concatenate(ctx_heads, axis=-1)                    # (R, H) f32

    attn_out = jnp.dot(ctx.astype(jnp.bfloat16), wo_ref[0],
                       preferred_element_type=jnp.float32) + bo_ref[0]
    h1 = _layer_norm(x_rows + attn_out, ln1_g_ref[0], ln1_b_ref[0])

    # --- feed-forward --------------------------------------------------------
    ff = jnp.dot(h1.astype(jnp.bfloat16), w1_ref[0],
                 preferred_element_type=jnp.float32) + b1_ref[0]
    # TODO(synk): HF BERT / nn.GELU use exact erf GELU; tanh approximation used here.
    ff = jax.nn.gelu(ff)
    ff = jnp.dot(ff.astype(jnp.bfloat16), w2_ref[0],
                 preferred_element_type=jnp.float32) + b2_ref[0]
    h2 = _layer_norm(h1 + ff, ln2_g_ref[0], ln2_b_ref[0])        # (R, H) f32

    acc_ref[...] = h2                                            # stays in VMEM

    # --- fused, batched classifier head on the last layer --------------------
    @pl.when(l == n_layers - 1)
    def _():
        cls = h2.reshape(b_blk, S, H)[:, 0, :].astype(jnp.bfloat16)   # (b_blk, H)
        z = jnp.dot(cls, cw1_ref[...],
                    preferred_element_type=jnp.float32) + cb1_ref[...]
        z = jnp.maximum(z, 0.0)
        # TODO(synk): nn.Dropout is identity in eval mode; training RNG dropout omitted.
        logits = jnp.dot(z.astype(jnp.bfloat16), cw2_ref[...],
                         preferred_element_type=jnp.float32) + cb2_ref[...]
        out_ref[...] = logits                                    # (b_blk, C_pad)


# ---------------------------------------------------------------------------
# pallas_call wrapper
# ---------------------------------------------------------------------------
def run_fused_encoder(x, attn_bias, params, *, b_blk=None):
    B, S, H = x.shape
    enc = params['enc']
    L = enc['wq'].shape[0]
    FF = enc['w1'].shape[2]
    CP = params['cls_w2'].shape[1]

    # Batch tile: fold as many batch elements as fit into one (b_blk*S, H) row
    # slab (target >=128 rows on v5e, >=256 on v6e/v7x). At the toy shapes
    # below the whole batch fits in one tile. At scale keep the batch grid axis
    # >= 2 (and b_blk a multiple of 8) so v7x's two TensorCores both get work.
    if b_blk is None:
        b_blk = B
    assert B % b_blk == 0
    nbt = B // b_blk

    x_spec = pl.BlockSpec((b_blk, S, H), lambda bt, l: (bt, 0, 0))
    bias_spec = pl.BlockSpec((b_blk, 1, S), lambda bt, l: (bt, 0, 0))

    def lw(shape):    # stacked per-layer weight, streamed by layer index l
        nd = len(shape)
        return pl.BlockSpec((1,) + tuple(shape[1:]),
                            lambda bt, l, _nd=nd: (l,) + (0,) * (_nd - 1))

    def cw(shape):    # constant (classifier-head) weight, DMA'd once
        # NOTE(v7x): add pipeline_mode=pl.Buffered(1) here at BERT-base scale
        # to single-buffer resident weights under the 64 MiB VMEM budget.
        nd = len(shape)
        return pl.BlockSpec(tuple(shape), lambda bt, l, _nd=nd: (0,) * _nd)

    in_specs = [
        x_spec, bias_spec,
        lw(enc['wq'].shape), lw(enc['bq'].shape),
        lw(enc['wk'].shape), lw(enc['bk'].shape),
        lw(enc['wv'].shape), lw(enc['bv'].shape),
        lw(enc['wo'].shape), lw(enc['bo'].shape),
        lw(enc['ln1_g'].shape), lw(enc['ln1_b'].shape),
        lw(enc['w1'].shape), lw(enc['b1'].shape),
        lw(enc['w2'].shape), lw(enc['b2'].shape),
        lw(enc['ln2_g'].shape), lw(enc['ln2_b'].shape),
        cw(params['cls_w1'].shape), cw(params['cls_b1'].shape),
        cw(params['cls_w2'].shape), cw(params['cls_b2'].shape),
    ]

    return pl.pallas_call(
        fused_encoder_kernel,
        out_shape=jax.ShapeDtypeStruct((B, CP), jnp.float32),
        grid=(nbt, L),
        in_specs=in_specs,
        out_specs=pl.BlockSpec((b_blk, CP), lambda bt, l: (bt, 0)),
        scratch_shapes=[pltpu.VMEM((b_blk * S, H), jnp.float32)],
        compiler_params=pltpu.CompilerParams(
            dimension_semantics=("parallel", "arbitrary"),
            # Safe on all generations (<= v7x's 64 MiB physical VMEM);
            # raise toward ~96 MiB on v5e/v6e for large S/H configurations.
            vmem_limit_bytes=48 * 1024 * 1024,
        ),
    )(x, attn_bias,
      enc['wq'], enc['bq'], enc['wk'], enc['bk'], enc['wv'], enc['bv'],
      enc['wo'], enc['bo'], enc['ln1_g'], enc['ln1_b'],
      enc['w1'], enc['b1'], enc['w2'], enc['b2'],
      enc['ln2_g'], enc['ln2_b'],
      params['cls_w1'], params['cls_b1'], params['cls_w2'], params['cls_b2'])


# ---------------------------------------------------------------------------
# Forward pass (embedding gather + LN as JAX glue, rest fused in the kernel)
# ---------------------------------------------------------------------------
def query_classifier_forward(input_ids, attention_mask, params):
    B, S = input_ids.shape
    # TODO(synk): dynamic embedding gather kept as JAX glue (no rectangular
    # BlockSpec equivalent; scalar-prefetch DMA gather is overkill here).
    word = params['word_emb'][input_ids]                        # (B, S, H)
    pos = params['pos_emb'][jnp.arange(S)][None, :, :]          # (1, S, H)
    tok = params['type_emb'][0][None, None, :]                  # (1, 1, H)
    x = _layer_norm(word + pos + tok, params['emb_ln_g'], params['emb_ln_b'])
    x = x.astype(jnp.bfloat16)

    mask = attention_mask.astype(jnp.float32)
    attn_bias = (1.0 - mask)[:, None, :] * (-1e9)               # (B, 1, S) f32

    logits_pad = run_fused_encoder(x, attn_bias, params)        # (B, C_pad) f32
    return logits_pad[:, :params['num_categories']]             # (B, C) f32


# ---------------------------------------------------------------------------
# Deterministic synthetic parameter init (bf16 weights, f32 bias/LN, stacked
# per-layer weights for streaming-by-layer inside the fused kernel)
# ---------------------------------------------------------------------------
def init_params(key, *, vocab, max_pos, hidden, ff, num_layers, num_categories):
    assert hidden % 128 == 0 and hidden % NUM_HEADS == 0
    hd = hidden // NUM_HEADS
    attn_scale = 1.0 / math.sqrt(hd)
    L, H, FF = num_layers, hidden, ff

    def normal(k, shape):
        return jax.random.normal(k, shape, jnp.float32) * 0.02

    k_emb, k_head, k_enc = jax.random.split(key, 3)
    ke = jax.random.split(k_emb, 3)
    kh = jax.random.split(k_head, 2)
    kl = jax.random.split(k_enc, 6)

    c_pad = max(128, ((num_categories + 127) // 128) * 128)     # lane-dense head output
    w2_real = normal(kh[1], (512, num_categories))
    cls_w2 = jnp.zeros((512, c_pad), jnp.float32).at[:, :num_categories].set(w2_real)

    enc = {
        # 1/sqrt(head_dim) folded into the query projection (weights + bias).
        'wq': (normal(kl[0], (L, H, H)) * attn_scale).astype(jnp.bfloat16),
        'bq': (jnp.zeros((L, 1, H), jnp.float32) * attn_scale),
        'wk': normal(kl[1], (L, H, H)).astype(jnp.bfloat16),
        'bk': jnp.zeros((L, 1, H), jnp.float32),
        'wv': normal(kl[2], (L, H, H)).astype(jnp.bfloat16),
        'bv': jnp.zeros((L, 1, H), jnp.float32),
        'wo': normal(kl[3], (L, H, H)).astype(jnp.bfloat16),
        'bo': jnp.zeros((L, 1, H), jnp.float32),
        'ln1_g': jnp.ones((L, 1, H), jnp.float32),
        'ln1_b': jnp.zeros((L, 1, H), jnp.float32),
        'w1': normal(kl[4], (L, H, FF)).astype(jnp.bfloat16),
        'b1': jnp.zeros((L, 1, FF), jnp.float32),
        'w2': normal(kl[5], (L, FF, H)).astype(jnp.bfloat16),
        'b2': jnp.zeros((L, 1, H), jnp.float32),
        'ln2_g': jnp.ones((L, 1, H), jnp.float32),
        'ln2_b': jnp.zeros((L, 1, H), jnp.float32),
    }
    return {
        'num_categories': num_categories,
        'word_emb': normal(ke[0], (vocab, hidden)),
        'pos_emb': normal(ke[1], (max_pos, hidden)),
        'type_emb': normal(ke[2], (2, hidden)),
        'emb_ln_g': jnp.ones((hidden,), jnp.float32),
        'emb_ln_b': jnp.zeros((hidden,), jnp.float32),
        'cls_w1': normal(kh[0], (hidden, 512)).astype(jnp.bfloat16),
        'cls_b1': jnp.zeros((1, 512), jnp.float32),
        'cls_w2': cls_w2.astype(jnp.bfloat16),
        'cls_b2': jnp.zeros((1, c_pad), jnp.float32),
        'enc': enc,
    }


if __name__ == "__main__":
    B, S, H, FF = 2, 8, 128, 512          # H lane-dense (multiple of 128)
    VOCAB, MAX_POS, NUM_LAYERS, NUM_CATEGORIES = 128, 32, 2, 4

    key = jax.random.PRNGKey(0)
    k_ids, k_params = jax.random.split(key)

    input_ids = jax.random.randint(k_ids, (B, S), 0, VOCAB, dtype=jnp.int32)
    attention_mask = jnp.array([[1, 1, 1, 1, 1, 1, 1, 1],
                                [1, 1, 1, 1, 1, 0, 0, 0]], dtype=jnp.int32)

    params = init_params(k_params, vocab=VOCAB, max_pos=MAX_POS, hidden=H,
                         ff=FF, num_layers=NUM_LAYERS,
                         num_categories=NUM_CATEGORIES)

    logits = query_classifier_forward(input_ids, attention_mask, params)
    jax.block_until_ready(logits)
    assert logits.shape == (B, NUM_CATEGORIES)
    assert bool(jnp.all(jnp.isfinite(logits)))
    print("KERNEL_OK")
</pallas_src>

<mosaic_0001>
module attributes {stable_mosaic.version = 11 : i64} {
  func.func @fused_encoder_kernel(%arg0: i32, %arg1: i32, %arg2: memref<2x8x128xbf16, #tpu.memory_space<vmem>>, %arg3: memref<2x1x8xf32, #tpu.memory_space<vmem>>, %arg4: memref<1x128x128xbf16, #tpu.memory_space<vmem>>, %arg5: memref<1x1x128xf32, #tpu.memory_space<vmem>>, %arg6: memref<1x128x128xbf16, #tpu.memory_space<vmem>>, %arg7: memref<1x1x128xf32, #tpu.memory_space<vmem>>, %arg8: memref<1x128x128xbf16, #tpu.memory_space<vmem>>, %arg9: memref<1x1x128xf32, #tpu.memory_space<vmem>>, %arg10: memref<1x128x128xbf16, #tpu.memory_space<vmem>>, %arg11: memref<1x1x128xf32, #tpu.memory_space<vmem>>, %arg12: memref<1x1x128xf32, #tpu.memory_space<vmem>>, %arg13: memref<1x1x128xf32, #tpu.memory_space<vmem>>, %arg14: memref<1x128x512xbf16, #tpu.memory_space<vmem>>, %arg15: memref<1x1x512xf32, #tpu.memory_space<vmem>>, %arg16: memref<1x512x128xbf16, #tpu.memory_space<vmem>>, %arg17: memref<1x1x128xf32, #tpu.memory_space<vmem>>, %arg18: memref<1x1x128xf32, #tpu.memory_space<vmem>>, %arg19: memref<1x1x128xf32, #tpu.memory_space<vmem>>, %arg20: memref<128x512xbf16, #tpu.memory_space<vmem>>, %arg21: memref<1x512xf32, #tpu.memory_space<vmem>>, %arg22: memref<512x128xbf16, #tpu.memory_space<vmem>>, %arg23: memref<1x128xf32, #tpu.memory_space<vmem>>, %arg24: memref<2x128xf32, #tpu.memory_space<vmem>>, %arg25: memref<16x128xf32, #tpu.memory_space<vmem>>) attributes {dimension_semantics = [#tpu.dimension_semantics<parallel>, #tpu.dimension_semantics<arbitrary>], iteration_bounds = array<i64: 1, 2>, scalar_prefetch = 0 : i64, scratch_operands = 1 : i64, tpu.core_type = #tpu.core_type<tc>, window_params = [{transform_indices = @transform_0, window_bounds = array<i64: 2, 8, 128>}, {transform_indices = @transform_1, window_bounds = array<i64: 2, 1, 8>}, {transform_indices = @transform_2, window_bounds = array<i64: 1, 128, 128>}, {transform_indices = @transform_3, window_bounds = array<i64: 1, 1, 128>}, {transform_indices = @transform_4, window_bounds = array<i64: 1, 128, 128>}, {transform_indices = @transform_5, window_bounds = array<i64: 1, 1, 128>}, {transform_indices = @transform_6, window_bounds = array<i64: 1, 128, 128>}, {transform_indices = @transform_7, window_bounds = array<i64: 1, 1, 128>}, {transform_indices = @transform_8, window_bounds = array<i64: 1, 128, 128>}, {transform_indices = @transform_9, window_bounds = array<i64: 1, 1, 128>}, {transform_indices = @transform_10, window_bounds = array<i64: 1, 1, 128>}, {transform_indices = @transform_11, window_bounds = array<i64: 1, 1, 128>}, {transform_indices = @transform_12, window_bounds = array<i64: 1, 128, 512>}, {transform_indices = @transform_13, window_bounds = array<i64: 1, 1, 512>}, {transform_indices = @transform_14, window_bounds = array<i64: 1, 512, 128>}, {transform_indices = @transform_15, window_bounds = array<i64: 1, 1, 128>}, {transform_indices = @transform_16, window_bounds = array<i64: 1, 1, 128>}, {transform_indices = @transform_17, window_bounds = array<i64: 1, 1, 128>}, {pipeline_mode = #tpu.pipeline_mode<synchronous>, transform_indices = @transform_18, window_bounds = array<i64: 128, 512>}, {pipeline_mode = #tpu.pipeline_mode<synchronous>, transform_indices = @transform_19, window_bounds = array<i64: 1, 512>}, {pipeline_mode = #tpu.pipeline_mode<synchronous>, transform_indices = @transform_20, window_bounds = array<i64: 512, 128>}, {pipeline_mode = #tpu.pipeline_mode<synchronous>, transform_indices = @transform_21, window_bounds = array<i64: 1, 128>}, {transform_indices = @transform_22, window_bounds = array<i64: 2, 128>}]} {
    %c0_i32 = arith.constant 0 : i32
    %0 = arith.cmpi eq, %arg1, %c0_i32 : i32
    %1 = arith.extui %0 : i1 to i32
    %c0_i32_0 = arith.constant 0 : i32
    %2 = arith.cmpi ne, %1, %c0_i32_0 : i32
    scf.if %2 {
      %c0_83 = arith.constant 0 : index
      %c0_84 = arith.constant 0 : index
      %c0_85 = arith.constant 0 : index
      %170 = vector.load %arg2[%c0_83, %c0_84, %c0_85] : memref<2x8x128xbf16, #tpu.memory_space<vmem>>, vector<2x8x128xbf16>
      %171 = vector.shape_cast %170 : vector<2x8x128xbf16> to vector<16x128xbf16>
      %172 = arith.extf %171 : vector<16x128xbf16> to vector<16x128xf32>
      %c0_86 = arith.constant 0 : index
      %c0_87 = arith.constant 0 : index
      %173 = vector.load %arg25[%c0_86, %c0_87] : memref<16x128xf32, #tpu.memory_space<vmem>>, vector<16x128xf32>
      tpu.vector_store %arg25[%c0_86, %c0_87], %172 {strides = array<i32>} : memref<16x128xf32, #tpu.memory_space<vmem>>, vector<16x128xf32>,
    } else {
    }
    %c0 = arith.constant 0 : index
    %c0_1 = arith.constant 0 : index
    %3 = vector.load %arg25[%c0, %c0_1] : memref<16x128xf32, #tpu.memory_space<vmem>>, vector<16x128xf32>
    %4 = arith.truncf %3 : vector<16x128xf32> to vector<16x128xbf16>
    %c0_2 = arith.constant 0 : index
    %c0_3 = arith.constant 0 : index
    %c0_4 = arith.constant 0 : index
    %5 = vector.load %arg3[%c0_2, %c0_3, %c0_4] : memref<2x1x8xf32, #tpu.memory_space<vmem>>, vector<2x1x8xf32>
    %c0_5 = arith.constant 0 : index
    %c0_6 = arith.constant 0 : index
    %c0_7 = arith.constant 0 : index
    %6 = vector.load %arg4[%c0_5, %c0_6, %c0_7] : memref<1x128x128xbf16, #tpu.memory_space<vmem>>, vector<1x128x128xbf16>
    %7 = vector.shape_cast %6 : vector<1x128x128xbf16> to vector<128x128xbf16>
    %cst = arith.constant dense<0.000000e+00> : vector<16x128xf32>
    %8 = tpu.matmul %4, %7, %cst {dimension_numbers = #tpu.dot_dimension_numbers<[1], [0], [0], [1], [0, 0, 1, 1], [], []>} : vector<16x128xbf16>, vector<128x128xbf16>, vector<16x128xf32> -> vector<16x128xf32>
    %c0_8 = arith.constant 0 : index
    %c0_9 = arith.constant 0 : index
    %c0_10 = arith.constant 0 : index
    %9 = vector.load %arg5[%c0_8, %c0_9, %c0_10] : memref<1x1x128xf32, #tpu.memory_space<vmem>>, vector<1x1x128xf32>
    %10 = vector.shape_cast %9 : vector<1x1x128xf32> to vector<1x128xf32>
    %11 = vector.broadcast %10 : vector<1x128xf32> to vector<16x128xf32>
    %12 = arith.addf %8, %11 : vector<16x128xf32>
    %c0_11 = arith.constant 0 : index
    %c0_12 = arith.constant 0 : index
    %c0_13 = arith.constant 0 : index
    %13 = vector.load %arg6[%c0_11, %c0_12, %c0_13] : memref<1x128x128xbf16, #tpu.memory_space<vmem>>, vector<1x128x128xbf16>
    %14 = vector.shape_cast %13 : vector<1x128x128xbf16> to vector<128x128xbf16>
    %cst_14 = arith.constant dense<0.000000e+00> : vector<16x128xf32>
    %15 = tpu.matmul %4, %14, %cst_14 {dimension_numbers = #tpu.dot_dimension_numbers<[1], [0], [0], [1], [0, 0, 1, 1], [], []>} : vector<16x128xbf16>, vector<128x128xbf16>, vector<16x128xf32> -> vector<16x128xf32>
    %c0_15 = arith.constant 0 : index
    %c0_16 = arith.constant 0 : index
    %c0_17 = arith.constant 0 : index
    %16 = vector.load %arg7[%c0_15, %c0_16, %c0_17] : memref<1x1x128xf32, #tpu.memory_space<vmem>>, vector<1x1x128xf32>
    %17 = vector.shape_cast %16 : vector<1x1x128xf32> to vector<1x128xf32>
    %18 = vector.broadcast %17 : vector<1x128xf32> to vector<16x128xf32>
    %19 = arith.addf %15, %18 : vector<16x128xf32>
    %c0_18 = arith.constant 0 : index
    %c0_19 = arith.constant 0 : index
    %c0_20 = arith.constant 0 : index
    %20 = vector.load %arg8[%c0_18, %c0_19, %c0_20] : memref<1x128x128xbf16, #tpu.memory_space<vmem>>, vector<1x128x128xbf16>
    %21 = vector.shape_cast %20 : vector<1x128x128xbf16> to vector<128x128xbf16>
    %cst_21 = arith.constant dense<0.000000e+00> : vector<16x128xf32>
    %22 = tpu.matmul %4, %21, %cst_21 {dimension_numbers = #tpu.dot_dimension_numbers<[1], [0], [0], [1], [0, 0, 1, 1], [], []>} : vector<16x128xbf16>, vector<128x128xbf16>, vector<16x128xf32> -> vector<16x128xf32>
    %c0_22 = arith.constant 0 : index
    %c0_23 = arith.constant 0 : index
    %c0_24 = arith.constant 0 : index
    %23 = vector.load %arg9[%c0_22, %c0_23, %c0_24] : memref<1x1x128xf32, #tpu.memory_space<vmem>>, vector<1x1x128xf32>
    %24 = vector.shape_cast %23 : vector<1x1x128xf32> to vector<1x128xf32>
    %25 = vector.broadcast %24 : vector<1x128xf32> to vector<16x128xf32>
    %26 = arith.addf %22, %25 : vector<16x128xf32>
    %27 = arith.truncf %12 : vector<16x128xf32> to vector<16x128xbf16>
    %28 = arith.truncf %19 : vector<16x128xf32> to vector<16x128xbf16>
    %29 = arith.truncf %26 : vector<16x128xf32> to vector<16x128xbf16>
    %30 = vector.extract_strided_slice %27 {offsets = [0, 0], sizes = [16, 64], strides = [1, 1]} : vector<16x128xbf16> to vector<16x64xbf16>
    %31 = vector.shape_cast %30 : vector<16x64xbf16> to vector<2x8x64xbf16>
    %32 = vector.extract_strided_slice %28 {offsets = [0, 0], sizes = [16, 64], strides = [1, 1]} : vector<16x128xbf16> to vector<16x64xbf16>
    %33 = vector.shape_cast %32 : vector<16x64xbf16> to vector<2x8x64xbf16>
    %34 = vector.extract_strided_slice %29 {offsets = [0, 0], sizes = [16, 64], strides = [1, 1]} : vector<16x128xbf16> to vector<16x64xbf16>
    %35 = vector.shape_cast %34 : vector<16x64xbf16> to vector<2x8x64xbf16>
    "tpu.trace_start"() <{level = 10 : i32, message = "bqd,bkd->bqk"}> : () -> ()
    %cst_25 = arith.constant dense<0.000000e+00> : vector<2x8x8xf32>
    %36 = tpu.matmul %31, %33, %cst_25 {dimension_numbers = #tpu.dot_dimension_numbers<[2], [2], [1], [1], [0, 0, 0, 1, 1, 1], [0], [0]>} : vector<2x8x64xbf16>, vector<2x8x64xbf16>, vector<2x8x8xf32> -> vector<2x8x8xf32>
    "tpu.trace_stop"() : () -> ()
    %37 = vector.broadcast %5 : vector<2x1x8xf32> to vector<2x8x8xf32>
    %38 = arith.addf %36, %37 : vector<2x8x8xf32>
    %cst_26 = arith.constant dense<0xFF800000> : vector<2x8xf32>
    %39 = vector.multi_reduction <maximumf>, %38, %cst_26 [2] : vector<2x8x8xf32> to vector<2x8xf32>
    %40 = vector.shape_cast %39 : vector<2x8xf32> to vector<2x8x1xf32>
    %41 = vector.broadcast %40 : vector<2x8x1xf32> to vector<2x8x8xf32>
    %42 = arith.subf %38, %41 : vector<2x8x8xf32>
    %43 = math.exp %42 : vector<2x8x8xf32>
    %cst_27 = arith.constant dense<0.000000e+00> : vector<2x8xf32>
    %44 = vector.multi_reduction <add>, %43, %cst_27 [2] : vector<2x8x8xf32> to vector<2x8xf32>
    %45 = vector.shape_cast %44 : vector<2x8xf32> to vector<2x8x1xf32>
    %46 = tpu.reciprocal %45 {approx = true} : vector<2x8x1xf32> -> vector<2x8x1xf32>
    %47 = vector.broadcast %46 : vector<2x8x1xf32> to vector<2x8x8xf32>
    %48 = arith.mulf %43, %47 : vector<2x8x8xf32>
    %49 = arith.truncf %48 : vector<2x8x8xf32> to vector<2x8x8xbf16>
    "tpu.trace_start"() <{level = 10 : i32, message = "bqk,bkd->bqd"}> : () -> ()
    %cst_28 = arith.constant dense<0.000000e+00> : vector<2x8x64xf32>
    %50 = tpu.matmul %49, %35, %cst_28 {dimension_numbers = #tpu.dot_dimension_numbers<[2], [1], [1], [2], [0, 0, 0, 1, 1, 2], [0], [0]>} : vector<2x8x8xbf16>, vector<2x8x64xbf16>, vector<2x8x64xf32> -> vector<2x8x64xf32>
    "tpu.trace_stop"() : () -> ()
    %51 = vector.shape_cast %50 : vector<2x8x64xf32> to vector<16x64xf32>
    %52 = vector.extract_strided_slice %27 {offsets = [0, 64], sizes = [16, 64], strides = [1, 1]} : vector<16x128xbf16> to vector<16x64xbf16>
    %53 = vector.shape_cast %52 : vector<16x64xbf16> to vector<2x8x64xbf16>
    %54 = vector.extract_strided_slice %28 {offsets = [0, 64], sizes = [16, 64], strides = [1, 1]} : vector<16x128xbf16> to vector<16x64xbf16>
    %55 = vector.shape_cast %54 : vector<16x64xbf16> to vector<2x8x64xbf16>
    %56 = vector.extract_strided_slice %29 {offsets = [0, 64], sizes = [16, 64], strides = [1, 1]} : vector<16x128xbf16> to vector<16x64xbf16>
    %57 = vector.shape_cast %56 : vector<16x64xbf16> to vector<2x8x64xbf16>
    "tpu.trace_start"() <{level = 10 : i32, message = "bqd,bkd->bqk"}> : () -> ()
    %cst_29 = arith.constant dense<0.000000e+00> : vector<2x8x8xf32>
    %58 = tpu.matmul %53, %55, %cst_29 {dimension_numbers = #tpu.dot_dimension_numbers<[2], [2], [1], [1], [0, 0, 0, 1, 1, 1], [0], [0]>} : vector<2x8x64xbf16>, vector<2x8x64xbf16>, vector<2x8x8xf32> -> vector<2x8x8xf32>
    "tpu.trace_stop"() : () -> ()
    %59 = vector.broadcast %5 : vector<2x1x8xf32> to vector<2x8x8xf32>
    %60 = arith.addf %58, %59 : vector<2x8x8xf32>
    %cst_30 = arith.constant dense<0xFF800000> : vector<2x8xf32>
    %61 = vector.multi_reduction <maximumf>, %60, %cst_30 [2] : vector<2x8x8xf32> to vector<2x8xf32>
    %62 = vector.shape_cast %61 : vector<2x8xf32> to vector<2x8x1xf32>
    %63 = vector.broadcast %62 : vector<2x8x1xf32> to vector<2x8x8xf32>
    %64 = arith.subf %60, %63 : vector<2x8x8xf32>
    %65 = math.exp %64 : vector<2x8x8xf32>
    %cst_31 = arith.constant dense<0.000000e+00> : vector<2x8xf32>
    %66 = vector.multi_reduction <add>, %65, %cst_31 [2] : vector<2x8x8xf32> to vector<2x8xf32>
    %67 = vector.shape_cast %66 : vector<2x8xf32> to vector<2x8x1xf32>
    %68 = tpu.reciprocal %67 {approx = true} : vector<2x8x1xf32> -> vector<2x8x1xf32>
    %69 = vector.broadcast %68 : vector<2x8x1xf32> to vector<2x8x8xf32>
    %70 = arith.mulf %65, %69 : vector<2x8x8xf32>
    %71 = arith.truncf %70 : vector<2x8x8xf32> to vector<2x8x8xbf16>
    "tpu.trace_start"() <{level = 10 : i32, message = "bqk,bkd->bqd"}> : () -> ()
    %cst_32 = arith.constant dense<0.000000e+00> : vector<2x8x64xf32>
    %72 = tpu.matmul %71, %57, %cst_32 {dimension_numbers = #tpu.dot_dimension_numbers<[2], [1], [1], [2], [0, 0, 0, 1, 1, 2], [0], [0]>} : vector<2x8x8xbf16>, vector<2x8x64xbf16>, vector<2x8x64xf32> -> vector<2x8x64xf32>
    "tpu.trace_stop"() : () -> ()
    %73 = vector.shape_cast %72 : vector<2x8x64xf32> to vector<16x64xf32>
    %74 = tpu.concatenate %51, %73 in 1 : vector<16x64xf32>, vector<16x64xf32> -> vector<16x128xf32>
    %75 = arith.truncf %74 : vector<16x128xf32> to vector<16x128xbf16>
    %c0_33 = arith.constant 0 : index
    %c0_34 = arith.constant 0 : index
    %c0_35 = arith.constant 0 : index
    %76 = vector.load %arg10[%c0_33, %c0_34, %c0_35] : memref<1x128x128xbf16, #tpu.memory_space<vmem>>, vector<1x128x128xbf16>
    %77 = vector.shape_cast %76 : vector<1x128x128xbf16> to vector<128x128xbf16>
    %cst_36 = arith.constant dense<0.000000e+00> : vector<16x128xf32>
    %78 = tpu.matmul %75, %77, %cst_36 {dimension_numbers = #tpu.dot_dimension_numbers<[1], [0], [0], [1], [0, 0, 1, 1], [], []>} : vector<16x128xbf16>, vector<128x128xbf16>, vector<16x128xf32> -> vector<16x128xf32>
    %c0_37 = arith.constant 0 : index
    %c0_38 = arith.constant 0 : index
    %c0_39 = arith.constant 0 : index
    %79 = vector.load %arg11[%c0_37, %c0_38, %c0_39] : memref<1x1x128xf32, #tpu.memory_space<vmem>>, vector<1x1x128xf32>
    %80 = vector.shape_cast %79 : vector<1x1x128xf32> to vector<1x128xf32>
    %81 = vector.broadcast %80 : vector<1x128xf32> to vector<16x128xf32>
    %82 = arith.addf %78, %81 : vector<16x128xf32>
    %83 = arith.addf %3, %82 : vector<16x128xf32>
    %c0_40 = arith.constant 0 : index
    %c0_41 = arith.constant 0 : index
    %c0_42 = arith.constant 0 : index
    %84 = vector.load %arg12[%c0_40, %c0_41, %c0_42] : memref<1x1x128xf32, #tpu.memory_space<vmem>>, vector<1x1x128xf32>
    %85 = vector.shape_cast %84 : vector<1x1x128xf32> to vector<1x128xf32>
    %c0_43 = arith.constant 0 : index
    %c0_44 = arith.constant 0 : index
    %c0_45 = arith.constant 0 : index
    %86 = vector.load %arg13[%c0_43, %c0_44, %c0_45] : memref<1x1x128xf32, #tpu.memory_space<vmem>>, vector<1x1x128xf32>
    %87 = vector.shape_cast %86 : vector<1x1x128xf32> to vector<1x128xf32>
    %cst_46 = arith.constant dense<0.000000e+00> : vector<16xf32>
    %88 = vector.multi_reduction <add>, %83, %cst_46 [1] : vector<16x128xf32> to vector<16xf32>
    %89 = vector.shape_cast %88 : vector<16xf32> to vector<16x1xf32>
    %cst_47 = arith.constant 1.280000e+02 : f32
    %90 = vector.broadcast %cst_47 : f32 to vector<16x1xf32>
    %91 = arith.divf %89, %90 : vector<16x1xf32>
    %92 = vector.broadcast %91 : vector<16x1xf32> to vector<16x128xf32>
    %93 = arith.subf %83, %92 : vector<16x128xf32>
    %94 = arith.mulf %93, %93 : vector<16x128xf32>
    %cst_48 = arith.constant dense<0.000000e+00> : vector<16xf32>
    %95 = vector.multi_reduction <add>, %94, %cst_48 [1] : vector<16x128xf32> to vector<16xf32>
    %96 = vector.shape_cast %95 : vector<16xf32> to vector<16x1xf32>
    %cst_49 = arith.constant 1.280000e+02 : f32
    %97 = vector.broadcast %cst_49 : f32 to vector<16x1xf32>
    %98 = arith.divf %96, %97 : vector<16x1xf32>
    %99 = vector.broadcast %91 : vector<16x1xf32> to vector<16x128xf32>
    %100 = arith.subf %83, %99 : vector<16x128xf32>
    %cst_50 = arith.constant 9.99999996E-13 : f32
    %101 = vector.broadcast %cst_50 : f32 to vector<16x1xf32>
    %102 = arith.addf %98, %101 : vector<16x1xf32>
    %103 = math.rsqrt %102 : vector<16x1xf32>
    %104 = vector.broadcast %103 : vector<16x1xf32> to vector<16x128xf32>
    %105 = arith.mulf %100, %104 : vector<16x128xf32>
    %106 = vector.broadcast %85 : vector<1x128xf32> to vector<16x128xf32>
    %107 = arith.mulf %105, %106 : vector<16x128xf32>
    %108 = vector.broadcast %87 : vector<1x128xf32> to vector<16x128xf32>
    %109 = arith.addf %107, %108 : vector<16x128xf32>
    %110 = arith.truncf %109 : vector<16x128xf32> to vector<16x128xbf16>
    %c0_51 = arith.constant 0 : index
    %c0_52 = arith.constant 0 : index
    %c0_53 = arith.constant 0 : index
    %111 = vector.load %arg14[%c0_51, %c0_52, %c0_53] : memref<1x128x512xbf16, #tpu.memory_space<vmem>>, vector<1x128x512xbf16>
    %112 = vector.shape_cast %111 : vector<1x128x512xbf16> to vector<128x512xbf16>
    %cst_54 = arith.constant dense<0.000000e+00> : vector<16x512xf32>
    %113 = tpu.matmul %110, %112, %cst_54 {dimension_numbers = #tpu.dot_dimension_numbers<[1], [0], [0], [1], [0, 0, 1, 1], [], []>} : vector<16x128xbf16>, vector<128x512xbf16>, vector<16x512xf32> -> vector<16x512xf32>
    %c0_55 = arith.constant 0 : index
    %c0_56 = arith.constant 0 : index
    %c0_57 = arith.constant 0 : index
    %114 = vector.load %arg15[%c0_55, %c0_56, %c0_57] : memref<1x1x512xf32, #tpu.memory_space<vmem>>, vector<1x1x512xf32>
    %115 = vector.shape_cast %114 : vector<1x1x512xf32> to vector<1x512xf32>
    %116 = vector.broadcast %115 : vector<1x512xf32> to vector<16x512xf32>
    %117 = arith.addf %113, %116 : vector<16x512xf32>
    %118 = arith.mulf %117, %117 : vector<16x512xf32>
    %119 = arith.mulf %117, %118 : vector<16x512xf32>
    %cst_58 = arith.constant 4.471500e-02 : f32
    %120 = vector.broadcast %cst_58 : f32 to vector<16x512xf32>
    %121 = arith.mulf %120, %119 : vector<16x512xf32>
    %122 = arith.addf %117, %121 : vector<16x512xf32>
    %cst_59 = arith.constant 0.797884583 : f32
    %123 = vector.broadcast %cst_59 : f32 to vector<16x512xf32>
    %124 = arith.mulf %123, %122 : vector<16x512xf32>
    %125 = math.tanh %124 : vector<16x512xf32>
    %cst_60 = arith.constant 1.000000e+00 : f32
    %126 = vector.broadcast %cst_60 : f32 to vector<16x512xf32>
    %127 = arith.addf %126, %125 : vector<16x512xf32>
    %cst_61 = arith.constant 5.000000e-01 : f32
    %128 = vector.broadcast %cst_61 : f32 to vector<16x512xf32>
    %129 = arith.mulf %128, %127 : vector<16x512xf32>
    %130 = arith.mulf %117, %129 : vector<16x512xf32>
    %131 = arith.truncf %130 : vector<16x512xf32> to vector<16x512xbf16>
    %c0_62 = arith.constant 0 : index
    %c0_63 = arith.constant 0 : index
    %c0_64 = arith.constant 0 : index
    %132 = vector.load %arg16[%c0_62, %c0_63, %c0_64] : memref<1x512x128xbf16, #tpu.memory_space<vmem>>, vector<1x512x128xbf16>
    %133 = vector.shape_cast %132 : vector<1x512x128xbf16> to vector<512x128xbf16>
    %cst_65 = arith.constant dense<0.000000e+00> : vector<16x128xf32>
    %134 = tpu.matmul %131, %133, %cst_65 {dimension_numbers = #tpu.dot_dimension_numbers<[1], [0], [0], [1], [0, 0, 1, 1], [], []>} : vector<16x512xbf16>, vector<512x128xbf16>, vector<16x128xf32> -> vector<16x128xf32>
    %c0_66 = arith.constant 0 : index
    %c0_67 = arith.constant 0 : index
    %c0_68 = arith.constant 0 : index
    %135 = vector.load %arg17[%c0_66, %c0_67, %c0_68] : memref<1x1x128xf32, #tpu.memory_space<vmem>>, vector<1x1x128xf32>
    %136 = vector.shape_cast %135 : vector<1x1x128xf32> to vector<1x128xf32>
    %137 = vector.broadcast %136 : vector<1x128xf32> to vector<16x128xf32>
    %138 = arith.addf %134, %137 : vector<16x128xf32>
    %139 = arith.addf %109, %138 : vector<16x128xf32>
    %c0_69 = arith.constant 0 : index
    %c0_70 = arith.constant 0 : index
    %c0_71 = arith.constant 0 : index
    %140 = vector.load %arg18[%c0_69, %c0_70, %c0_71] : memref<1x1x128xf32, #tpu.memory_space<vmem>>, vector<1x1x128xf32>
    %141 = vector.shape_cast %140 : vector<1x1x128xf32> to vector<1x128xf32>
    %c0_72 = arith.constant 0 : index
    %c0_73 = arith.constant 0 : index
    %c0_74 = arith.constant 0 : index
    %142 = vector.load %arg19[%c0_72, %c0_73, %c0_74] : memref<1x1x128xf32, #tpu.memory_space<vmem>>, vector<1x1x128xf32>
    %143 = vector.shape_cast %142 : vector<1x1x128xf32> to vector<1x128xf32>
    %cst_75 = arith.constant dense<0.000000e+00> : vector<16xf32>
    %144 = vector.multi_reduction <add>, %139, %cst_75 [1] : vector<16x128xf32> to vector<16xf32>
    %145 = vector.shape_cast %144 : vector<16xf32> to vector<16x1xf32>
    %cst_76 = arith.constant 1.280000e+02 : f32
    %146 = vector.broadcast %cst_76 : f32 to vector<16x1xf32>
    %147 = arith.divf %145, %146 : vector<16x1xf32>
    %148 = vector.broadcast %147 : vector<16x1xf32> to vector<16x128xf32>
    %149 = arith.subf %139, %148 : vector<16x128xf32>
    %150 = arith.mulf %149, %149 : vector<16x128xf32>
    %cst_77 = arith.constant dense<0.000000e+00> : vector<16xf32>
    %151 = vector.multi_reduction <add>, %150, %cst_77 [1] : vector<16x128xf32> to vector<16xf32>
    %152 = vector.shape_cast %151 : vector<16xf32> to vector<16x1xf32>
    %cst_78 = arith.constant 1.280000e+02 : f32
    %153 = vector.broadcast %cst_78 : f32 to vector<16x1xf32>
    %154 = arith.divf %152, %153 : vector<16x1xf32>
    %155 = vector.broadcast %147 : vector<16x1xf32> to vector<16x128xf32>
    %156 = arith.subf %139, %155 : vector<16x128xf32>
    %cst_79 = arith.constant 9.99999996E-13 : f32
    %157 = vector.broadcast %cst_79 : f32 to vector<16x1xf32>
    %158 = arith.addf %154, %157 : vector<16x1xf32>
    %159 = math.rsqrt %158 : vector<16x1xf32>
    %160 = vector.broadcast %159 : vector<16x1xf32> to vector<16x128xf32>
    %161 = arith.mulf %156, %160 : vector<16x128xf32>
    %162 = vector.broadcast %141 : vector<1x128xf32> to vector<16x128xf32>
    %163 = arith.mulf %161, %162 : vector<16x128xf32>
    %164 = vector.broadcast %143 : vector<1x128xf32> to vector<16x128xf32>
    %165 = arith.addf %163, %164 : vector<16x128xf32>
    %c0_80 = arith.constant 0 : index
    %c0_81 = arith.constant 0 : index
    %166 = vector.load %arg25[%c0_80, %c0_81] : memref<16x128xf32, #tpu.memory_space<vmem>>, vector<16x128xf32>
    tpu.vector_store %arg25[%c0_80, %c0_81], %165 {strides = array<i32>} : memref<16x128xf32, #tpu.memory_space<vmem>>, vector<16x128xf32>,
    %c1_i32 = arith.constant 1 : i32
    %167 = arith.cmpi eq, %arg1, %c1_i32 : i32
    %168 = arith.extui %167 : i1 to i32
    %c0_i32_82 = arith.constant 0 : i32
    %169 = arith.cmpi ne, %168, %c0_i32_82 : i32
    scf.if %169 {
      %170 = vector.shape_cast %165 : vector<16x128xf32> to vector<2x8x128xf32>
      %171 = vector.extract_strided_slice %170 {offsets = [0, 0, 0], sizes = [2, 1, 128], strides = [1, 1, 1]} : vector<2x8x128xf32> to vector<2x1x128xf32>
      %172 = vector.shape_cast %171 : vector<2x1x128xf32> to vector<2x128xf32>
      %173 = arith.truncf %172 : vector<2x128xf32> to vector<2x128xbf16>
      %c0_83 = arith.constant 0 : index
      %c0_84 = arith.constant 0 : index
      %174 = vector.load %arg20[%c0_83, %c0_84] : memref<128x512xbf16, #tpu.memory_space<vmem>>, vector<128x512xbf16>
      %cst_85 = arith.constant dense<0.000000e+00> : vector<2x512xf32>
      %175 = tpu.matmul %173, %174, %cst_85 {dimension_numbers = #tpu.dot_dimension_numbers<[1], [0], [0], [1], [0, 0, 1, 1], [], []>} : vector<2x128xbf16>, vector<128x512xbf16>, vector<2x512xf32> -> vector<2x512xf32>
      %c0_86 = arith.constant 0 : index
      %c0_87 = arith.constant 0 : index
      %176 = vector.load %arg21[%c0_86, %c0_87] : memref<1x512xf32, #tpu.memory_space<vmem>>, vector<1x512xf32>
      %177 = vector.broadcast %176 : vector<1x512xf32> to vector<2x512xf32>
      %178 = arith.addf %175, %177 : vector<2x512xf32>
      %cst_88 = arith.constant 0.000000e+00 : f32
      %179 = vector.broadcast %cst_88 : f32 to vector<2x512xf32>
      %180 = arith.maximumf %178, %179 : vector<2x512xf32>
      %181 = arith.truncf %180 : vector<2x512xf32> to vector<2x512xbf16>
      %c0_89 = arith.constant 0 : index
      %c0_90 = arith.constant 0 : index
      %182 = vector.load %arg22[%c0_89, %c0_90] : memref<512x128xbf16, #tpu.memory_space<vmem>>, vector<512x128xbf16>
      %cst_91 = arith.constant dense<0.000000e+00> : vector<2x128xf32>
      %183 = tpu.matmul %181, %182, %cst_91 {dimension_numbers = #tpu.dot_dimension_numbers<[1], [0], [0], [1], [0, 0, 1, 1], [], []>} : vector<2x512xbf16>, vector<512x128xbf16>, vector<2x128xf32> -> vector<2x128xf32>
      %c0_92 = arith.constant 0 : index
      %c0_93 = arith.constant 0 : index
      %184 = vector.load %arg23[%c0_92, %c0_93] : memref<1x128xf32, #tpu.memory_space<vmem>>, vector<1x128xf32>
      %185 = vector.broadcast %184 : vector<1x128xf32> to vector<2x128xf32>
      %186 = arith.addf %183, %185 : vector<2x128xf32>
      %c0_94 = arith.constant 0 : index
      %c0_95 = arith.constant 0 : index
      %187 = vector.load %arg24[%c0_94, %c0_95] : memref<2x128xf32, #tpu.memory_space<vmem>>, vector<2x128xf32>
      tpu.vector_store %arg24[%c0_94, %c0_95], %186 {strides = array<i32>} : memref<2x128xf32, #tpu.memory_space<vmem>>, vector<2x128xf32>,
    } else {
    }
    return
  }
  func.func @transform_0(%arg0: i32, %arg1: i32) -> (i32, i32, i32) {
    %c0_i32 = arith.constant 0 : i32
    %c0_i32_0 = arith.constant 0 : i32
    %c0_i32_1 = arith.constant 0 : i32
    return %arg0, %c0_i32, %c0_i32_0 : i32, i32, i32
  }
  func.func @transform_1(%arg0: i32, %arg1: i32) -> (i32, i32, i32) {
    %c0_i32 = arith.constant 0 : i32
    %c0_i32_0 = arith.constant 0 : i32
    %c0_i32_1 = arith.constant 0 : i32
    return %arg0, %c0_i32, %c0_i32_0 : i32, i32, i32
  }
  func.func @transform_2(%arg0: i32, %arg1: i32) -> (i32, i32, i32) {
    %c0_i32 = arith.constant 0 : i32
    %c0_i32_0 = arith.constant 0 : i32
    %c0_i32_1 = arith.constant 0 : i32
    return %arg1, %c0_i32, %c0_i32_0 : i32, i32, i32
  }
  func.func @transform_3(%arg0: i32, %arg1: i32) -> (i32, i32, i32) {
    %c0_i32 = arith.constant 0 : i32
    %c0_i32_0 = arith.constant 0 : i32
    %c0_i32_1 = arith.constant 0 : i32
    return %arg1, %c0_i32, %c0_i32_0 : i32, i32, i32
  }
  func.func @transform_4(%arg0: i32, %arg1: i32) -> (i32, i32, i32) {
    %c0_i32 = arith.constant 0 : i32
    %c0_i32_0 = arith.constant 0 : i32
    %c0_i32_1 = arith.constant 0 : i32
    return %arg1, %c0_i32, %c0_i32_0 : i32, i32, i32
  }
  func.func @transform_5(%arg0: i32, %arg1: i32) -> (i32, i32, i32) {
    %c0_i32 = arith.constant 0 : i32
    %c0_i32_0 = arith.constant 0 : i32
    %c0_i32_1 = arith.constant 0 : i32
    return %arg1, %c0_i32, %c0_i32_0 : i32, i32, i32
  }
  func.func @transform_6(%arg0: i32, %arg1: i32) -> (i32, i32, i32) {
    %c0_i32 = arith.constant 0 : i32
    %c0_i32_0 = arith.constant 0 : i32
    %c0_i32_1 = arith.constant 0 : i32
    return %arg1, %c0_i32, %c0_i32_0 : i32, i32, i32
  }
  func.func @transform_7(%arg0: i32, %arg1: i32) -> (i32, i32, i32) {
    %c0_i32 = arith.constant 0 : i32
    %c0_i32_0 = arith.constant 0 : i32
    %c0_i32_1 = arith.constant 0 : i32
    return %arg1, %c0_i32, %c0_i32_0 : i32, i32, i32
  }
  func.func @transform_8(%arg0: i32, %arg1: i32) -> (i32, i32, i32) {
    %c0_i32 = arith.constant 0 : i32
    %c0_i32_0 = arith.constant 0 : i32
    %c0_i32_1 = arith.constant 0 : i32
    return %arg1, %c0_i32, %c0_i32_0 : i32, i32, i32
  }
  func.func @transform_9(%arg0: i32, %arg1: i32) -> (i32, i32, i32) {
    %c0_i32 = arith.constant 0 : i32
    %c0_i32_0 = arith.constant 0 : i32
    %c0_i32_1 = arith.constant 0 : i32
    return %arg1, %c0_i32, %c0_i32_0 : i32, i32, i32
  }
  func.func @transform_10(%arg0: i32, %arg1: i32) -> (i32, i32, i32) {
    %c0_i32 = arith.constant 0 : i32
    %c0_i32_0 = arith.constant 0 : i32
    %c0_i32_1 = arith.constant 0 : i32
    return %arg1, %c0_i32, %c0_i32_0 : i32, i32, i32
  }
  func.func @transform_11(%arg0: i32, %arg1: i32) -> (i32, i32, i32) {
    %c0_i32 = arith.constant 0 : i32
    %c0_i32_0 = arith.constant 0 : i32
    %c0_i32_1 = arith.constant 0 : i32
    return %arg1, %c0_i32, %c0_i32_0 : i32, i32, i32
  }
  func.func @transform_12(%arg0: i32, %arg1: i32) -> (i32, i32, i32) {
    %c0_i32 = arith.constant 0 : i32
    %c0_i32_0 = arith.constant 0 : i32
    %c0_i32_1 = arith.constant 0 : i32
    return %arg1, %c0_i32, %c0_i32_0 : i32, i32, i32
  }
  func.func @transform_13(%arg0: i32, %arg1: i32) -> (i32, i32, i32) {
    %c0_i32 = arith.constant 0 : i32
    %c0_i32_0 = arith.constant 0 : i32
    %c0_i32_1 = arith.constant 0 : i32
    return %arg1, %c0_i32, %c0_i32_0 : i32, i32, i32
  }
  func.func @transform_14(%arg0: i32, %arg1: i32) -> (i32, i32, i32) {
    %c0_i32 = arith.constant 0 : i32
    %c0_i32_0 = arith.constant 0 : i32
    %c0_i32_1 = arith.constant 0 : i32
    return %arg1, %c0_i32, %c0_i32_0 : i32, i32, i32
  }
  func.func @transform_15(%arg0: i32, %arg1: i32) -> (i32, i32, i32) {
    %c0_i32 = arith.constant 0 : i32
    %c0_i32_0 = arith.constant 0 : i32
    %c0_i32_1 = arith.constant 0 : i32
    return %arg1, %c0_i32, %c0_i32_0 : i32, i32, i32
  }
  func.func @transform_16(%arg0: i32, %arg1: i32) -> (i32, i32, i32) {
    %c0_i32 = arith.constant 0 : i32
    %c0_i32_0 = arith.constant 0 : i32
    %c0_i32_1 = arith.constant 0 : i32
    return %arg1, %c0_i32, %c0_i32_0 : i32, i32, i32
  }
  func.func @transform_17(%arg0: i32, %arg1: i32) -> (i32, i32, i32) {
    %c0_i32 = arith.constant 0 : i32
    %c0_i32_0 = arith.constant 0 : i32
    %c0_i32_1 = arith.constant 0 : i32
    return %arg1, %c0_i32, %c0_i32_0 : i32, i32, i32
  }
  func.func @transform_18(%arg0: i32, %arg1: i32) -> (i32, i32) {
    %c0_i32 = arith.constant 0 : i32
    %c0_i32_0 = arith.constant 0 : i32
    %c0_i32_1 = arith.constant 0 : i32
    return %c0_i32, %c0_i32_0 : i32, i32
  }
  func.func @transform_19(%arg0: i32, %arg1: i32) -> (i32, i32) {
    %c0_i32 = arith.constant 0 : i32
    %c0_i32_0 = arith.constant 0 : i32
    %c0_i32_1 = arith.constant 0 : i32
    return %c0_i32, %c0_i32_0 : i32, i32
  }
  func.func @transform_20(%arg0: i32, %arg1: i32) -> (i32, i32) {
    %c0_i32 = arith.constant 0 : i32
    %c0_i32_0 = arith.constant 0 : i32
    %c0_i32_1 = arith.constant 0 : i32
    return %c0_i32, %c0_i32_0 : i32, i32
  }
  func.func @transform_21(%arg0: i32, %arg1: i32) -> (i32, i32) {
    %c0_i32 = arith.constant 0 : i32
    %c0_i32_0 = arith.constant 0 : i32
    %c0_i32_1 = arith.constant 0 : i32
    return %c0_i32, %c0_i32_0 : i32, i32
  }
  func.func @transform_22(%arg0: i32, %arg1: i32) -> (i32, i32) {
    %c0_i32 = arith.constant 0 : i32
    %c0_i32_0 = arith.constant 0 : i32
    return %arg0, %c0_i32 : i32, i32
  }
}

</mosaic_0001>

<llo_original>
// kernel: tpu_custom_call.1
$region0: #{tpu_custom_call.1}
  #allocation0 [shape = 'u32[]', space=smem, size = 0x4, offset = 0x4, fixed_abs, tag = 'smem constant byte address 0x4 - core index']
  #allocation1 [shape = 'u32[144,128]{1,0:T(1,128)}', space=vmem, size = 0x12000, scoped, tag = 'internal scratch']
  #allocation2 [shape = 'f32[16,128]{1,0:T(8,128)}', space=vmem, size = 0x2000, scoped, tag = 'scratch operand']
  %s0 = inlined_call_operand.hbm [shape: bf16[2,8,128], index: 0, kind: input, shape index: {}]
  %s1 = inlined_call_operand.vmem [shape: f32[2,1,8], index: 1, kind: input, shape index: {}]
  %s2 = inlined_call_operand.hbm [shape: bf16[2,128,128], index: 2, kind: input, shape index: {}]
  %s3 = inlined_call_operand.hbm [shape: f32[2,1,128], index: 3, kind: input, shape index: {}]
  %s4 = inlined_call_operand.hbm [shape: bf16[2,128,128], index: 4, kind: input, shape index: {}]
  %s5 = inlined_call_operand.vmem [shape: f32[2,1,128], index: 5, kind: input, shape index: {}]
  %s6 = inlined_call_operand.hbm [shape: bf16[2,128,128], index: 6, kind: input, shape index: {}]
  %s7 = inlined_call_operand.vmem [shape: f32[2,1,128], index: 7, kind: input, shape index: {}]
  %s8 = inlined_call_operand.hbm [shape: bf16[2,128,128], index: 8, kind: input, shape index: {}]
  %s9 = inlined_call_operand.vmem [shape: f32[2,1,128], index: 9, kind: input, shape index: {}]
  %s10 = inlined_call_operand.vmem [shape: f32[2,1,128], index: 10, kind: input, shape index: {}]
  %s11 = inlined_call_operand.vmem [shape: f32[2,1,128], index: 11, kind: input, shape index: {}]
  %s12 = inlined_call_operand.hbm [shape: bf16[2,128,512], index: 12, kind: input, shape index: {}]
  %s13 = inlined_call_operand.vmem [shape: f32[2,1,512], index: 13, kind: input, shape index: {}]
  %s14 = inlined_call_operand.hbm [shape: bf16[2,512,128], index: 14, kind: input, shape index: {}]
  %s15 = inlined_call_operand.vmem [shape: f32[2,1,128], index: 15, kind: input, shape index: {}]
  %s16 = inlined_call_operand.vmem [shape: f32[2,1,128], index: 16, kind: input, shape index: {}]
  %s17 = inlined_call_operand.vmem [shape: f32[2,1,128], index: 17, kind: input, shape index: {}]
  %s18 = inlined_call_operand.hbm [shape: bf16[128,512], index: 18, kind: input, shape index: {}]
  %s19 = inlined_call_operand.vmem [shape: f32[1,512], index: 19, kind: input, shape index: {}]
  %s20 = inlined_call_operand.hbm [shape: bf16[512,128], index: 20, kind: input, shape index: {}]
  %s21 = inlined_call_operand.vmem [shape: f32[1,128], index: 21, kind: input, shape index: {}]
  %s22 = inlined_call_operand.hbm [shape: f32[2,128], index: 22, kind: output, shape index: {}]
  %s23 = sld [smem:[#allocation0]]
  $region169: #{tpu_custom_call.1} parent=0
    _
  %s25 = ssub.s32 1, %s23
  %s26 = scalar_select 0, %s25, %s23
  $region1: #{tpu_custom_call.1} parent=0
    #allocation3 [shape = 'u8[4096]{0}', space=vmem, size = 0x1000, scoped, tag = 'input window, operand 0, single buffered']
    #allocation4 [shape = 's32[2]{0}', space=sflag, size = 0x8, scoped, tag = 'scoped memory for tpu_custom_call.1']
    #allocation5 [shape = 's32[2]{0}', space=sflag, size = 0x8, scoped, tag = 'scoped memory for tpu_custom_call.1']
    #allocation6 [shape = 'u8[65536]{0}', space=vmem, size = 0x10000, scoped, tag = 'input window, operand 2']
    #allocation7 [shape = 's32[2]{0}', space=sflag, size = 0x8, scoped, tag = 'scoped memory for tpu_custom_call.1']
    #allocation8 [shape = 'u8[1024]{0}', space=vmem, size = 0x400, scoped, tag = 'input window, operand 3']
    #allocation9 [shape = 'u8[65536]{0}', space=vmem, size = 0x10000, scoped, tag = 'input window, operand 4']
    #allocation10 [shape = 's32[2]{0}', space=sflag, size = 0x8, scoped, tag = 'scoped memory for tpu_custom_call.1']
    #allocation11 [shape = 'u8[65536]{0}', space=vmem, size = 0x10000, scoped, tag = 'input window, operand 6']
    #allocation12 [shape = 'u8[65536]{0}', space=vmem, size = 0x10000, scoped, tag = 'input window, operand 8']
    #allocation13 [shape = 's32[2]{0}', space=sflag, size = 0x8, scoped, tag = 'scoped memory for tpu_custom_call.1']
    #allocation14 [shape = 'u8[262144]{0}', space=vmem, size = 0x40000, scoped, tag = 'input window, operand 12']
    #allocation15 [shape = 'u8[262144]{0}', space=vmem, size = 0x40000, scoped, tag = 'input window, operand 14']
    #allocation16 [shape = 's32[2]{0}', space=sflag, size = 0x8, scoped, tag = 'scoped memory for tpu_custom_call.1']
    #allocation17 [shape = 'u8[131072]{0}', space=vmem, size = 0x20000, scoped, tag = 'input window, operand 18, single buffered']
    #allocation18 [shape = 'u8[131072]{0}', space=vmem, size = 0x20000, scoped, tag = 'input window, operand 20, single buffered']
    #allocation19 [shape = 's32[1]{0}', space=sflag, size = 0x4, scoped, tag = 'scoped memory for tpu_custom_call.1']
    #allocation20 [shape = 'u8[1024]{0}', space=vmem, size = 0x400, scoped, tag = 'output window, operand 0, single buffered']
    %27 = vsyncpa [#allocation4], 0
    %28 = vsyncpa [#allocation7], 0
    %s29 = scalar_lea.sflag [#allocation7], 1
    %30 = vsyncpa %s29, 0
    %31 = vsyncpa [#allocation10], 0
    %s32 = scalar_lea.sflag [#allocation10], 1
    %33 = vsyncpa %s32, 0
    %34 = vsyncpa [#allocation13], 0
    %s35 = scalar_lea.sflag [#allocation13], 1
    %36 = vsyncpa %s35, 0
    %37 = vsyncpa [#allocation16], 0
    %s38 = scalar_lea.sflag [#allocation16], 1
    %39 = vsyncpa %s38, 0
    %40 = vsyncpa [#allocation19], 0
    %41 = vsyncpa [#allocation5], 0
    loop: start=0, step=1, limit=4
    $region2: #{tpu_custom_call.1} parent=1 // loop_pre_header
      _
    $region3: #{tpu_custom_call.1} parent=1 // loop_header
      %s43 = sphi 0, %s47
      %p44 = scmp.ge.s32.totalorder %s43, 4
      %s50 = sphi 0, %s62
      %s51 = sphi 0, %s58
      %s52 = sphi 0, %s50
      %s53 = sphi 0, %s51
      %s54 = sphi 0, %s52
      %s55 = sphi 0, %s53
      %s65 = sphi 0, %s67
      %s68 = sphi 0, %s65
      %s69 = sphi 0, %s68
      %s85 = sphi 0, %s69
      %s91 = sphi 0, %s93
      %s94 = sphi 0, %s91
      %s95 = sphi 0, %s94
      %s111 = sphi 0, %s95
      %s117 = sphi 0, %s119
      %s120 = sphi 0, %s117
      %s121 = sphi 0, %s120
      %s137 = sphi 0, %s121
      %s143 = sphi 0, %s145
      %s146 = sphi 0, %s143
      %s147 = sphi 0, %s146
      %s163 = sphi 0, %s147
      %s169 = sphi 0, %s171
      %s172 = sphi 0, %s169
      %s173 = sphi 0, %s172
      %s189 = sphi 0, %s173
      %s195 = sphi 0, %s197
      %s198 = sphi 0, %s195
      %s199 = sphi 0, %s198
      %s215 = sphi 0, %s199
      %s221 = sphi 0, %s223
      %s224 = sphi 0, %s221
      %s225 = sphi 0, %s224
      %s241 = sphi 0, %s225
      %s247 = sphi 0, %s249
      %s250 = sphi 0, %s247
      %s251 = sphi 0, %s250
      %s267 = sphi 0, %s251
      %s273 = sphi 0, %s275
      %s276 = sphi 0, %s273
      %s277 = sphi 0, %s276
      %s293 = sphi 0, %s277
      %s299 = sphi 0, %s301
      %s302 = sphi 0, %s299
      %s303 = sphi 0, %s302
      %s319 = sphi 0, %s303
      %s325 = sphi 0, %s327
      %s328 = sphi 0, %s325
      %s329 = sphi 0, %s328
      %s345 = sphi 0, %s329
      %s351 = sphi 0, %s353
      %s354 = sphi 0, %s351
      %s355 = sphi 0, %s354
      %s371 = sphi 0, %s355
      %s377 = sphi 0, %s379
      %s380 = sphi 0, %s377
      %s381 = sphi 0, %s380
      %s397 = sphi 0, %s381
      %s403 = sphi 0, %s405
      %s406 = sphi 0, %s403
      %s407 = sphi 0, %s406
      %s423 = sphi 0, %s407
      %s429 = sphi 0, %s431
      %s432 = sphi 0, %s429
      %s433 = sphi 0, %s432
      %s449 = sphi 0, %s433
      %s455 = sphi 0, %s457
      %s458 = sphi 0, %s455
      %s459 = sphi 0, %s458
      %s475 = sphi 0, %s459
      %s481 = sphi 0, %s483
      %s484 = sphi 0, %s481
      %s485 = sphi 0, %s484
      %s501 = sphi 0, %s485
      %s507 = sphi 0, %s509
      %s510 = sphi 0, %s507
      %s511 = sphi 0, %s510
      %s527 = sphi 0, %s511
      %s531 = sphi 0, %s531
      %s533 = sphi 0, %s531
      %s534 = sphi 0, %s533
      %s548 = sphi 0, %s534
      %s552 = sphi 0, %s552
      %s554 = sphi 0, %s552
      %s555 = sphi 0, %s554
      %s569 = sphi 0, %s555
      %s573 = sphi 0, %s573
      %s575 = sphi 0, %s573
      %s576 = sphi 0, %s575
      %s590 = sphi 0, %s576
      %s594 = sphi 0, %s594
      %s596 = sphi 0, %s594
      %s597 = sphi 0, %s596
      %s611 = sphi 0, %s597
      %s617 = sphi 0, %s619
      %s620 = sphi 0, %s617
      %s621 = sphi 0, %s620
      %s637 = sphi 0, %s621
    $region4: #{tpu_custom_call.1} parent=1 // loop_header_branch
      %46 = sbr.rel (%p44) target = $region8
    $region5: #{tpu_custom_call.1} parent=1 // loop_body
      %s48 = ssub.s32 %s43, 1
      %s49 = ssub.s32 %s43, 2
      %s56 = sadd.s32 1, %s51
      %p57 = scmp.ge.s32.totalorder %s56, 2
      %s58 = scalar_select %p57, 0, %s56
      %s59 = sadd.s32 1, %s50
      %s60 = scalar_select %p57, %s59, %s50
      %p61 = scmp.ge.s32.totalorder %s60, 1
      %s62 = scalar_select %p61, 0, %s60
      %s63 = ssub.s32 %s50, %s62
      %p64 = scmp.eq.s32.totalorder %s63, 0
      %s66 = sadd.s32 %s65, 1
      %s67 = scalar_select %p64, %s65, %s66
      %p70 = pneg %p64
      %p71 = scmp.eq.s32.totalorder %s43, 1
      %p72 = por %p70, %p71
      %p73 = scmp.ne.s32.totalorder %s65, %s68
      %p74 = scmp.eq.s32.totalorder %s43, 0
      %p75 = por %p73, %p74
      %p76 = scmp.ne.s32.totalorder %s65, %s68
      %p77 = scmp.eq.s32.totalorder %s48, 1
      %p78 = por %p76, %p77
      %p79 = scmp.ne.s32.totalorder %s68, %s69
      %p80 = scmp.eq.s32.totalorder %s48, 0
      %p81 = por %p79, %p80
      %p82 = scmp.ne.s32.totalorder %s68, %s69
      %p83 = scmp.eq.s32.totalorder %s49, 1
      %p84 = por %p82, %p83
      %p86 = scmp.ne.s32.totalorder %s69, %s85
      %p87 = scmp.eq.s32.totalorder %s49, 0
      %p88 = por %p86, %p87
      %s89 = ssub.s32 %s50, %s62
      %p90 = scmp.eq.s32.totalorder %s89, 0
      %s92 = sadd.s32 %s91, 1
      %s93 = scalar_select %p90, %s91, %s92
      %p96 = pneg %p90
      %p97 = scmp.eq.s32.totalorder %s43, 1
      %p98 = por %p96, %p97
      %p99 = scmp.ne.s32.totalorder %s91, %s94
      %p100 = scmp.eq.s32.totalorder %s43, 0
      %p101 = por %p99, %p100
      %p102 = scmp.ne.s32.totalorder %s91, %s94
      %p103 = scmp.eq.s32.totalorder %s48, 1
      %p104 = por %p102, %p103
      %p105 = scmp.ne.s32.totalorder %s94, %s95
      %p106 = scmp.eq.s32.totalorder %s48, 0
      %p107 = por %p105, %p106
      %p108 = scmp.ne.s32.totalorder %s94, %s95
      %p109 = scmp.eq.s32.totalorder %s49, 1
      %p110 = por %p108, %p109
      %p112 = scmp.ne.s32.totalorder %s95, %s111
      %p113 = scmp.eq.s32.totalorder %s49, 0
      %p114 = por %p112, %p113
      %s115 = ssub.s32 %s51, %s58
      %p116 = scmp.eq.s32.totalorder %s115, 0
      %s118 = sadd.s32 %s117, 1
      %s119 = scalar_select %p116, %s117, %s118
      %p122 = pneg %p116
      %p123 = scmp.eq.s32.totalorder %s43, 1
      %p124 = por %p122, %p123
      %p125 = scmp.ne.s32.totalorder %s117, %s120
      %p126 = scmp.eq.s32.totalorder %s43, 0
      %p127 = por %p125, %p126
      %p128 = scmp.ne.s32.totalorder %s117, %s120
      %p129 = scmp.eq.s32.totalorder %s48, 1
      %p130 = por %p128, %p129
      %p131 = scmp.ne.s32.totalorder %s120, %s121
      %p132 = scmp.eq.s32.totalorder %s48, 0
      %p133 = por %p131, %p132
      %p134 = scmp.ne.s32.totalorder %s120, %s121
      %p135 = scmp.eq.s32.totalorder %s49, 1
      %p136 = por %p134, %p135
      %p138 = scmp.ne.s32.totalorder %s121, %s137
      %p139 = scmp.eq.s32.totalorder %s49, 0
      %p140 = por %p138, %p139
      %s141 = ssub.s32 %s51, %s58
      %p142 = scmp.eq.s32.totalorder %s141, 0
      %s144 = sadd.s32 %s143, 1
      %s145 = scalar_select %p142, %s143, %s144
      %p148 = pneg %p142
      %p149 = scmp.eq.s32.totalorder %s43, 1
      %p150 = por %p148, %p149
      %p151 = scmp.ne.s32.totalorder %s143, %s146
      %p152 = scmp.eq.s32.totalorder %s43, 0
      %p153 = por %p151, %p152
      %p154 = scmp.ne.s32.totalorder %s143, %s146
      %p155 = scmp.eq.s32.totalorder %s48, 1
      %p156 = por %p154, %p155
      %p157 = scmp.ne.s32.totalorder %s146, %s147
      %p158 = scmp.eq.s32.totalorder %s48, 0
      %p159 = por %p157, %p158
      %p160 = scmp.ne.s32.totalorder %s146, %s147
      %p161 = scmp.eq.s32.totalorder %s49, 1
      %p162 = por %p160, %p161
      %p164 = scmp.ne.s32.totalorder %s147, %s163
      %p165 = scmp.eq.s32.totalorder %s49, 0
      %p166 = por %p164, %p165
      %s167 = ssub.s32 %s51, %s58
      %p168 = scmp.eq.s32.totalorder %s167, 0
      %s170 = sadd.s32 %s169, 1
      %s171 = scalar_select %p168, %s169, %s170
      %p174 = pneg %p168
      %p175 = scmp.eq.s32.totalorder %s43, 1
      %p176 = por %p174, %p175
      %p177 = scmp.ne.s32.totalorder %s169, %s172
      %p178 = scmp.eq.s32.totalorder %s43, 0
      %p179 = por %p177, %p178
      %p180 = scmp.ne.s32.totalorder %s169, %s172
      %p181 = scmp.eq.s32.totalorder %s48, 1
      %p182 = por %p180, %p181
      %p183 = scmp.ne.s32.totalorder %s172, %s173
      %p184 = scmp.eq.s32.totalorder %s48, 0
      %p185 = por %p183, %p184
      %p186 = scmp.ne.s32.totalorder %s172, %s173
      %p187 = scmp.eq.s32.totalorder %s49, 1
      %p188 = por %p186, %p187
      %p190 = scmp.ne.s32.totalorder %s173, %s189
      %p191 = scmp.eq.s32.totalorder %s49, 0
      %p192 = por %p190, %p191
      %s193 = ssub.s32 %s51, %s58
      %p194 = scmp.eq.s32.totalorder %s193, 0
      %s196 = sadd.s32 %s195, 1
      %s197 = scalar_select %p194, %s195, %s196
      %p200 = pneg %p194
      %p201 = scmp.eq.s32.totalorder %s43, 1
      %p202 = por %p200, %p201
      %p203 = scmp.ne.s32.totalorder %s195, %s198
      %p204 = scmp.eq.s32.totalorder %s43, 0
      %p205 = por %p203, %p204
      %p206 = scmp.ne.s32.totalorder %s195, %s198
      %p207 = scmp.eq.s32.totalorder %s48, 1
      %p208 = por %p206, %p207
      %p209 = scmp.ne.s32.totalorder %s198, %s199
      %p210 = scmp.eq.s32.totalorder %s48, 0
      %p211 = por %p209, %p210
      %p212 = scmp.ne.s32.totalorder %s198, %s199
      %p213 = scmp.eq.s32.totalorder %s49, 1
      %p214 = por %p212, %p213
      %p216 = scmp.ne.s32.totalorder %s199, %s215
      %p217 = scmp.eq.s32.totalorder %s49, 0
      %p218 = por %p216, %p217
      %s219 = ssub.s32 %s51, %s58
      %p220 = scmp.eq.s32.totalorder %s219, 0
      %s222 = sadd.s32 %s221, 1
      %s223 = scalar_select %p220, %s221, %s222
      %p226 = pneg %p220
      %p227 = scmp.eq.s32.totalorder %s43, 1
      %p228 = por %p226, %p227
      %p229 = scmp.ne.s32.totalorder %s221, %s224
      %p230 = scmp.eq.s32.totalorder %s43, 0
      %p231 = por %p229, %p230
      %p232 = scmp.ne.s32.totalorder %s221, %s224
      %p233 = scmp.eq.s32.totalorder %s48, 1
      %p234 = por %p232, %p233
      %p235 = scmp.ne.s32.totalorder %s224, %s225
      %p236 = scmp.eq.s32.totalorder %s48, 0
      %p237 = por %p235, %p236
      %p238 = scmp.ne.s32.totalorder %s224, %s225
      %p239 = scmp.eq.s32.totalorder %s49, 1
      %p240 = por %p238, %p239
      %p242 = scmp.ne.s32.totalorder %s225, %s241
      %p243 = scmp.eq.s32.totalorder %s49, 0
      %p244 = por %p242, %p243
      %s245 = ssub.s32 %s51, %s58
      %p246 = scmp.eq.s32.totalorder %s245, 0
      %s248 = sadd.s32 %s247, 1
      %s249 = scalar_select %p246, %s247, %s248
      %p252 = pneg %p246
      %p253 = scmp.eq.s32.totalorder %s43, 1
      %p254 = por %p252, %p253
      %p255 = scmp.ne.s32.totalorder %s247, %s250
      %p256 = scmp.eq.s32.totalorder %s43, 0
      %p257 = por %p255, %p256
      %p258 = scmp.ne.s32.totalorder %s247, %s250
      %p259 = scmp.eq.s32.totalorder %s48, 1
      %p260 = por %p258, %p259
      %p261 = scmp.ne.s32.totalorder %s250, %s251
      %p262 = scmp.eq.s32.totalorder %s48, 0
      %p263 = por %p261, %p262
      %p264 = scmp.ne.s32.totalorder %s250, %s251
      %p265 = scmp.eq.s32.totalorder %s49, 1
      %p266 = por %p264, %p265
      %p268 = scmp.ne.s32.totalorder %s251, %s267
      %p269 = scmp.eq.s32.totalorder %s49, 0
      %p270 = por %p268, %p269
      %s271 = ssub.s32 %s51, %s58
      %p272 = scmp.eq.s32.totalorder %s271, 0
      %s274 = sadd.s32 %s273, 1
      %s275 = scalar_select %p272, %s273, %s274
      %p278 = pneg %p272
      %p279 = scmp.eq.s32.totalorder %s43, 1
      %p280 = por %p278, %p279
      %p281 = scmp.ne.s32.totalorder %s273, %s276
      %p282 = scmp.eq.s32.totalorder %s43, 0
      %p283 = por %p281, %p282
      %p284 = scmp.ne.s32.totalorder %s273, %s276
      %p285 = scmp.eq.s32.totalorder %s48, 1
      %p286 = por %p284, %p285
      %p287 = scmp.ne.s32.totalorder %s276, %s277
      %p288 = scmp.eq.s32.totalorder %s48, 0
      %p289 = por %p287, %p288
      %p290 = scmp.ne.s32.totalorder %s276, %s277
      %p291 = scmp.eq.s32.totalorder %s49, 1
      %p292 = por %p290, %p291
      %p294 = scmp.ne.s32.totalorder %s277, %s293
      %p295 = scmp.eq.s32.totalorder %s49, 0
      %p296 = por %p294, %p295
      %s297 = ssub.s32 %s51, %s58
      %p298 = scmp.eq.s32.totalorder %s297, 0
      %s300 = sadd.s32 %s299, 1
      %s301 = scalar_select %p298, %s299, %s300
      %p304 = pneg %p298
      %p305 = scmp.eq.s32.totalorder %s43, 1
      %p306 = por %p304, %p305
      %p307 = scmp.ne.s32.totalorder %s299, %s302
      %p308 = scmp.eq.s32.totalorder %s43, 0
      %p309 = por %p307, %p308
      %p310 = scmp.ne.s32.totalorder %s299, %s302
      %p311 = scmp.eq.s32.totalorder %s48, 1
      %p312 = por %p310, %p311
      %p313 = scmp.ne.s32.totalorder %s302, %s303
      %p314 = scmp.eq.s32.totalorder %s48, 0
      %p315 = por %p313, %p314
      %p316 = scmp.ne.s32.totalorder %s302, %s303
      %p317 = scmp.eq.s32.totalorder %s49, 1
      %p318 = por %p316, %p317
      %p320 = scmp.ne.s32.totalorder %s303, %s319
      %p321 = scmp.eq.s32.totalorder %s49, 0
      %p322 = por %p320, %p321
      %s323 = ssub.s32 %s51, %s58
      %p324 = scmp.eq.s32.totalorder %s323, 0
      %s326 = sadd.s32 %s325, 1
      %s327 = scalar_select %p324, %s325, %s326
      %p330 = pneg %p324
      %p331 = scmp.eq.s32.totalorder %s43, 1
      %p332 = por %p330, %p331
      %p333 = scmp.ne.s32.totalorder %s325, %s328
      %p334 = scmp.eq.s32.totalorder %s43, 0
      %p335 = por %p333, %p334
      %p336 = scmp.ne.s32.totalorder %s325, %s328
      %p337 = scmp.eq.s32.totalorder %s48, 1
      %p338 = por %p336, %p337
      %p339 = scmp.ne.s32.totalorder %s328, %s329
      %p340 = scmp.eq.s32.totalorder %s48, 0
      %p341 = por %p339, %p340
      %p342 = scmp.ne.s32.totalorder %s328, %s329
      %p343 = scmp.eq.s32.totalorder %s49, 1
      %p344 = por %p342, %p343
      %p346 = scmp.ne.s32.totalorder %s329, %s345
      %p347 = scmp.eq.s32.totalorder %s49, 0
      %p348 = por %p346, %p347
      %s349 = ssub.s32 %s51, %s58
      %p350 = scmp.eq.s32.totalorder %s349, 0
      %s352 = sadd.s32 %s351, 1
      %s353 = scalar_select %p350, %s351, %s352
      %p356 = pneg %p350
      %p357 = scmp.eq.s32.totalorder %s43, 1
      %p358 = por %p356, %p357
      %p359 = scmp.ne.s32.totalorder %s351, %s354
      %p360 = scmp.eq.s32.totalorder %s43, 0
      %p361 = por %p359, %p360
      %p362 = scmp.ne.s32.totalorder %s351, %s354
      %p363 = scmp.eq.s32.totalorder %s48, 1
      %p364 = por %p362, %p363
      %p365 = scmp.ne.s32.totalorder %s354, %s355
      %p366 = scmp.eq.s32.totalorder %s48, 0
      %p367 = por %p365, %p366
      %p368 = scmp.ne.s32.totalorder %s354, %s355
      %p369 = scmp.eq.s32.totalorder %s49, 1
      %p370 = por %p368, %p369
      %p372 = scmp.ne.s32.totalorder %s355, %s371
      %p373 = scmp.eq.s32.totalorder %s49, 0
      %p374 = por %p372, %p373
      %s375 = ssub.s32 %s51, %s58
      %p376 = scmp.eq.s32.totalorder %s375, 0
      %s378 = sadd.s32 %s377, 1
      %s379 = scalar_select %p376, %s377, %s378
      %p382 = pneg %p376
      %p383 = scmp.eq.s32.totalorder %s43, 1
      %p384 = por %p382, %p383
      %p385 = scmp.ne.s32.totalorder %s377, %s380
      %p386 = scmp.eq.s32.totalorder %s43, 0
      %p387 = por %p385, %p386
      %p388 = scmp.ne.s32.totalorder %s377, %s380
      %p389 = scmp.eq.s32.totalorder %s48, 1
      %p390 = por %p388, %p389
      %p391 = scmp.ne.s32.totalorder %s380, %s381
      %p392 = scmp.eq.s32.totalorder %s48, 0
      %p393 = por %p391, %p392
      %p394 = scmp.ne.s32.totalorder %s380, %s381
      %p395 = scmp.eq.s32.totalorder %s49, 1
      %p396 = por %p394, %p395
      %p398 = scmp.ne.s32.totalorder %s381, %s397
      %p399 = scmp.eq.s32.totalorder %s49, 0
      %p400 = por %p398, %p399
      %s401 = ssub.s32 %s51, %s58
      %p402 = scmp.eq.s32.totalorder %s401, 0
      %s404 = sadd.s32 %s403, 1
      %s405 = scalar_select %p402, %s403, %s404
      %p408 = pneg %p402
      %p409 = scmp.eq.s32.totalorder %s43, 1
      %p410 = por %p408, %p409
      %p411 = scmp.ne.s32.totalorder %s403, %s406
      %p412 = scmp.eq.s32.totalorder %s43, 0
      %p413 = por %p411, %p412
      %p414 = scmp.ne.s32.totalorder %s403, %s406
      %p415 = scmp.eq.s32.totalorder %s48, 1
      %p416 = por %p414, %p415
      %p417 = scmp.ne.s32.totalorder %s406, %s407
      %p418 = scmp.eq.s32.totalorder %s48, 0
      %p419 = por %p417, %p418
      %p420 = scmp.ne.s32.totalorder %s406, %s407
      %p421 = scmp.eq.s32.totalorder %s49, 1
      %p422 = por %p420, %p421
      %p424 = scmp.ne.s32.totalorder %s407, %s423
      %p425 = scmp.eq.s32.totalorder %s49, 0
      %p426 = por %p424, %p425
      %s427 = ssub.s32 %s51, %s58
      %p428 = scmp.eq.s32.totalorder %s427, 0
      %s430 = sadd.s32 %s429, 1
      %s431 = scalar_select %p428, %s429, %s430
      %p434 = pneg %p428
      %p435 = scmp.eq.s32.totalorder %s43, 1
      %p436 = por %p434, %p435
      %p437 = scmp.ne.s32.totalorder %s429, %s432
      %p438 = scmp.eq.s32.totalorder %s43, 0
      %p439 = por %p437, %p438
      %p440 = scmp.ne.s32.totalorder %s429, %s432
      %p441 = scmp.eq.s32.totalorder %s48, 1
      %p442 = por %p440, %p441
      %p443 = scmp.ne.s32.totalorder %s432, %s433
      %p444 = scmp.eq.s32.totalorder %s48, 0
      %p445 = por %p443, %p444
      %p446 = scmp.ne.s32.totalorder %s432, %s433
      %p447 = scmp.eq.s32.totalorder %s49, 1
      %p448 = por %p446, %p447
      %p450 = scmp.ne.s32.totalorder %s433, %s449
      %p451 = scmp.eq.s32.totalorder %s49, 0
      %p452 = por %p450, %p451
      %s453 = ssub.s32 %s51, %s58
      %p454 = scmp.eq.s32.totalorder %s453, 0
      %s456 = sadd.s32 %s455, 1
      %s457 = scalar_select %p454, %s455, %s456
      %p460 = pneg %p454
      %p461 = scmp.eq.s32.totalorder %s43, 1
      %p462 = por %p460, %p461
      %p463 = scmp.ne.s32.totalorder %s455, %s458
      %p464 = scmp.eq.s32.totalorder %s43, 0
      %p465 = por %p463, %p464
      %p466 = scmp.ne.s32.totalorder %s455, %s458
      %p467 = scmp.eq.s32.totalorder %s48, 1
      %p468 = por %p466, %p467
      %p469 = scmp.ne.s32.totalorder %s458, %s459
      %p470 = scmp.eq.s32.totalorder %s48, 0
      %p471 = por %p469, %p470
      %p472 = scmp.ne.s32.totalorder %s458, %s459
      %p473 = scmp.eq.s32.totalorder %s49, 1
      %p474 = por %p472, %p473
      %p476 = scmp.ne.s32.totalorder %s459, %s475
      %p477 = scmp.eq.s32.totalorder %s49, 0
      %p478 = por %p476, %p477
      %s479 = ssub.s32 %s51, %s58
      %p480 = scmp.eq.s32.totalorder %s479, 0
      %s482 = sadd.s32 %s481, 1
      %s483 = scalar_select %p480, %s481, %s482
      %p486 = pneg %p480
      %p487 = scmp.eq.s32.totalorder %s43, 1
      %p488 = por %p486, %p487
      %p489 = scmp.ne.s32.totalorder %s481, %s484
      %p490 = scmp.eq.s32.totalorder %s43, 0
      %p491 = por %p489, %p490
      %p492 = scmp.ne.s32.totalorder %s481, %s484
      %p493 = scmp.eq.s32.totalorder %s48, 1
      %p494 = por %p492, %p493
      %p495 = scmp.ne.s32.totalorder %s484, %s485
      %p496 = scmp.eq.s32.totalorder %s48, 0
      %p497 = por %p495, %p496
      %p498 = scmp.ne.s32.totalorder %s484, %s485
      %p499 = scmp.eq.s32.totalorder %s49, 1
      %p500 = por %p498, %p499
      %p502 = scmp.ne.s32.totalorder %s485, %s501
      %p503 = scmp.eq.s32.totalorder %s49, 0
      %p504 = por %p502, %p503
      %s505 = ssub.s32 %s51, %s58
      %p506 = scmp.eq.s32.totalorder %s505, 0
      %s508 = sadd.s32 %s507, 1
      %s509 = scalar_select %p506, %s507, %s508
      %p512 = pneg %p506
      %p513 = scmp.eq.s32.totalorder %s43, 1
      %p514 = por %p512, %p513
      %p515 = scmp.ne.s32.totalorder %s507, %s510
      %p516 = scmp.eq.s32.totalorder %s43, 0
      %p517 = por %p515, %p516
      %p518 = scmp.ne.s32.totalorder %s507, %s510
      %p519 = scmp.eq.s32.totalorder %s48, 1
      %p520 = por %p518, %p519
      %p521 = scmp.ne.s32.totalorder %s510, %s511
      %p522 = scmp.eq.s32.totalorder %s48, 0
      %p523 = por %p521, %p522
      %p524 = scmp.ne.s32.totalorder %s510, %s511
      %p525 = scmp.eq.s32.totalorder %s49, 1
      %p526 = por %p524, %p525
      %p528 = scmp.ne.s32.totalorder %s511, %s527
      %p529 = scmp.eq.s32.totalorder %s49, 0
      %p530 = por %p528, %p529
      %s532 = sadd.s32 %s531, 1
      %p535 = scmp.eq.s32.totalorder %s43, 1
      %p536 = scmp.ne.s32.totalorder %s531, %s533
      %p537 = scmp.eq.s32.totalorder %s43, 0
      %p538 = por %p536, %p537
      %p539 = scmp.ne.s32.totalorder %s531, %s533
      %p540 = scmp.eq.s32.totalorder %s48, 1
      %p541 = por %p539, %p540
      %p542 = scmp.ne.s32.totalorder %s533, %s534
      %p543 = scmp.eq.s32.totalorder %s48, 0
      %p544 = por %p542, %p543
      %p545 = scmp.ne.s32.totalorder %s533, %s534
      %p546 = scmp.eq.s32.totalorder %s49, 1
      %p547 = por %p545, %p546
      %p549 = scmp.ne.s32.totalorder %s534, %s548
      %p550 = scmp.eq.s32.totalorder %s49, 0
      %p551 = por %p549, %p550
      %s553 = sadd.s32 %s552, 1
      %p556 = scmp.eq.s32.totalorder %s43, 1
      %p557 = scmp.ne.s32.totalorder %s552, %s554
      %p558 = scmp.eq.s32.totalorder %s43, 0
      %p559 = por %p557, %p558
      %p560 = scmp.ne.s32.totalorder %s552, %s554
      %p561 = scmp.eq.s32.totalorder %s48, 1
      %p562 = por %p560, %p561
      %p563 = scmp.ne.s32.totalorder %s554, %s555
      %p564 = scmp.eq.s32.totalorder %s48, 0
      %p565 = por %p563, %p564
      %p566 = scmp.ne.s32.totalorder %s554, %s555
      %p567 = scmp.eq.s32.totalorder %s49, 1
      %p568 = por %p566, %p567
      %p570 = scmp.ne.s32.totalorder %s555, %s569
      %p571 = scmp.eq.s32.totalorder %s49, 0
      %p572 = por %p570, %p571
      %s574 = sadd.s32 %s573, 1
      %p577 = scmp.eq.s32.totalorder %s43, 1
      %p578 = scmp.ne.s32.totalorder %s573, %s575
      %p579 = scmp.eq.s32.totalorder %s43, 0
      %p580 = por %p578, %p579
      %p581 = scmp.ne.s32.totalorder %s573, %s575
      %p582 = scmp.eq.s32.totalorder %s48, 1
      %p583 = por %p581, %p582
      %p584 = scmp.ne.s32.totalorder %s575, %s576
      %p585 = scmp.eq.s32.totalorder %s48, 0
      %p586 = por %p584, %p585
      %p587 = scmp.ne.s32.totalorder %s575, %s576
      %p588 = scmp.eq.s32.totalorder %s49, 1
      %p589 = por %p587, %p588
      %p591 = scmp.ne.s32.totalorder %s576, %s590
      %p592 = scmp.eq.s32.totalorder %s49, 0
      %p593 = por %p591, %p592
      %s595 = sadd.s32 %s594, 1
      %p598 = scmp.eq.s32.totalorder %s43, 1
      %p599 = scmp.ne.s32.totalorder %s594, %s596
      %p600 = scmp.eq.s32.totalorder %s43, 0
      %p601 = por %p599, %p600
      %p602 = scmp.ne.s32.totalorder %s594, %s596
      %p603 = scmp.eq.s32.totalorder %s48, 1
      %p604 = por %p602, %p603
      %p605 = scmp.ne.s32.totalorder %s596, %s597
      %p606 = scmp.eq.s32.totalorder %s48, 0
      %p607 = por %p605, %p606
      %p608 = scmp.ne.s32.totalorder %s596, %s597
      %p609 = scmp.eq.s32.totalorder %s49, 1
      %p610 = por %p608, %p609
      %p612 = scmp.ne.s32.totalorder %s597, %s611
      %p613 = scmp.eq.s32.totalorder %s49, 0
      %p614 = por %p612, %p613
      %s615 = ssub.s32 %s50, %s62
      %p616 = scmp.eq.s32.totalorder %s615, 0
      %s618 = sadd.s32 %s617, 1
      %s619 = scalar_select %p616, %s617, %s618
      %p622 = pneg %p616
      %p623 = scmp.eq.s32.totalorder %s43, 1
      %p624 = por %p622, %p623
      %p625 = scmp.ne.s32.totalorder %s617, %s620
      %p626 = scmp.eq.s32.totalorder %s43, 0
      %p627 = por %p625, %p626
      %p628 = scmp.ne.s32.totalorder %s617, %s620
      %p629 = scmp.eq.s32.totalorder %s48, 1
      %p630 = por %p628, %p629
      %p631 = scmp.ne.s32.totalorder %s620, %s621
      %p632 = scmp.eq.s32.totalorder %s48, 0
      %p633 = por %p631, %p632
      %p634 = scmp.ne.s32.totalorder %s620, %s621
      %p635 = scmp.eq.s32.totalorder %s49, 1
      %p636 = por %p634, %p635
      %p638 = scmp.ne.s32.totalorder %s621, %s637
      %p639 = scmp.eq.s32.totalorder %s49, 0
      %p640 = por %p638, %p639
      %p641 = scmp.le.s32.totalorder 1, %s43
      %p642 = scmp.lt.s32.totalorder %s43, 3
      %p643 = pnand %p641, %p642
      %p644 = pneg %p643
      // Predicated region
      $region9: #{tpu_custom_call.1} parent=5 // pred_check
        _
      $region10: #{tpu_custom_call.1} parent=5 // pred_check_branch
        %646 = sbr.rel (%p643) target = $region12
      $region11: #{tpu_custom_call.1} parent=5 // pred_region
        %s647 = ssub.s32 %s43, 1
        // Predicated region
        $region13: #{tpu_custom_call.1} parent=11 // pred_check
          %p648 = pneg %p81
        $region14: #{tpu_custom_call.1} parent=11 // pred_check_branch
          %650 = sbr.rel (%p648) target = $region16
        $region15: #{tpu_custom_call.1} parent=11 // pred_region
          %s651 = smul.u32 2, %s52
          %s653 = ssub.s32 128, 128
          %654 = vsyncadd [#allocation4], %s653
          %s655 = smul.addr %s651, 64
          %s656 = scalar_lea.hbm %s0, %s655
          %s657 = sshll.u32 [#allocation3], 4
          %s658 = int_to_ptr.vmem [resolvable:$true] %s657
          %663 = dma.hbm_to_vmem [thread:$0]  %s656, 128, %s658, [#allocation4], 64, 64, 4
        $region16: #{tpu_custom_call.1} parent=11 // pred_fallthru
          _
        // Predicated region
        $region17: #{tpu_custom_call.1} parent=11 // pred_check
          %p664 = pneg %p107
        $region18: #{tpu_custom_call.1} parent=11 // pred_check_branch
          %666 = sbr.rel (%p664) target = $region20
        $region19: #{tpu_custom_call.1} parent=11 // pred_region
          %s667 = smul.u32 2, %s52
          %p668 = scmp.lt.s32.totalorder %s667, 1
          %s669 = scalar_select %p668, %s667, 1
          %s670 = scalar_lea.vmem %s1, %s669
          %s671 = smul.u32 2, %s52
        $region20: #{tpu_custom_call.1} parent=11 // pred_fallthru
          _
        // Predicated region
        $region21: #{tpu_custom_call.1} parent=11 // pred_check
          %p672 = pneg %p544
        $region22: #{tpu_custom_call.1} parent=11 // pred_check_branch
          %674 = sbr.rel (%p672) target = $region24
        $region23: #{tpu_custom_call.1} parent=11 // pred_region
          %s676 = ssub.s32 4096, 4096
          %677 = vsyncadd [#allocation16], %s676
          %s678 = sshll.u32 [#allocation17], 4
          %s679 = int_to_ptr.vmem [resolvable:$true] %s678
          %684 = dma.hbm_to_vmem [thread:$0]  %s18, 4096, %s679, [#allocation16], 256, 256, 16
        $region24: #{tpu_custom_call.1} parent=11 // pred_fallthru
          _
        // Predicated region
        $region25: #{tpu_custom_call.1} parent=11 // pred_check
          %p685 = pneg %p565
        $region26: #{tpu_custom_call.1} parent=11 // pred_check_branch
          %687 = sbr.rel (%p685) target = $region28
        $region27: #{tpu_custom_call.1} parent=11 // pred_region
          _
        $region28: #{tpu_custom_call.1} parent=11 // pred_fallthru
          _
        // Predicated region
        $region29: #{tpu_custom_call.1} parent=11 // pred_check
          %p688 = pneg %p586
        $region30: #{tpu_custom_call.1} parent=11 // pred_check_branch
          %690 = sbr.rel (%p688) target = $region32
        $region31: #{tpu_custom_call.1} parent=11 // pred_region
          %s692 = ssub.s32 4096, 4096
          %693 = vsyncadd [#allocation19], %s692
          %s694 = sshll.u32 [#allocation18], 4
          %s695 = int_to_ptr.vmem [resolvable:$true] %s694
          %700 = dma.hbm_to_vmem [thread:$0]  %s20, 4096, %s695, [#allocation19], 64, 64, 4
        $region32: #{tpu_custom_call.1} parent=11 // pred_fallthru
          _
        // Predicated region
        $region33: #{tpu_custom_call.1} parent=11 // pred_check
          %p701 = pneg %p607
        $region34: #{tpu_custom_call.1} parent=11 // pred_check_branch
          %703 = sbr.rel (%p701) target = $region36
        $region35: #{tpu_custom_call.1} parent=11 // pred_region
          _
        $region36: #{tpu_custom_call.1} parent=11 // pred_fallthru
          _
      $region12: #{tpu_custom_call.1} parent=5 // pred_fallthru
        _
      %p704 = scmp.lt.s32.totalorder %s43, 2
      // Predicated region
      $region37: #{tpu_custom_call.1} parent=5 // pred_check
        %p705 = pneg %p704
      $region38: #{tpu_custom_call.1} parent=5 // pred_check_branch
        %707 = sbr.rel (%p705) target = $region40
      $region39: #{tpu_custom_call.1} parent=5 // pred_region
        // Predicated region
        $region41: #{tpu_custom_call.1} parent=39 // pred_check
          %p708 = pneg %p127
        $region42: #{tpu_custom_call.1} parent=39 // pred_check_branch
          %710 = sbr.rel (%p708) target = $region44
        $region43: #{tpu_custom_call.1} parent=39 // pred_region
          %s711 = sand.u32 %s43, 1
          %s712 = scalar_lea.sflag [#allocation7], %s711
          %s713 = sand.u32 %s117, 1
          %s714 = smul.addr %s713, 64
          %s715 = scalar_lea.vmem [#allocation6], %s714
          %s717 = ssub.s32 1024, 1024
          %718 = vsyncadd %s712, %s717
          %s719 = smul.addr %s51, 16
          %s720 = smul.addr %s719, 64
          %s721 = scalar_lea.hbm %s2, %s720
          %s722 = sshll.u32 %s715, 4
          %s723 = int_to_ptr.vmem [resolvable:$true] %s722
          %728 = dma.hbm_to_vmem [thread:$0]  %s721, 1024, %s723, %s712, 64, 64, 4
        $region44: #{tpu_custom_call.1} parent=39 // pred_fallthru
          _
        // Predicated region
        $region45: #{tpu_custom_call.1} parent=39 // pred_check
          %p729 = pneg %p153
        $region46: #{tpu_custom_call.1} parent=39 // pred_check_branch
          %731 = sbr.rel (%p729) target = $region48
        $region47: #{tpu_custom_call.1} parent=39 // pred_region
          %s732 = sand.u32 %s43, 1
          %s733 = scalar_lea.sflag [#allocation7], %s732
          %s734 = sand.u32 %s143, 1
          %s735 = scalar_lea.vmem [#allocation8], %s734
          %s737 = ssub.s32 16, 16
          %738 = vsyncadd %s733, %s737
          %s739 = smul.addr %s51, 16
          %s740 = scalar_lea.hbm %s3, %s739
          %s742 = sshll.u32 %s735, 4
          %s743 = int_to_ptr.vmem [resolvable:$true] %s742
          %745 = dma.hbm_to_vmem [thread:$0]  %s740, 16, %s743, %s733
        $region48: #{tpu_custom_call.1} parent=39 // pred_fallthru
          _
        // Predicated region
        $region49: #{tpu_custom_call.1} parent=39 // pred_check
          %p746 = pneg %p179
        $region50: #{tpu_custom_call.1} parent=39 // pred_check_branch
          %748 = sbr.rel (%p746) target = $region52
        $region51: #{tpu_custom_call.1} parent=39 // pred_region
          %s749 = sand.u32 %s43, 1
          %s750 = scalar_lea.sflag [#allocation10], %s749
          %s751 = sand.u32 %s169, 1
          %s752 = smul.addr %s751, 64
          %s753 = scalar_lea.vmem [#allocation9], %s752
          %s755 = ssub.s32 1024, 1024
          %756 = vsyncadd %s750, %s755
          %s757 = smul.addr %s51, 16
          %s758 = smul.addr %s757, 64
          %s759 = scalar_lea.hbm %s4, %s758
          %s760 = sshll.u32 %s753, 4
          %s761 = int_to_ptr.vmem [resolvable:$true] %s760
          %766 = dma.hbm_to_vmem [thread:$0]  %s759, 1024, %s761, %s750, 64, 64, 4
        $region52: #{tpu_custom_call.1} parent=39 // pred_fallthru
          _
        // Predicated region
        $region53: #{tpu_custom_call.1} parent=39 // pred_check
          %p767 = pneg %p205
        $region54: #{tpu_custom_call.1} parent=39 // pred_check_branch
          %769 = sbr.rel (%p767) target = $region56
        $region55: #{tpu_custom_call.1} parent=39 // pred_region
          %p770 = scmp.lt.s32.totalorder %s51, 1
          %s771 = scalar_select %p770, %s51, 1
          %s772 = scalar_lea.vmem %s5, %s771
        $region56: #{tpu_custom_call.1} parent=39 // pred_fallthru
          _
        // Predicated region
        $region57: #{tpu_custom_call.1} parent=39 // pred_check
          %p773 = pneg %p231
        $region58: #{tpu_custom_call.1} parent=39 // pred_check_branch
          %775 = sbr.rel (%p773) target = $region60
        $region59: #{tpu_custom_call.1} parent=39 // pred_region
          %s776 = sand.u32 %s43, 1
          %s777 = scalar_lea.sflag [#allocation10], %s776
          %s778 = sand.u32 %s221, 1
          %s779 = smul.addr %s778, 64
          %s780 = scalar_lea.vmem [#allocation11], %s779
          %s782 = ssub.s32 1024, 1024
          %783 = vsyncadd %s777, %s782
          %s784 = smul.addr %s51, 16
          %s785 = smul.addr %s784, 64
          %s786 = scalar_lea.hbm %s6, %s785
          %s787 = sshll.u32 %s780, 4
          %s788 = int_to_ptr.vmem [resolvable:$true] %s787
          %793 = dma.hbm_to_vmem [thread:$0]  %s786, 1024, %s788, %s777, 64, 64, 4
        $region60: #{tpu_custom_call.1} parent=39 // pred_fallthru
          _
        // Predicated region
        $region61: #{tpu_custom_call.1} parent=39 // pred_check
          %p794 = pneg %p257
        $region62: #{tpu_custom_call.1} parent=39 // pred_check_branch
          %796 = sbr.rel (%p794) target = $region64
        $region63: #{tpu_custom_call.1} parent=39 // pred_region
          %p797 = scmp.lt.s32.totalorder %s51, 1
          %s798 = scalar_select %p797, %s51, 1
          %s799 = scalar_lea.vmem %s7, %s798
        $region64: #{tpu_custom_call.1} parent=39 // pred_fallthru
          _
        // Predicated region
        $region65: #{tpu_custom_call.1} parent=39 // pred_check
          %p800 = pneg %p283
        $region66: #{tpu_custom_call.1} parent=39 // pred_check_branch
          %802 = sbr.rel (%p800) target = $region68
        $region67: #{tpu_custom_call.1} parent=39 // pred_region
          %s803 = sand.u32 %s43, 1
          %s804 = scalar_lea.sflag [#allocation13], %s803
          %s805 = sand.u32 %s273, 1
          %s806 = smul.addr %s805, 64
          %s807 = scalar_lea.vmem [#allocation12], %s806
          %s809 = ssub.s32 1024, 1024
          %810 = vsyncadd %s804, %s809
          %s811 = smul.addr %s51, 16
          %s812 = smul.addr %s811, 64
          %s813 = scalar_lea.hbm %s8, %s812
          %s814 = sshll.u32 %s807, 4
          %s815 = int_to_ptr.vmem [resolvable:$true] %s814
          %820 = dma.hbm_to_vmem [thread:$0]  %s813, 1024, %s815, %s804, 64, 64, 4
        $region68: #{tpu_custom_call.1} parent=39 // pred_fallthru
          _
        // Predicated region
        $region69: #{tpu_custom_call.1} parent=39 // pred_check
          %p821 = pneg %p309
        $region70: #{tpu_custom_call.1} parent=39 // pred_check_branch
          %823 = sbr.rel (%p821) target = $region72
        $region71: #{tpu_custom_call.1} parent=39 // pred_region
          %p824 = scmp.lt.s32.totalorder %s51, 1
          %s825 = scalar_select %p824, %s51, 1
          %s826 = scalar_lea.vmem %s9, %s825
        $region72: #{tpu_custom_call.1} parent=39 // pred_fallthru
          _
        // Predicated region
        $region73: #{tpu_custom_call.1} parent=39 // pred_check
          %p827 = pneg %p335
        $region74: #{tpu_custom_call.1} parent=39 // pred_check_branch
          %829 = sbr.rel (%p827) target = $region76
        $region75: #{tpu_custom_call.1} parent=39 // pred_region
          %p830 = scmp.lt.s32.totalorder %s51, 1
          %s831 = scalar_select %p830, %s51, 1
          %s832 = scalar_lea.vmem %s10, %s831
        $region76: #{tpu_custom_call.1} parent=39 // pred_fallthru
          _
        // Predicated region
        $region77: #{tpu_custom_call.1} parent=39 // pred_check
          %p833 = pneg %p361
        $region78: #{tpu_custom_call.1} parent=39 // pred_check_branch
          %835 = sbr.rel (%p833) target = $region80
        $region79: #{tpu_custom_call.1} parent=39 // pred_region
          %p836 = scmp.lt.s32.totalorder %s51, 1
          %s837 = scalar_select %p836, %s51, 1
          %s838 = scalar_lea.vmem %s11, %s837
        $region80: #{tpu_custom_call.1} parent=39 // pred_fallthru
          _
        // Predicated region
        $region81: #{tpu_custom_call.1} parent=39 // pred_check
          %p839 = pneg %p387
        $region82: #{tpu_custom_call.1} parent=39 // pred_check_branch
          %841 = sbr.rel (%p839) target = $region84
        $region83: #{tpu_custom_call.1} parent=39 // pred_region
          %s842 = sand.u32 %s43, 1
          %s843 = scalar_lea.sflag [#allocation13], %s842
          %s844 = sand.u32 %s377, 1
          %s845 = smul.addr %s844, 256
          %s846 = scalar_lea.vmem [#allocation14], %s845
          %s848 = ssub.s32 4096, 4096
          %849 = vsyncadd %s843, %s848
          %s850 = smul.addr %s51, 64
          %s851 = smul.addr %s850, 64
          %s852 = scalar_lea.hbm %s12, %s851
          %s853 = sshll.u32 %s846, 4
          %s854 = int_to_ptr.vmem [resolvable:$true] %s853
          %859 = dma.hbm_to_vmem [thread:$0]  %s852, 4096, %s854, %s843, 256, 256, 16
        $region84: #{tpu_custom_call.1} parent=39 // pred_fallthru
          _
        // Predicated region
        $region85: #{tpu_custom_call.1} parent=39 // pred_check
          %p860 = pneg %p413
        $region86: #{tpu_custom_call.1} parent=39 // pred_check_branch
          %862 = sbr.rel (%p860) target = $region88
        $region87: #{tpu_custom_call.1} parent=39 // pred_region
          %p863 = scmp.lt.s32.totalorder %s51, 1
          %s864 = scalar_select %p863, %s51, 1
          %s865 = smul.addr %s864, 4
          %s866 = scalar_lea.vmem %s13, %s865
        $region88: #{tpu_custom_call.1} parent=39 // pred_fallthru
          _
        // Predicated region
        $region89: #{tpu_custom_call.1} parent=39 // pred_check
          %p867 = pneg %p439
        $region90: #{tpu_custom_call.1} parent=39 // pred_check_branch
          %869 = sbr.rel (%p867) target = $region92
        $region91: #{tpu_custom_call.1} parent=39 // pred_region
          %s870 = sand.u32 %s43, 1
          %s871 = scalar_lea.sflag [#allocation16], %s870
          %s872 = sand.u32 %s429, 1
          %s873 = smul.addr %s872, 256
          %s874 = scalar_lea.vmem [#allocation15], %s873
          %s876 = ssub.s32 4096, 4096
          %877 = vsyncadd %s871, %s876
          %s878 = smul.addr %s51, 64
          %s879 = smul.addr %s878, 64
          %s880 = scalar_lea.hbm %s14, %s879
          %s881 = sshll.u32 %s874, 4
          %s882 = int_to_ptr.vmem [resolvable:$true] %s881
          %887 = dma.hbm_to_vmem [thread:$0]  %s880, 4096, %s882, %s871, 64, 64, 4
        $region92: #{tpu_custom_call.1} parent=39 // pred_fallthru
          _
        // Predicated region
        $region93: #{tpu_custom_call.1} parent=39 // pred_check
          %p888 = pneg %p465
        $region94: #{tpu_custom_call.1} parent=39 // pred_check_branch
          %890 = sbr.rel (%p888) target = $region96
        $region95: #{tpu_custom_call.1} parent=39 // pred_region
          %p891 = scmp.lt.s32.totalorder %s51, 1
          %s892 = scalar_select %p891, %s51, 1
          %s893 = scalar_lea.vmem %s15, %s892
        $region96: #{tpu_custom_call.1} parent=39 // pred_fallthru
          _
        // Predicated region
        $region97: #{tpu_custom_call.1} parent=39 // pred_check
          %p894 = pneg %p491
        $region98: #{tpu_custom_call.1} parent=39 // pred_check_branch
          %896 = sbr.rel (%p894) target = $region100
        $region99: #{tpu_custom_call.1} parent=39 // pred_region
          %p897 = scmp.lt.s32.totalorder %s51, 1
          %s898 = scalar_select %p897, %s51, 1
          %s899 = scalar_lea.vmem %s16, %s898
        $region100: #{tpu_custom_call.1} parent=39 // pred_fallthru
          _
        // Predicated region
        $region101: #{tpu_custom_call.1} parent=39 // pred_check
          %p900 = pneg %p517
        $region102: #{tpu_custom_call.1} parent=39 // pred_check_branch
          %902 = sbr.rel (%p900) target = $region104
        $region103: #{tpu_custom_call.1} parent=39 // pred_region
          %p903 = scmp.lt.s32.totalorder %s51, 1
          %s904 = scalar_select %p903, %s51, 1
          %s905 = scalar_lea.vmem %s17, %s904
        $region104: #{tpu_custom_call.1} parent=39 // pred_fallthru
          _
      $region40: #{tpu_custom_call.1} parent=5 // pred_fallthru
        _
      %p906 = scmp.le.s32.totalorder 1, %s43
      %p907 = scmp.lt.s32.totalorder %s43, 3
      %p908 = pnand %p906, %p907
      %p909 = pneg %p908
      // Predicated region
      $region105: #{tpu_custom_call.1} parent=5 // pred_check
        _
      $region106: #{tpu_custom_call.1} parent=5 // pred_check_branch
        %911 = sbr.rel (%p908) target = $region108
      $region107: #{tpu_custom_call.1} parent=5 // pred_region
        %s912 = ssub.s32 %s43, 1
        // Predicated region
        $region109: #{tpu_custom_call.1} parent=107 // pred_check
          %p913 = pneg %p81
        $region110: #{tpu_custom_call.1} parent=107 // pred_check_branch
          %915 = sbr.rel (%p913) target = $region112
        $region111: #{tpu_custom_call.1} parent=107 // pred_region
          %916 = dma.done [#allocation4], 128
        $region112: #{tpu_custom_call.1} parent=107 // pred_fallthru
          _
        %s917 = sand.u32 %s48, 1
        %s918 = scalar_lea.sflag [#allocation7], %s917
        %s919 = sand.u32 %s120, 1
        %s920 = smul.addr %s919, 64
        %s921 = scalar_lea.vmem [#allocation6], %s920
        // Predicated region
        $region113: #{tpu_custom_call.1} parent=107 // pred_check
          %p922 = pneg %p133
        $region114: #{tpu_custom_call.1} parent=107 // pred_check_branch
          %924 = sbr.rel (%p922) target = $region116
        $region115: #{tpu_custom_call.1} parent=107 // pred_region
          %925 = dma.done %s918, 1024
        $region116: #{tpu_custom_call.1} parent=107 // pred_fallthru
          _
        %s926 = sand.u32 %s48, 1
        %s927 = scalar_lea.sflag [#allocation7], %s926
        %s928 = sand.u32 %s146, 1
        %s929 = scalar_lea.vmem [#allocation8], %s928
        // Predicated region
        $region117: #{tpu_custom_call.1} parent=107 // pred_check
          %p930 = pneg %p159
        $region118: #{tpu_custom_call.1} parent=107 // pred_check_branch
          %932 = sbr.rel (%p930) target = $region120
        $region119: #{tpu_custom_call.1} parent=107 // pred_region
          %933 = dma.done %s927, 16
        $region120: #{tpu_custom_call.1} parent=107 // pred_fallthru
          _
        %s934 = sand.u32 %s48, 1
        %s935 = scalar_lea.sflag [#allocation10], %s934
        %s936 = sand.u32 %s172, 1
        %s937 = smul.addr %s936, 64
        %s938 = scalar_lea.vmem [#allocation9], %s937
        // Predicated region
        $region121: #{tpu_custom_call.1} parent=107 // pred_check
          %p939 = pneg %p185
        $region122: #{tpu_custom_call.1} parent=107 // pred_check_branch
          %941 = sbr.rel (%p939) target = $region124
        $region123: #{tpu_custom_call.1} parent=107 // pred_region
          %942 = dma.done %s935, 1024
        $region124: #{tpu_custom_call.1} parent=107 // pred_fallthru
          _
        %s943 = sand.u32 %s48, 1
        %s944 = scalar_lea.sflag [#allocation10], %s943
        %s945 = sand.u32 %s224, 1
        %s946 = smul.addr %s945, 64
        %s947 = scalar_lea.vmem [#allocation11], %s946
        // Predicated region
        $region125: #{tpu_custom_call.1} parent=107 // pred_check
          %p948 = pneg %p237
        $region126: #{tpu_custom_call.1} parent=107 // pred_check_branch
          %950 = sbr.rel (%p948) target = $region128
        $region127: #{tpu_custom_call.1} parent=107 // pred_region
          %951 = dma.done %s944, 1024
        $region128: #{tpu_custom_call.1} parent=107 // pred_fallthru
          _
        %s952 = sand.u32 %s48, 1
        %s953 = scalar_lea.sflag [#allocation13], %s952
        %s954 = sand.u32 %s276, 1
        %s955 = smul.addr %s954, 64
        %s956 = scalar_lea.vmem [#allocation12], %s955
        // Predicated region
        $region129: #{tpu_custom_call.1} parent=107 // pred_check
          %p957 = pneg %p289
        $region130: #{tpu_custom_call.1} parent=107 // pred_check_branch
          %959 = sbr.rel (%p957) target = $region132
        $region131: #{tpu_custom_call.1} parent=107 // pred_region
          %960 = dma.done %s953, 1024
        $region132: #{tpu_custom_call.1} parent=107 // pred_fallthru
          _
        %s961 = sand.u32 %s48, 1
        %s962 = scalar_lea.sflag [#allocation13], %s961
        %s963 = sand.u32 %s380, 1
        %s964 = smul.addr %s963, 256
        %s965 = scalar_lea.vmem [#allocation14], %s964
        // Predicated region
        $region133: #{tpu_custom_call.1} parent=107 // pred_check
          %p966 = pneg %p393
        $region134: #{tpu_custom_call.1} parent=107 // pred_check_branch
          %968 = sbr.rel (%p966) target = $region136
        $region135: #{tpu_custom_call.1} parent=107 // pred_region
          %969 = dma.done %s962, 4096
        $region136: #{tpu_custom_call.1} parent=107 // pred_fallthru
          _
        %s970 = sand.u32 %s48, 1
        %s971 = scalar_lea.sflag [#allocation16], %s970
        %s972 = sand.u32 %s432, 1
        %s973 = smul.addr %s972, 256
        %s974 = scalar_lea.vmem [#allocation15], %s973
        // Predicated region
        $region137: #{tpu_custom_call.1} parent=107 // pred_check
          %p975 = pneg %p445
        $region138: #{tpu_custom_call.1} parent=107 // pred_check_branch
          %977 = sbr.rel (%p975) target = $region140
        $region139: #{tpu_custom_call.1} parent=107 // pred_region
          %978 = dma.done %s971, 4096
        $region140: #{tpu_custom_call.1} parent=107 // pred_fallthru
          _
        // Predicated region
        $region141: #{tpu_custom_call.1} parent=107 // pred_check
          %p979 = pneg %p544
        $region142: #{tpu_custom_call.1} parent=107 // pred_check_branch
          %981 = sbr.rel (%p979) target = $region144
        $region143: #{tpu_custom_call.1} parent=107 // pred_region
          %982 = dma.done [#allocation16], 4096
        $region144: #{tpu_custom_call.1} parent=107 // pred_fallthru
          _
        // Predicated region
        $region145: #{tpu_custom_call.1} parent=107 // pred_check
          %p983 = pneg %p586
        $region146: #{tpu_custom_call.1} parent=107 // pred_check_branch
          %985 = sbr.rel (%p983) target = $region148
        $region147: #{tpu_custom_call.1} parent=107 // pred_region
          %986 = dma.done [#allocation19], 4096
        $region148: #{tpu_custom_call.1} parent=107 // pred_fallthru
          _
        %p987 = pneg %p81
        %p988 = pneg %p78
        %s989 = smul.u32 2, %s52
        %p990 = scmp.lt.s32.totalorder %s989, 1
        %s991 = scalar_select %p990, %s989, 1
        %s992 = scalar_lea.vmem %s1, %s991
        %p993 = pneg %p107
        %p994 = pneg %p104
        %s995 = sand.u32 %s48, 1
        %s996 = scalar_lea.sflag [#allocation7], %s995
        %s997 = sand.u32 %s120, 1
        %s998 = smul.addr %s997, 64
        %s999 = scalar_lea.vmem [#allocation6], %s998
        %p1000 = pneg %p133
        %p1001 = pneg %p130
        %s1002 = sand.u32 %s48, 1
        %s1003 = scalar_lea.sflag [#allocation7], %s1002
        %s1004 = sand.u32 %s146, 1
        %s1005 = scalar_lea.vmem [#allocation8], %s1004
        %p1006 = pneg %p159
        %p1007 = pneg %p156
        %s1008 = sand.u32 %s48, 1
        %s1009 = scalar_lea.sflag [#allocation10], %s1008
        %s1010 = sand.u32 %s172, 1
        %s1011 = smul.addr %s1010, 64
        %s1012 = scalar_lea.vmem [#allocation9], %s1011
        %p1013 = pneg %p185
        %p1014 = pneg %p182
        %p1015 = scmp.lt.s32.totalorder %s53, 1
        %s1016 = scalar_select %p1015, %s53, 1
        %s1017 = scalar_lea.vmem %s5, %s1016
        %p1018 = pneg %p211
        %p1019 = pneg %p208
        %s1020 = sand.u32 %s48, 1
        %s1021 = scalar_lea.sflag [#allocation10], %s1020
        %s1022 = sand.u32 %s224, 1
        %s1023 = smul.addr %s1022, 64
        %s1024 = scalar_lea.vmem [#allocation11], %s1023
        %p1025 = pneg %p237
        %p1026 = pneg %p234
        %p1027 = scmp.lt.s32.totalorder %s53, 1
        %s1028 = scalar_select %p1027, %s53, 1
        %s1029 = scalar_lea.vmem %s7, %s1028
        %p1030 = pneg %p263
        %p1031 = pneg %p260
        %s1032 = sand.u32 %s48, 1
        %s1033 = scalar_lea.sflag [#allocation13], %s1032
        %s1034 = sand.u32 %s276, 1
        %s1035 = smul.addr %s1034, 64
        %s1036 = scalar_lea.vmem [#allocation12], %s1035
        %p1037 = pneg %p289
        %p1038 = pneg %p286
        %p1039 = scmp.lt.s32.totalorder %s53, 1
        %s1040 = scalar_select %p1039, %s53, 1
        %s1041 = scalar_lea.vmem %s9, %s1040
        %p1042 = pneg %p315
        %p1043 = pneg %p312
        %p1044 = scmp.lt.s32.totalorder %s53, 1
        %s1045 = scalar_select %p1044, %s53, 1
        %s1046 = scalar_lea.vmem %s10, %s1045
        %p1047 = pneg %p341
        %p1048 = pneg %p338
        %p1049 = scmp.lt.s32.totalorder %s53, 1
        %s1050 = scalar_select %p1049, %s53, 1
        %s1051 = scalar_lea.vmem %s11, %s1050
        %p1052 = pneg %p367
        %p1053 = pneg %p364
        %s1054 = sand.u32 %s48, 1
        %s1055 = scalar_lea.sflag [#allocation13], %s1054
        %s1056 = sand.u32 %s380, 1
        %s1057 = smul.addr %s1056, 256
        %s1058 = scalar_lea.vmem [#allocation14], %s1057
        %p1059 = pneg %p393
        %p1060 = pneg %p390
        %p1061 = scmp.lt.s32.totalorder %s53, 1
        %s1062 = scalar_select %p1061, %s53, 1
        %s1063 = smul.addr %s1062, 4
        %s1064 = scalar_lea.vmem %s13, %s1063
        %p1065 = pneg %p419
        %p1066 = pneg %p416
        %s1067 = sand.u32 %s48, 1
        %s1068 = scalar_lea.sflag [#allocation16], %s1067
        %s1069 = sand.u32 %s432, 1
        %s1070 = smul.addr %s1069, 256
        %s1071 = scalar_lea.vmem [#allocation15], %s1070
        %p1072 = pneg %p445
        %p1073 = pneg %p442
        %p1074 = scmp.lt.s32.totalorder %s53, 1
        %s1075 = scalar_select %p1074, %s53, 1
        %s1076 = scalar_lea.vmem %s15, %s1075
        %p1077 = pneg %p471
        %p1078 = pneg %p468
        %p1079 = scmp.lt.s32.totalorder %s53, 1
        %s1080 = scalar_select %p1079, %s53, 1
        %s1081 = scalar_lea.vmem %s16, %s1080
        %p1082 = pneg %p497
        %p1083 = pneg %p494
        %p1084 = scmp.lt.s32.totalorder %s53, 1
        %s1085 = scalar_select %p1084, %s53, 1
        %s1086 = scalar_lea.vmem %s17, %s1085
        %p1087 = pneg %p523
        %p1088 = pneg %p520
        %p1089 = pneg %p544
        %p1090 = pneg %p541
        %p1091 = pneg %p565
        %p1092 = pneg %p562
        %p1093 = pneg %p586
        %p1094 = pneg %p583
        %p1095 = pneg %p607
        %p1096 = pneg %p604
        %p1097 = pneg %p633
        %p1098 = pneg %p630
        %s1099 = smul.u32 2, %s52
        %s1100 = smul.u32 2, %s52
        %p1101 = scmp.lt.s32.totalorder %s1100, 1
        %s1102 = scalar_select %p1101, %s1100, 1
        %s1103 = scalar_lea.vmem %s1, %s1102
        %s1104 = smul.u32 2, %s52
        %p1105 = scmp.lt.s32.totalorder %s53, 1
        %s1106 = scalar_select %p1105, %s53, 1
        %s1107 = scalar_lea.vmem %s5, %s1106
        %p1108 = scmp.lt.s32.totalorder %s53, 1
        %s1109 = scalar_select %p1108, %s53, 1
        %s1110 = scalar_lea.vmem %s7, %s1109
        %p1111 = scmp.lt.s32.totalorder %s53, 1
        %s1112 = scalar_select %p1111, %s53, 1
        %s1113 = scalar_lea.vmem %s9, %s1112
        %p1114 = scmp.lt.s32.totalorder %s53, 1
        %s1115 = scalar_select %p1114, %s53, 1
        %s1116 = scalar_lea.vmem %s10, %s1115
        %p1117 = scmp.lt.s32.totalorder %s53, 1
        %s1118 = scalar_select %p1117, %s53, 1
        %s1119 = scalar_lea.vmem %s11, %s1118
        %p1120 = scmp.lt.s32.totalorder %s53, 1
        %s1121 = scalar_select %p1120, %s53, 1
        %s1122 = smul.addr %s1121, 4
        %s1123 = scalar_lea.vmem %s13, %s1122
        %p1124 = scmp.lt.s32.totalorder %s53, 1
        %s1125 = scalar_select %p1124, %s53, 1
        %s1126 = scalar_lea.vmem %s15, %s1125
        %p1127 = scmp.lt.s32.totalorder %s53, 1
        %s1128 = scalar_select %p1127, %s53, 1
        %s1129 = scalar_lea.vmem %s16, %s1128
        %p1130 = scmp.lt.s32.totalorder %s53, 1
        %s1131 = scalar_select %p1130, %s53, 1
        %s1132 = scalar_lea.vmem %s17, %s1131
        %p1134 = scmp.eq.s32.totalorder %s53, 0
        // Predicated region
        $region149: #{tpu_custom_call.1} parent=107 // pred_check
          %p1135 = pneg %p1134
        $region150: #{tpu_custom_call.1} parent=107 // pred_check_branch
          %1137 = sbr.rel (%p1135) target = $region152
        $region151: #{tpu_custom_call.1} parent=107 // pred_region
          %v1138 = vld [vmem:[#allocation3] sm:$0xf]
          %v1139 = vld [vmem:[#allocation3 + $0x4] sm:$0xf]
          %v1140 = vunpack.c.l.bf16 %v1138
          %v1141 = vunpack.c.l.bf16 %v1139
          %1142 = vst [vmem:[#allocation2] sm:$0xff] %v1140
          %1143 = vst [vmem:[#allocation2 + $0x8] sm:$0xff] %v1141
        $region152: #{tpu_custom_call.1} parent=107 // pred_fallthru
          _
        %v1144 = vld [vmem:[#allocation2] sm:$0xff]
        %v1145 = vld [vmem:[#allocation2 + $0x8] sm:$0xff]
        %v1146 = vpack.c.bf16 %v1145, %v1144
        %v1147 = vld [vmem:[%s1103] sm:$0x1]
        %v1148 = vld [vmem:[%s1103 + $0x1] sm:$0x1]
        %v1149 = vld [vmem:[%s921] sm:$0xf]
        %v1150 = vld [vmem:[%s921 + $0x4] sm:$0xf]
        %v1151 = vld [vmem:[%s921 + $0x8] sm:$0xf]
        %v1152 = vld [vmem:[%s921 + $0xc] sm:$0xf]
        %v1153 = vld [vmem:[%s921 + $0x10] sm:$0xf]
        %v1154 = vld [vmem:[%s921 + $0x14] sm:$0xf]
        %v1155 = vld [vmem:[%s921 + $0x18] sm:$0xf]
        %v1156 = vld [vmem:[%s921 + $0x1c] sm:$0xf]
        %v1157 = vld [vmem:[%s921 + $0x20] sm:$0xf]
        %v1158 = vld [vmem:[%s921 + $0x24] sm:$0xf]
        %v1159 = vld [vmem:[%s921 + $0x28] sm:$0xf]
        %v1160 = vld [vmem:[%s921 + $0x2c] sm:$0xf]
        %v1161 = vld [vmem:[%s921 + $0x30] sm:$0xf]
        %v1162 = vld [vmem:[%s921 + $0x34] sm:$0xf]
        %v1163 = vld [vmem:[%s921 + $0x38] sm:$0xf]
        %v1164 = vld [vmem:[%s921 + $0x3c] sm:$0xf]
        %v1165 = vld [vmem:[%s929] sm:$0x1]
        %v1167 = vlaneseq
        %v1168 = vshrl.u32 %v1167, 7
        %v1169 = vsub.s32 0, %v1168
        %v1170 = vrot.slane %v1165, %v1169
        %v1188 = vunpack.c.l.b16 %v1149
        %v1189 = vunpack.c.l.b16 %v1150
        %v1190 = vunpack.c.l.b16 %v1151
        %v1191 = vunpack.c.l.b16 %v1152
        %v1192 = vunpack.c.l.b16 %v1153
        %v1193 = vunpack.c.l.b16 %v1154
        %v1194 = vunpack.c.l.b16 %v1155
        %v1195 = vunpack.c.l.b16 %v1156
        %v1196 = vunpack.c.l.b16 %v1157
        %v1197 = vunpack.c.l.b16 %v1158
        %v1198 = vunpack.c.l.b16 %v1159
        %v1199 = vunpack.c.l.b16 %v1160
        %v1200 = vunpack.c.l.b16 %v1161
        %v1201 = vunpack.c.l.b16 %v1162
        %v1202 = vunpack.c.l.b16 %v1163
        %v1203 = vunpack.c.l.b16 %v1164
        %v1204 = vpack.c.b16 %v1189, %v1188
        %v1205 = vpack.c.b16 %v1191, %v1190
        %v1206 = vpack.c.b16 %v1193, %v1192
        %v1207 = vpack.c.b16 %v1195, %v1194
        %v1208 = vpack.c.b16 %v1197, %v1196
        %v1209 = vpack.c.b16 %v1199, %v1198
        %v1210 = vpack.c.b16 %v1201, %v1200
        %v1211 = vpack.c.b16 %v1203, %v1202
        %1220 = vmatprep.subr.bf16.mxu0 0
        %1221 = vmatpush1.bf16.msra.mxu0 %v1204
        %1222 = vmatprep.subr.bf16.mxu0 0
        %1223 = vmatpush1.bf16.msra.mxu0 %v1205
        %1224 = vmatprep.subr.bf16.mxu0 0
        %1225 = vmatpush1.bf16.msra.mxu0 %v1206
        %1226 = vmatprep.subr.bf16.mxu0 0
        %1227 = vmatpush1.bf16.msra.mxu0 %v1207
        %1228 = vmatprep.subr.bf16.mxu0 0
        %1229 = vmatpush1.bf16.msra.mxu0 %v1208
        %1230 = vmatprep.subr.bf16.mxu0 0
        %1231 = vmatpush1.bf16.msra.mxu0 %v1209
        %1232 = vmatprep.subr.bf16.mxu0 0
        %1233 = vmatpush1.bf16.msra.mxu0 %v1210
        %1234 = vmatprep.subr.bf16.mxu0 0
        %1235 = vmatpush1.bf16.msra.mxu0 %v1211
        %1236 = vmatprep.subr.bf16.mxu0 0
        %1237 = vmatpush1.bf16.msra.mxu0 0
        %1238 = vmatprep.subr.bf16.mxu0 0
        %1239 = vmatpush1.bf16.msra.mxu0 0
        %1240 = vmatprep.subr.bf16.mxu0 0
        %1241 = vmatpush1.bf16.msra.mxu0 0
        %1242 = vmatprep.subr.bf16.mxu0 0
        %1243 = vmatpush1.bf16.msra.mxu0 0
        %1244 = vmatprep.subr.bf16.mxu0 0
        %1245 = vmatpush1.bf16.msra.mxu0 0
        %1246 = vmatprep.subr.bf16.mxu0 0
        %1247 = vmatpush1.bf16.msra.mxu0 0
        %1248 = vmatprep.subr.bf16.mxu0 0
        %1249 = vmatpush1.bf16.msra.mxu0 0
        %1250 = vmatprep.subr.bf16.mxu0 0
        %1251 = vmatpush1.bf16.msra.mxu0 0
        %1252 = vmatprep.mubr.bf16.mxu0 0
        %1253 = vmatmul.mubr.bf16.gmra.mrb[0].mxu0 %v1146
        %v1254 = vpop.f32.mrb[0].mxu0
        %v1255 = vadd.f32 %v1170, %v1254
        %v1256 = vpop.f32.mrb[0].mxu0
        %v1257 = vpop.f32.mrb[0].mxu0
        %v1258 = vadd.f32 %v1170, %v1257
        %v1259 = vpop.f32.mrb[0].mxu0
        %1260 = vdwg.mxu0
        %v1261 = vld [vmem:[%s938] sm:$0xf]
        %v1262 = vld [vmem:[%s938 + $0x4] sm:$0xf]
        %v1263 = vld [vmem:[%s938 + $0x8] sm:$0xf]
        %v1264 = vld [vmem:[%s938 + $0xc] sm:$0xf]
        %v1265 = vld [vmem:[%s938 + $0x10] sm:$0xf]
        %v1266 = vld [vmem:[%s938 + $0x14] sm:$0xf]
        %v1267 = vld [vmem:[%s938 + $0x18] sm:$0xf]
        %v1268 = vld [vmem:[%s938 + $0x1c] sm:$0xf]
        %v1269 = vld [vmem:[%s938 + $0x20] sm:$0xf]
        %v1270 = vld [vmem:[%s938 + $0x24] sm:$0xf]
        %v1271 = vld [vmem:[%s938 + $0x28] sm:$0xf]
        %v1272 = vld [vmem:[%s938 + $0x2c] sm:$0xf]
        %v1273 = vld [vmem:[%s938 + $0x30] sm:$0xf]
        %v1274 = vld [vmem:[%s938 + $0x34] sm:$0xf]
        %v1275 = vld [vmem:[%s938 + $0x38] sm:$0xf]
        %v1276 = vld [vmem:[%s938 + $0x3c] sm:$0xf]
        %v1277 = vld [vmem:[%s1107] sm:$0x1]
        %v1279 = vlaneseq
        %v1280 = vshrl.u32 %v1279, 7
        %v1281 = vsub.s32 0, %v1280
        %v1282 = vrot.slane %v1277, %v1281
        %v1300 = vunpack.c.l.b16 %v1261
        %v1301 = vunpack.c.l.b16 %v1262
        %v1302 = vunpack.c.l.b16 %v1263
        %v1303 = vunpack.c.l.b16 %v1264
        %v1304 = vunpack.c.l.b16 %v1265
        %v1305 = vunpack.c.l.b16 %v1266
        %v1306 = vunpack.c.l.b16 %v1267
        %v1307 = vunpack.c.l.b16 %v1268
        %v1308 = vunpack.c.l.b16 %v1269
        %v1309 = vunpack.c.l.b16 %v1270
        %v1310 = vunpack.c.l.b16 %v1271
        %v1311 = vunpack.c.l.b16 %v1272
        %v1312 = vunpack.c.l.b16 %v1273
        %v1313 = vunpack.c.l.b16 %v1274
        %v1314 = vunpack.c.l.b16 %v1275
        %v1315 = vunpack.c.l.b16 %v1276
        %v1316 = vpack.c.b16 %v1301, %v1300
        %v1317 = vpack.c.b16 %v1303, %v1302
        %v1318 = vpack.c.b16 %v1305, %v1304
        %v1319 = vpack.c.b16 %v1307, %v1306
        %v1320 = vpack.c.b16 %v1309, %v1308
        %v1321 = vpack.c.b16 %v1311, %v1310
        %v1322 = vpack.c.b16 %v1313, %v1312
        %v1323 = vpack.c.b16 %v1315, %v1314
        %1332 = vmatprep.subr.bf16.mxu0 0
        %1333 = vmatpush1.bf16.msra.mxu0 %v1316
        %1334 = vmatprep.subr.bf16.mxu0 0
        %1335 = vmatpush1.bf16.msra.mxu0 %v1317
        %1336 = vmatprep.subr.bf16.mxu0 0
        %1337 = vmatpush1.bf16.msra.mxu0 %v1318
        %1338 = vmatprep.subr.bf16.mxu0 0
        %1339 = vmatpush1.bf16.msra.mxu0 %v1319
        %1340 = vmatprep.subr.bf16.mxu0 0
        %1341 = vmatpush1.bf16.msra.mxu0 %v1320
        %1342 = vmatprep.subr.bf16.mxu0 0
        %1343 = vmatpush1.bf16.msra.mxu0 %v1321
        %1344 = vmatprep.subr.bf16.mxu0 0
        %1345 = vmatpush1.bf16.msra.mxu0 %v1322
        %1346 = vmatprep.subr.bf16.mxu0 0
        %1347 = vmatpush1.bf16.msra.mxu0 %v1323
        %1348 = vmatprep.subr.bf16.mxu0 0
        %1349 = vmatpush1.bf16.msra.mxu0 0
        %1350 = vmatprep.subr.bf16.mxu0 0
        %1351 = vmatpush1.bf16.msra.mxu0 0
        %1352 = vmatprep.subr.bf16.mxu0 0
        %1353 = vmatpush1.bf16.msra.mxu0 0
        %1354 = vmatprep.subr.bf16.mxu0 0
        %1355 = vmatpush1.bf16.msra.mxu0 0
        %1356 = vmatprep.subr.bf16.mxu0 0
        %1357 = vmatpush1.bf16.msra.mxu0 0
        %1358 = vmatprep.subr.bf16.mxu0 0
        %1359 = vmatpush1.bf16.msra.mxu0 0
        %1360 = vmatprep.subr.bf16.mxu0 0
        %1361 = vmatpush1.bf16.msra.mxu0 0
        %1362 = vmatprep.subr.bf16.mxu0 0
        %1363 = vmatpush1.bf16.msra.mxu0 0
        %1364 = vmatprep.mubr.bf16.mxu0 0
        %1365 = vmatmul.mubr.bf16.gmra.mrb[0].mxu0 %v1146
        %v1366 = vpop.f32.mrb[0].mxu0
        %v1367 = vadd.f32 %v1282, %v1366
        %v1368 = vpop.f32.mrb[0].mxu0
        %v1369 = vpop.f32.mrb[0].mxu0
        %v1370 = vadd.f32 %v1282, %v1369
        %v1371 = vpop.f32.mrb[0].mxu0
        %1372 = vdwg.mxu0
        %v1373 = vld [vmem:[%s947] sm:$0xf]
        %v1374 = vld [vmem:[%s947 + $0x4] sm:$0xf]
        %v1375 = vld [vmem:[%s947 + $0x8] sm:$0xf]
        %v1376 = vld [vmem:[%s947 + $0xc] sm:$0xf]
        %v1377 = vld [vmem:[%s947 + $0x10] sm:$0xf]
        %v1378 = vld [vmem:[%s947 + $0x14] sm:$0xf]
        %v1379 = vld [vmem:[%s947 + $0x18] sm:$0xf]
        %v1380 = vld [vmem:[%s947 + $0x1c] sm:$0xf]
        %v1381 = vld [vmem:[%s947 + $0x20] sm:$0xf]
        %v1382 = vld [vmem:[%s947 + $0x24] sm:$0xf]
        %v1383 = vld [vmem:[%s947 + $0x28] sm:$0xf]
        %v1384 = vld [vmem:[%s947 + $0x2c] sm:$0xf]
        %v1385 = vld [vmem:[%s947 + $0x30] sm:$0xf]
        %v1386 = vld [vmem:[%s947 + $0x34] sm:$0xf]
        %v1387 = vld [vmem:[%s947 + $0x38] sm:$0xf]
        %v1388 = vld [vmem:[%s947 + $0x3c] sm:$0xf]
        %v1389 = vld [vmem:[%s1110] sm:$0x1]
        %v1391 = vlaneseq
        %v1392 = vshrl.u32 %v1391, 7
        %v1393 = vsub.s32 0, %v1392
        %v1394 = vrot.slane %v1389, %v1393
        %v1412 = vunpack.c.l.b16 %v1373
        %v1413 = vunpack.c.l.b16 %v1374
        %v1414 = vunpack.c.l.b16 %v1375
        %v1415 = vunpack.c.l.b16 %v1376
        %v1416 = vunpack.c.l.b16 %v1377
        %v1417 = vunpack.c.l.b16 %v1378
        %v1418 = vunpack.c.l.b16 %v1379
        %v1419 = vunpack.c.l.b16 %v1380
        %v1420 = vunpack.c.l.b16 %v1381
        %v1421 = vunpack.c.l.b16 %v1382
        %v1422 = vunpack.c.l.b16 %v1383
        %v1423 = vunpack.c.l.b16 %v1384
        %v1424 = vunpack.c.l.b16 %v1385
        %v1425 = vunpack.c.l.b16 %v1386
        %v1426 = vunpack.c.l.b16 %v1387
        %v1427 = vunpack.c.l.b16 %v1388
        %v1428 = vpack.c.b16 %v1413, %v1412
        %v1429 = vpack.c.b16 %v1415, %v1414
        %v1430 = vpack.c.b16 %v1417, %v1416
        %v1431 = vpack.c.b16 %v1419, %v1418
        %v1432 = vpack.c.b16 %v1421, %v1420
        %v1433 = vpack.c.b16 %v1423, %v1422
        %v1434 = vpack.c.b16 %v1425, %v1424
        %v1435 = vpack.c.b16 %v1427, %v1426
        %1444 = vmatprep.subr.bf16.mxu0 0
        %1445 = vmatpush1.bf16.msra.mxu0 %v1428
        %1446 = vmatprep.subr.bf16.mxu0 0
        %1447 = vmatpush1.bf16.msra.mxu0 %v1429
        %1448 = vmatprep.subr.bf16.mxu0 0
        %1449 = vmatpush1.bf16.msra.mxu0 %v1430
        %1450 = vmatprep.subr.bf16.mxu0 0
        %1451 = vmatpush1.bf16.msra.mxu0 %v1431
        %1452 = vmatprep.subr.bf16.mxu0 0
        %1453 = vmatpush1.bf16.msra.mxu0 %v1432
        %1454 = vmatprep.subr.bf16.mxu0 0
        %1455 = vmatpush1.bf16.msra.mxu0 %v1433
        %1456 = vmatprep.subr.bf16.mxu0 0
        %1457 = vmatpush1.bf16.msra.mxu0 %v1434
        %1458 = vmatprep.subr.bf16.mxu0 0
        %1459 = vmatpush1.bf16.msra.mxu0 %v1435
        %1460 = vmatprep.subr.bf16.mxu0 0
        %1461 = vmatpush1.bf16.msra.mxu0 0
        %1462 = vmatprep.subr.bf16.mxu0 0
        %1463 = vmatpush1.bf16.msra.mxu0 0
        %1464 = vmatprep.subr.bf16.mxu0 0
        %1465 = vmatpush1.bf16.msra.mxu0 0
        %1466 = vmatprep.subr.bf16.mxu0 0
        %1467 = vmatpush1.bf16.msra.mxu0 0
        %1468 = vmatprep.subr.bf16.mxu0 0
        %1469 = vmatpush1.bf16.msra.mxu0 0
        %1470 = vmatprep.subr.bf16.mxu0 0
        %1471 = vmatpush1.bf16.msra.mxu0 0
        %1472 = vmatprep.subr.bf16.mxu0 0
        %1473 = vmatpush1.bf16.msra.mxu0 0
        %1474 = vmatprep.subr.bf16.mxu0 0
        %1475 = vmatpush1.bf16.msra.mxu0 0
        %1476 = vmatprep.mubr.bf16.mxu0 0
        %1477 = vmatmul.mubr.bf16.gmra.mrb[0].mxu0 %v1146
        %v1478 = vpop.f32.mrb[0].mxu0
        %v1479 = vadd.f32 %v1394, %v1478
        %v1480 = vpop.f32.mrb[0].mxu0
        %v1481 = vpop.f32.mrb[0].mxu0
        %v1482 = vadd.f32 %v1394, %v1481
        %v1483 = vpop.f32.mrb[0].mxu0
        %1484 = vdwg.mxu0
        %v1485 = vpack.c.bf16 %v1258, %v1255
        %v1486 = vpack.c.bf16 %v1370, %v1367
        %v1487 = vpack.c.bf16 %v1482, %v1479
        %v1489 = vunpack.c.l.b16 %v1485
        %v1490 = vunpack.c.h.b16 %v1485
        %v1491 = vpack.c.b16 %v1489, %v1489
        %v1492 = vpack.c.b16 %v1490, %v1490
        %v1494 = vunpack.c.l.b16 %v1486
        %v1495 = vunpack.c.h.b16 %v1486
        %v1496 = vpack.c.b16 %v1494, %v1494
        %v1497 = vpack.c.b16 %v1495, %v1495
        %v1499 = vunpack.c.l.b16 %v1487
        %v1500 = vunpack.c.h.b16 %v1487
        %v1501 = vpack.c.b16 %v1499, %v1499
        %v1502 = vpack.c.b16 %v1500, %v1500
        %v1505 = vlaneseq
        %v1506 = vshrl.u32 %v1505, 7
        %v1507 = vsub.s32 0, %v1506
        %v1508 = vrot.slane %v1147, %v1507
        %v1509 = vlaneseq
        %v1510 = vshrl.u32 %v1509, 7
        %v1511 = vsub.s32 0, %v1510
        %v1512 = vrot.slane %v1148, %v1511
        %vm1515 = vcmask 523264
        %v1517 = vsel %vm1515, %v1491, 0
        %v1520 = vsel %vm1515, %v1496, 0
        %1522 = vmatprep.subr.bf16.mxu0 0
        %1523 = vmatpush1.bf16.xpose.msra.mxu0 %v1520
        %1524 = vmatprep.subr.bf16.mxu0 0
        %1525 = vmatpush1.bf16.xpose.msra.mxu0 0
        %1526 = vmatprep.subr.bf16.mxu0 0
        %1527 = vmatpush1.bf16.xpose.msra.mxu0 0
        %1528 = vmatprep.subr.bf16.mxu0 0
        %1529 = vmatpush1.bf16.xpose.msra.mxu0 0
        %1530 = vmatprep.subr.bf16.mxu0 0
        %1531 = vmatpush1.bf16.xpose.msra.mxu0 0
        %1532 = vmatprep.subr.bf16.mxu0 0
        %1533 = vmatpush1.bf16.xpose.msra.mxu0 0
        %1534 = vmatprep.subr.bf16.mxu0 0
        %1535 = vmatpush1.bf16.xpose.msra.mxu0 0
        %1536 = vmatprep.subr.bf16.mxu0 0
        %1537 = vmatpush1.bf16.xpose.msra.mxu0 0
        %1538 = vmatprep.subr.bf16.mxu0 0
        %1539 = vmatpush1.bf16.xpose.msra.mxu0 0
        %1540 = vmatprep.subr.bf16.mxu0 0
        %1541 = vmatpush1.bf16.xpose.msra.mxu0 0
        %1542 = vmatprep.subr.bf16.mxu0 0
        %1543 = vmatpush1.bf16.xpose.msra.mxu0 0
        %1544 = vmatprep.subr.bf16.mxu0 0
        %1545 = vmatpush1.bf16.xpose.msra.mxu0 0
        %1546 = vmatprep.subr.bf16.mxu0 0
        %1547 = vmatpush1.bf16.xpose.msra.mxu0 0
        %1548 = vmatprep.subr.bf16.mxu0 0
        %1549 = vmatpush1.bf16.xpose.msra.mxu0 0
        %1550 = vmatprep.subr.bf16.mxu0 0
        %1551 = vmatpush1.bf16.xpose.msra.mxu0 0
        %1552 = vmatprep.subr.bf16.mxu0 0
        %1553 = vmatpush1.bf16.xpose.msra.mxu0 0
        %1554 = vmatprep.mubr.bf16.mxu0 0
        %1555 = vmatmul.mubr.bf16.gmra.mrb[0].mxu0 %v1517
        %v1556 = vpop.f32.mrb[0].mxu0
        %v1557 = vadd.f32 %v1508, %v1556
        %v1558 = vpop.f32.mrb[0].mxu0
        %v1559 = vpop.f32.mrb[0].mxu0
        %v1560 = vpop.f32.mrb[0].mxu0
        %1561 = vdwg.mxu0
        %v1563 = vsel %vm1515, %v1492, 0
        %v1566 = vsel %vm1515, %v1497, 0
        %1568 = vmatprep.subr.bf16.mxu0 0
        %1569 = vmatpush1.bf16.xpose.msra.mxu0 %v1566
        %1570 = vmatprep.subr.bf16.mxu0 0
        %1571 = vmatpush1.bf16.xpose.msra.mxu0 0
        %1572 = vmatprep.subr.bf16.mxu0 0
        %1573 = vmatpush1.bf16.xpose.msra.mxu0 0
        %1574 = vmatprep.subr.bf16.mxu0 0
        %1575 = vmatpush1.bf16.xpose.msra.mxu0 0
        %1576 = vmatprep.subr.bf16.mxu0 0
        %1577 = vmatpush1.bf16.xpose.msra.mxu0 0
        %1578 = vmatprep.subr.bf16.mxu0 0
        %1579 = vmatpush1.bf16.xpose.msra.mxu0 0
        %1580 = vmatprep.subr.bf16.mxu0 0
        %1581 = vmatpush1.bf16.xpose.msra.mxu0 0
        %1582 = vmatprep.subr.bf16.mxu0 0
        %1583 = vmatpush1.bf16.xpose.msra.mxu0 0
        %1584 = vmatprep.subr.bf16.mxu0 0
        %1585 = vmatpush1.bf16.xpose.msra.mxu0 0
        %1586 = vmatprep.subr.bf16.mxu0 0
        %1587 = vmatpush1.bf16.xpose.msra.mxu0 0
        %1588 = vmatprep.subr.bf16.mxu0 0
        %1589 = vmatpush1.bf16.xpose.msra.mxu0 0
        %1590 = vmatprep.subr.bf16.mxu0 0
        %1591 = vmatpush1.bf16.xpose.msra.mxu0 0
        %1592 = vmatprep.subr.bf16.mxu0 0
        %1593 = vmatpush1.bf16.xpose.msra.mxu0 0
        %1594 = vmatprep.subr.bf16.mxu0 0
        %1595 = vmatpush1.bf16.xpose.msra.mxu0 0
        %1596 = vmatprep.subr.bf16.mxu0 0
        %1597 = vmatpush1.bf16.xpose.msra.mxu0 0
        %1598 = vmatprep.subr.bf16.mxu0 0
        %1599 = vmatpush1.bf16.xpose.msra.mxu0 0
        %1600 = vmatprep.mubr.bf16.mxu0 0
        %1601 = vmatmul.mubr.bf16.gmra.mrb[0].mxu0 %v1563
        %v1602 = vpop.f32.mrb[0].mxu0
        %v1603 = vadd.f32 %v1512, %v1602
        %v1604 = vpop.f32.mrb[0].mxu0
        %v1605 = vpop.f32.mrb[0].mxu0
        %v1606 = vpop.f32.mrb[0].mxu0
        %1607 = vdwg.mxu0
        %vm1608 = vcmask 64512
        %v1609 = vsel %vm1608, %v1557, -inf
        %1610 = vmax.xlane.f32.xlu0 %v1609
        %v1611 = vpop.xlane.xlu0 %1610
        %v1612 = vsel %vm1608, %v1603, -inf
        %1613 = vmax.xlane.f32.xlu0 %v1612
        %v1614 = vpop.xlane.xlu0 %1613
        %v1615 = vsub.f32 %v1557, %v1611
        %v1616 = vsub.f32 %v1603, %v1614
        %v1617 = vmul.f32 %v1615, 1.442695
        %v1618 = vpow.pop %v1617
        %v1619 = vmul.f32 %v1616, 1.442695
        %v1620 = vpow.pop %v1619
        %v1621 = vsel %vm1608, %v1618, 0.0
        %1622 = vadd.xlane.f32.xlu0 %v1621
        %v1623 = vpop.xlane.xlu0 %1622
        %v1624 = vsel %vm1608, %v1620, 0.0
        %1625 = vadd.xlane.f32.xlu0 %v1624
        %v1626 = vpop.xlane.xlu0 %1625
        %v1627 = vrcp.pop %v1623
        %v1628 = vrcp.pop %v1626
        %v1629 = vmul.f32 %v1618, %v1627
        %v1630 = vmul.f32 %v1620, %v1628
        %v1631 = vpack.c.bf16 %v1629, %v1629
        %v1632 = vpack.c.bf16 %v1630, %v1630
        %v1634 = vsel %vm1608, %v1631, 0
        %vm1636 = vcmask 1043456
        %v1638 = vsel %vm1636, %v1501, 0
        %1640 = vmatprep.subr.bf16.mxu0 0
        %1641 = vmatpush1.bf16.msra.mxu0 %v1638
        %1642 = vmatprep.subr.bf16.mxu0 0
        %1643 = vmatpush1.bf16.msra.mxu0 0
        %1644 = vmatprep.subr.bf16.mxu0 0
        %1645 = vmatpush1.bf16.msra.mxu0 0
        %1646 = vmatprep.subr.bf16.mxu0 0
        %1647 = vmatpush1.bf16.msra.mxu0 0
        %1648 = vmatprep.subr.bf16.mxu0 0
        %1649 = vmatpush1.bf16.msra.mxu0 0
        %1650 = vmatprep.subr.bf16.mxu0 0
        %1651 = vmatpush1.bf16.msra.mxu0 0
        %1652 = vmatprep.subr.bf16.mxu0 0
        %1653 = vmatpush1.bf16.msra.mxu0 0
        %1654 = vmatprep.subr.bf16.mxu0 0
        %1655 = vmatpush1.bf16.msra.mxu0 0
        %1656 = vmatprep.subr.bf16.mxu0 0
        %1657 = vmatpush1.bf16.msra.mxu0 0
        %1658 = vmatprep.subr.bf16.mxu0 0
        %1659 = vmatpush1.bf16.msra.mxu0 0
        %1660 = vmatprep.subr.bf16.mxu0 0
        %1661 = vmatpush1.bf16.msra.mxu0 0
        %1662 = vmatprep.subr.bf16.mxu0 0
        %1663 = vmatpush1.bf16.msra.mxu0 0
        %1664 = vmatprep.subr.bf16.mxu0 0
        %1665 = vmatpush1.bf16.msra.mxu0 0
        %1666 = vmatprep.subr.bf16.mxu0 0
        %1667 = vmatpush1.bf16.msra.mxu0 0
        %1668 = vmatprep.subr.bf16.mxu0 0
        %1669 = vmatpush1.bf16.msra.mxu0 0
        %1670 = vmatprep.subr.bf16.mxu0 0
        %1671 = vmatpush1.bf16.msra.mxu0 0
        %1672 = vmatprep.mubr.bf16.mxu0 0
        %1673 = vmatmul.mubr.bf16.gmra.mrb[0].mxu0 %v1634
        %v1674 = vpop.f32.mrb[0].mxu0
        %v1675 = vadd.f32 0.0, %v1674
        %v1676 = vpop.f32.mrb[0].mxu0
        %v1677 = vpop.f32.mrb[0].mxu0
        %v1678 = vpop.f32.mrb[0].mxu0
        %1679 = vdwg.mxu0
        %v1681 = vsel %vm1608, %v1632, 0
        %v1684 = vsel %vm1636, %v1502, 0
        %1686 = vmatprep.subr.bf16.mxu0 0
        %1687 = vmatpush1.bf16.msra.mxu0 %v1684
        %1688 = vmatprep.subr.bf16.mxu0 0
        %1689 = vmatpush1.bf16.msra.mxu0 0
        %1690 = vmatprep.subr.bf16.mxu0 0
        %1691 = vmatpush1.bf16.msra.mxu0 0
        %1692 = vmatprep.subr.bf16.mxu0 0
        %1693 = vmatpush1.bf16.msra.mxu0 0
        %1694 = vmatprep.subr.bf16.mxu0 0
        %1695 = vmatpush1.bf16.msra.mxu0 0
        %1696 = vmatprep.subr.bf16.mxu0 0
        %1697 = vmatpush1.bf16.msra.mxu0 0
        %1698 = vmatprep.subr.bf16.mxu0 0
        %1699 = vmatpush1.bf16.msra.mxu0 0
        %1700 = vmatprep.subr.bf16.mxu0 0
        %1701 = vmatpush1.bf16.msra.mxu0 0
        %1702 = vmatprep.subr.bf16.mxu0 0
        %1703 = vmatpush1.bf16.msra.mxu0 0
        %1704 = vmatprep.subr.bf16.mxu0 0
        %1705 = vmatpush1.bf16.msra.mxu0 0
        %1706 = vmatprep.subr.bf16.mxu0 0
        %1707 = vmatpush1.bf16.msra.mxu0 0
        %1708 = vmatprep.subr.bf16.mxu0 0
        %1709 = vmatpush1.bf16.msra.mxu0 0
        %1710 = vmatprep.subr.bf16.mxu0 0
        %1711 = vmatpush1.bf16.msra.mxu0 0
        %1712 = vmatprep.subr.bf16.mxu0 0
        %1713 = vmatpush1.bf16.msra.mxu0 0
        %1714 = vmatprep.subr.bf16.mxu0 0
        %1715 = vmatpush1.bf16.msra.mxu0 0
        %1716 = vmatprep.subr.bf16.mxu0 0
        %1717 = vmatpush1.bf16.msra.mxu0 0
        %1718 = vmatprep.mubr.bf16.mxu0 0
        %1719 = vmatmul.mubr.bf16.gmra.mrb[0].mxu0 %v1681
        %v1720 = vpop.f32.mrb[0].mxu0
        %v1721 = vadd.f32 0.0, %v1720
        %v1722 = vpop.f32.mrb[0].mxu0
        %v1723 = vpop.f32.mrb[0].mxu0
        %v1724 = vpop.f32.mrb[0].mxu0
        %1725 = vdwg.mxu0
        %1726 = vrot.lane.b32.xlu0 %v1491, 64
        %v1727 = vpop.permute.xlu0 %1726
        %1728 = vrot.lane.b32.xlu0 %v1496, 64
        %v1729 = vpop.permute.xlu0 %1728
        %v1731 = vsel %vm1515, %v1727, 0
        %v1734 = vsel %vm1515, %v1729, 0
        %1736 = vmatprep.subr.bf16.mxu0 0
        %1737 = vmatpush1.bf16.xpose.msra.mxu0 %v1734
        %1738 = vmatprep.subr.bf16.mxu0 0
        %1739 = vmatpush1.bf16.xpose.msra.mxu0 0
        %1740 = vmatprep.subr.bf16.mxu0 0
        %1741 = vmatpush1.bf16.xpose.msra.mxu0 0
        %1742 = vmatprep.subr.bf16.mxu0 0
        %1743 = vmatpush1.bf16.xpose.msra.mxu0 0
        %1744 = vmatprep.subr.bf16.mxu0 0
        %1745 = vmatpush1.bf16.xpose.msra.mxu0 0
        %1746 = vmatprep.subr.bf16.mxu0 0
        %1747 = vmatpush1.bf16.xpose.msra.mxu0 0
        %1748 = vmatprep.subr.bf16.mxu0 0
        %1749 = vmatpush1.bf16.xpose.msra.mxu0 0
        %1750 = vmatprep.subr.bf16.mxu0 0
        %1751 = vmatpush1.bf16.xpose.msra.mxu0 0
        %1752 = vmatprep.subr.bf16.mxu0 0
        %1753 = vmatpush1.bf16.xpose.msra.mxu0 0
        %1754 = vmatprep.subr.bf16.mxu0 0
        %1755 = vmatpush1.bf16.xpose.msra.mxu0 0
        %1756 = vmatprep.subr.bf16.mxu0 0
        %1757 = vmatpush1.bf16.xpose.msra.mxu0 0
        %1758 = vmatprep.subr.bf16.mxu0 0
        %1759 = vmatpush1.bf16.xpose.msra.mxu0 0
        %1760 = vmatprep.subr.bf16.mxu0 0
        %1761 = vmatpush1.bf16.xpose.msra.mxu0 0
        %1762 = vmatprep.subr.bf16.mxu0 0
        %1763 = vmatpush1.bf16.xpose.msra.mxu0 0
        %1764 = vmatprep.subr.bf16.mxu0 0
        %1765 = vmatpush1.bf16.xpose.msra.mxu0 0
        %1766 = vmatprep.subr.bf16.mxu0 0
        %1767 = vmatpush1.bf16.xpose.msra.mxu0 0
        %1768 = vmatprep.mubr.bf16.mxu0 0
        %1769 = vmatmul.mubr.bf16.gmra.mrb[0].mxu0 %v1731
        %v1770 = vpop.f32.mrb[0].mxu0
        %v1771 = vadd.f32 %v1508, %v1770
        %v1772 = vpop.f32.mrb[0].mxu0
        %v1773 = vpop.f32.mrb[0].mxu0
        %v1774 = vpop.f32.mrb[0].mxu0
        %1775 = vdwg.mxu0
        %1776 = vrot.lane.b32.xlu0 %v1492, 64
        %v1777 = vpop.permute.xlu0 %1776
        %1778 = vrot.lane.b32.xlu0 %v1497, 64
        %v1779 = vpop.permute.xlu0 %1778
        %v1781 = vsel %vm1515, %v1777, 0
        %v1784 = vsel %vm1515, %v1779, 0
        %1786 = vmatprep.subr.bf16.mxu0 0
        %1787 = vmatpush1.bf16.xpose.msra.mxu0 %v1784
        %1788 = vmatprep.subr.bf16.mxu0 0
        %1789 = vmatpush1.bf16.xpose.msra.mxu0 0
        %1790 = vmatprep.subr.bf16.mxu0 0
        %1791 = vmatpush1.bf16.xpose.msra.mxu0 0
        %1792 = vmatprep.subr.bf16.mxu0 0
        %1793 = vmatpush1.bf16.xpose.msra.mxu0 0
        %1794 = vmatprep.subr.bf16.mxu0 0
        %1795 = vmatpush1.bf16.xpose.msra.mxu0 0
        %1796 = vmatprep.subr.bf16.mxu0 0
        %1797 = vmatpush1.bf16.xpose.msra.mxu0 0
        %1798 = vmatprep.subr.bf16.mxu0 0
        %1799 = vmatpush1.bf16.xpose.msra.mxu0 0
        %1800 = vmatprep.subr.bf16.mxu0 0
        %1801 = vmatpush1.bf16.xpose.msra.mxu0 0
        %1802 = vmatprep.subr.bf16.mxu0 0
        %1803 = vmatpush1.bf16.xpose.msra.mxu0 0
        %1804 = vmatprep.subr.bf16.mxu0 0
        %1805 = vmatpush1.bf16.xpose.msra.mxu0 0
        %1806 = vmatprep.subr.bf16.mxu0 0
        %1807 = vmatpush1.bf16.xpose.msra.mxu0 0
        %1808 = vmatprep.subr.bf16.mxu0 0
        %1809 = vmatpush1.bf16.xpose.msra.mxu0 0
        %1810 = vmatprep.subr.bf16.mxu0 0
        %1811 = vmatpush1.bf16.xpose.msra.mxu0 0
        %1812 = vmatprep.subr.bf16.mxu0 0
        %1813 = vmatpush1.bf16.xpose.msra.mxu0 0
        %1814 = vmatprep.subr.bf16.mxu0 0
        %1815 = vmatpush1.bf16.xpose.msra.mxu0 0
        %1816 = vmatprep.subr.bf16.mxu0 0
        %1817 = vmatpush1.bf16.xpose.msra.mxu0 0
        %1818 = vmatprep.mubr.bf16.mxu0 0
        %1819 = vmatmul.mubr.bf16.gmra.mrb[0].mxu0 %v1781
        %v1820 = vpop.f32.mrb[0].mxu0
        %v1821 = vadd.f32 %v1512, %v1820
        %v1822 = vpop.f32.mrb[0].mxu0
        %v1823 = vpop.f32.mrb[0].mxu0
        %v1824 = vpop.f32.mrb[0].mxu0
        %1825 = vdwg.mxu0
        %v1826 = vsel %vm1608, %v1771, -inf
        %1827 = vmax.xlane.f32.xlu0 %v1826
        %v1828 = vpop.xlane.xlu0 %1827
        %v1829 = vsel %vm1608, %v1821, -inf
        %1830 = vmax.xlane.f32.xlu0 %v1829
        %v1831 = vpop.xlane.xlu0 %1830
        %v1832 = vsub.f32 %v1771, %v1828
        %v1833 = vsub.f32 %v1821, %v1831
        %v1834 = vmul.f32 %v1832, 1.442695
        %v1835 = vpow.pop %v1834
        %v1836 = vmul.f32 %v1833, 1.442695
        %v1837 = vpow.pop %v1836
        %v1838 = vsel %vm1608, %v1835, 0.0
        %1839 = vadd.xlane.f32.xlu0 %v1838
        %v1840 = vpop.xlane.xlu0 %1839
        %v1841 = vsel %vm1608, %v1837, 0.0
        %1842 = vadd.xlane.f32.xlu0 %v1841
        %v1843 = vpop.xlane.xlu0 %1842
        %v1844 = vrcp.pop %v1840
        %v1845 = vrcp.pop %v1843
        %v1846 = vmul.f32 %v1835, %v1844
        %v1847 = vmul.f32 %v1837, %v1845
        %v1848 = vpack.c.bf16 %v1846, %v1846
        %v1849 = vpack.c.bf16 %v1847, %v1847
        %1850 = vrot.lane.b32.xlu0 %v1501, 64
        %v1851 = vpop.permute.xlu0 %1850
        %v1853 = vsel %vm1608, %v1848, 0
        %v1856 = vsel %vm1636, %v1851, 0
        %1858 = vmatprep.subr.bf16.mxu0 0
        %1859 = vmatpush1.bf16.msra.mxu0 %v1856
        %1860 = vmatprep.subr.bf16.mxu0 0
        %1861 = vmatpush1.bf16.msra.mxu0 0
        %1862 = vmatprep.subr.bf16.mxu0 0
        %1863 = vmatpush1.bf16.msra.mxu0 0
        %1864 = vmatprep.subr.bf16.mxu0 0
        %1865 = vmatpush1.bf16.msra.mxu0 0
        %1866 = vmatprep.subr.bf16.mxu0 0
        %1867 = vmatpush1.bf16.msra.mxu0 0
        %1868 = vmatprep.subr.bf16.mxu0 0
        %1869 = vmatpush1.bf16.msra.mxu0 0
        %1870 = vmatprep.subr.bf16.mxu0 0
        %1871 = vmatpush1.bf16.msra.mxu0 0
        %1872 = vmatprep.subr.bf16.mxu0 0
        %1873 = vmatpush1.bf16.msra.mxu0 0
        %1874 = vmatprep.subr.bf16.mxu0 0
        %1875 = vmatpush1.bf16.msra.mxu0 0
        %1876 = vmatprep.subr.bf16.mxu0 0
        %1877 = vmatpush1.bf16.msra.mxu0 0
        %1878 = vmatprep.subr.bf16.mxu0 0
        %1879 = vmatpush1.bf16.msra.mxu0 0
        %1880 = vmatprep.subr.bf16.mxu0 0
        %1881 = vmatpush1.bf16.msra.mxu0 0
        %1882 = vmatprep.subr.bf16.mxu0 0
        %1883 = vmatpush1.bf16.msra.mxu0 0
        %1884 = vmatprep.subr.bf16.mxu0 0
        %1885 = vmatpush1.bf16.msra.mxu0 0
        %1886 = vmatprep.subr.bf16.mxu0 0
        %1887 = vmatpush1.bf16.msra.mxu0 0
        %1888 = vmatprep.subr.bf16.mxu0 0
        %1889 = vmatpush1.bf16.msra.mxu0 0
        %1890 = vmatprep.mubr.bf16.mxu0 0
        %1891 = vmatmul.mubr.bf16.gmra.mrb[0].mxu0 %v1853
        %v1892 = vpop.f32.mrb[0].mxu0
        %v1893 = vadd.f32 0.0, %v1892
        %v1894 = vpop.f32.mrb[0].mxu0
        %v1895 = vpop.f32.mrb[0].mxu0
        %v1896 = vpop.f32.mrb[0].mxu0
        %1897 = vdwg.mxu0
        %1898 = vrot.lane.b32.xlu0 %v1502, 64
        %v1899 = vpop.permute.xlu0 %1898
        %v1901 = vsel %vm1608, %v1849, 0
        %v1904 = vsel %vm1636, %v1899, 0
        %1906 = vmatprep.subr.bf16.mxu0 0
        %1907 = vmatpush1.bf16.msra.mxu0 %v1904
        %1908 = vmatprep.subr.bf16.mxu0 0
        %1909 = vmatpush1.bf16.msra.mxu0 0
        %1910 = vmatprep.subr.bf16.mxu0 0
        %1911 = vmatpush1.bf16.msra.mxu0 0
        %1912 = vmatprep.subr.bf16.mxu0 0
        %1913 = vmatpush1.bf16.msra.mxu0 0
        %1914 = vmatprep.subr.bf16.mxu0 0
        %1915 = vmatpush1.bf16.msra.mxu0 0
        %1916 = vmatprep.subr.bf16.mxu0 0
        %1917 = vmatpush1.bf16.msra.mxu0 0
        %1918 = vmatprep.subr.bf16.mxu0 0
        %1919 = vmatpush1.bf16.msra.mxu0 0
        %1920 = vmatprep.subr.bf16.mxu0 0
        %1921 = vmatpush1.bf16.msra.mxu0 0
        %1922 = vmatprep.subr.bf16.mxu0 0
        %1923 = vmatpush1.bf16.msra.mxu0 0
        %1924 = vmatprep.subr.bf16.mxu0 0
        %1925 = vmatpush1.bf16.msra.mxu0 0
        %1926 = vmatprep.subr.bf16.mxu0 0
        %1927 = vmatpush1.bf16.msra.mxu0 0
        %1928 = vmatprep.subr.bf16.mxu0 0
        %1929 = vmatpush1.bf16.msra.mxu0 0
        %1930 = vmatprep.subr.bf16.mxu0 0
        %1931 = vmatpush1.bf16.msra.mxu0 0
        %1932 = vmatprep.subr.bf16.mxu0 0
        %1933 = vmatpush1.bf16.msra.mxu0 0
        %1934 = vmatprep.subr.bf16.mxu0 0
        %1935 = vmatpush1.bf16.msra.mxu0 0
        %1936 = vmatprep.subr.bf16.mxu0 0
        %1937 = vmatpush1.bf16.msra.mxu0 0
        %1938 = vmatprep.mubr.bf16.mxu0 0
        %1939 = vmatmul.mubr.bf16.gmra.mrb[0].mxu0 %v1901
        %v1940 = vpop.f32.mrb[0].mxu0
        %v1941 = vadd.f32 0.0, %v1940
        %v1942 = vpop.f32.mrb[0].mxu0
        %v1943 = vpop.f32.mrb[0].mxu0
        %v1944 = vpop.f32.mrb[0].mxu0
        %1945 = vdwg.mxu0
        %1948 = vrot.lane.b32.xlu0 %v1893, 64
        %v1949 = vpop.permute.xlu0 %1948
        %1950 = vrot.lane.b32.xlu0 %v1941, 64
        %v1951 = vpop.permute.xlu0 %1950
        %v1954 = vsel %vm1515, %v1675, %v1949
        %v1955 = vsel %vm1515, %v1721, %v1951
        %v1956 = vpack.c.bf16 %v1955, %v1954
        %v1957 = vld [vmem:[%s956] sm:$0xf]
        %v1958 = vld [vmem:[%s956 + $0x4] sm:$0xf]
        %v1959 = vld [vmem:[%s956 + $0x8] sm:$0xf]
        %v1960 = vld [vmem:[%s956 + $0xc] sm:$0xf]
        %v1961 = vld [vmem:[%s956 + $0x10] sm:$0xf]
        %v1962 = vld [vmem:[%s956 + $0x14] sm:$0xf]
        %v1963 = vld [vmem:[%s956 + $0x18] sm:$0xf]
        %v1964 = vld [vmem:[%s956 + $0x1c] sm:$0xf]
        %v1965 = vld [vmem:[%s956 + $0x20] sm:$0xf]
        %v1966 = vld [vmem:[%s956 + $0x24] sm:$0xf]
        %v1967 = vld [vmem:[%s956 + $0x28] sm:$0xf]
        %v1968 = vld [vmem:[%s956 + $0x2c] sm:$0xf]
        %v1969 = vld [vmem:[%s956 + $0x30] sm:$0xf]
        %v1970 = vld [vmem:[%s956 + $0x34] sm:$0xf]
        %v1971 = vld [vmem:[%s956 + $0x38] sm:$0xf]
        %v1972 = vld [vmem:[%s956 + $0x3c] sm:$0xf]
        %v1973 = vld [vmem:[%s1113] sm:$0x1]
        %v1975 = vlaneseq
        %v1976 = vshrl.u32 %v1975, 7
        %v1977 = vsub.s32 0, %v1976
        %v1978 = vrot.slane %v1973, %v1977
        %v1996 = vunpack.c.l.b16 %v1957
        %v1997 = vunpack.c.l.b16 %v1958
        %v1998 = vunpack.c.l.b16 %v1959
        %v1999 = vunpack.c.l.b16 %v1960
        %v2000 = vunpack.c.l.b16 %v1961
        %v2001 = vunpack.c.l.b16 %v1962
        %v2002 = vunpack.c.l.b16 %v1963
        %v2003 = vunpack.c.l.b16 %v1964
        %v2004 = vunpack.c.l.b16 %v1965
        %v2005 = vunpack.c.l.b16 %v1966
        %v2006 = vunpack.c.l.b16 %v1967
        %v2007 = vunpack.c.l.b16 %v1968
        %v2008 = vunpack.c.l.b16 %v1969
        %v2009 = vunpack.c.l.b16 %v1970
        %v2010 = vunpack.c.l.b16 %v1971
        %v2011 = vunpack.c.l.b16 %v1972
        %v2012 = vpack.c.b16 %v1997, %v1996
        %v2013 = vpack.c.b16 %v1999, %v1998
        %v2014 = vpack.c.b16 %v2001, %v2000
        %v2015 = vpack.c.b16 %v2003, %v2002
        %v2016 = vpack.c.b16 %v2005, %v2004
        %v2017 = vpack.c.b16 %v2007, %v2006
        %v2018 = vpack.c.b16 %v2009, %v2008
        %v2019 = vpack.c.b16 %v2011, %v2010
        %2028 = vmatprep.subr.bf16.mxu0 0
        %2029 = vmatpush1.bf16.msra.mxu0 %v2012
        %2030 = vmatprep.subr.bf16.mxu0 0
        %2031 = vmatpush1.bf16.msra.mxu0 %v2013
        %2032 = vmatprep.subr.bf16.mxu0 0
        %2033 = vmatpush1.bf16.msra.mxu0 %v2014
        %2034 = vmatprep.subr.bf16.mxu0 0
        %2035 = vmatpush1.bf16.msra.mxu0 %v2015
        %2036 = vmatprep.subr.bf16.mxu0 0
        %2037 = vmatpush1.bf16.msra.mxu0 %v2016
        %2038 = vmatprep.subr.bf16.mxu0 0
        %2039 = vmatpush1.bf16.msra.mxu0 %v2017
        %2040 = vmatprep.subr.bf16.mxu0 0
        %2041 = vmatpush1.bf16.msra.mxu0 %v2018
        %2042 = vmatprep.subr.bf16.mxu0 0
        %2043 = vmatpush1.bf16.msra.mxu0 %v2019
        %2044 = vmatprep.subr.bf16.mxu0 0
        %2045 = vmatpush1.bf16.msra.mxu0 0
        %2046 = vmatprep.subr.bf16.mxu0 0
        %2047 = vmatpush1.bf16.msra.mxu0 0
        %2048 = vmatprep.subr.bf16.mxu0 0
        %2049 = vmatpush1.bf16.msra.mxu0 0
        %2050 = vmatprep.subr.bf16.mxu0 0
        %2051 = vmatpush1.bf16.msra.mxu0 0
        %2052 = vmatprep.subr.bf16.mxu0 0
        %2053 = vmatpush1.bf16.msra.mxu0 0
        %2054 = vmatprep.subr.bf16.mxu0 0
        %2055 = vmatpush1.bf16.msra.mxu0 0
        %2056 = vmatprep.subr.bf16.mxu0 0
        %2057 = vmatpush1.bf16.msra.mxu0 0
        %2058 = vmatprep.subr.bf16.mxu0 0
        %2059 = vmatpush1.bf16.msra.mxu0 0
        %2060 = vmatprep.mubr.bf16.mxu0 0
        %2061 = vmatmul.mubr.bf16.gmra.mrb[0].mxu0 %v1956
        %v2062 = vpop.f32.mrb[0].mxu0
        %v2063 = vadd.f32 %v1978, %v2062
        %v2064 = vpop.f32.mrb[0].mxu0
        %v2065 = vpop.f32.mrb[0].mxu0
        %v2066 = vadd.f32 %v1978, %v2065
        %v2067 = vpop.f32.mrb[0].mxu0
        %2068 = vdwg.mxu0
        %v2069 = vadd.f32 %v1144, %v2063
        %v2070 = vadd.f32 %v1145, %v2066
        %v2071 = vld [vmem:[%s1116] sm:$0x1]
        %v2072 = vld [vmem:[%s1119] sm:$0x1]
        %2073 = vadd.xlane.f32.xlu0 %v2069
        %v2074 = vpop.xlane.xlu0 %2073
        %2075 = vadd.xlane.f32.xlu0 %v2070
        %v2076 = vpop.xlane.xlu0 %2075
        %v2077 = vrcp.pop 128.0
        %v2078 = vmul.f32 %v2074, %v2077
        %v2079 = vmul.f32 %v2076, %v2077
        %v2080 = vsub.f32 %v2069, %v2078
        %v2081 = vsub.f32 %v2070, %v2079
        %v2082 = vmul.f32 %v2080, %v2080
        %v2083 = vmul.f32 %v2081, %v2081
        %2084 = vadd.xlane.f32.xlu0 %v2082
        %v2085 = vpop.xlane.xlu0 %2084
        %2086 = vadd.xlane.f32.xlu0 %v2083
        %v2087 = vpop.xlane.xlu0 %2086
        %v2088 = vmul.f32 %v2085, %v2077
        %v2089 = vmul.f32 %v2087, %v2077
        %v2090 = vadd.f32 %v2088, 1e-12
        %v2091 = vadd.f32 %v2089, 1e-12
        %v2092 = vrsqrt.pop %v2090
        %v2093 = vrsqrt.pop %v2091
        %v2094 = vmul.f32 %v2080, %v2092
        %v2095 = vmul.f32 %v2081, %v2093
        %v2097 = vlaneseq
        %v2098 = vshrl.u32 %v2097, 7
        %v2099 = vsub.s32 0, %v2098
        %v2100 = vrot.slane %v2071, %v2099
        %v2102 = vmul.f32 %v2094, %v2100
        %v2103 = vmul.f32 %v2095, %v2100
        %v2105 = vlaneseq
        %v2106 = vshrl.u32 %v2105, 7
        %v2107 = vsub.s32 0, %v2106
        %v2108 = vrot.slane %v2072, %v2107
        %v2110 = vadd.f32 %v2102, %v2108
        %v2111 = vadd.f32 %v2103, %v2108
        %v2112 = vpack.c.bf16 %v2111, %v2110
        %v2113 = vld [vmem:[%s965] sm:$0xff]
        %v2114 = vld [vmem:[%s965 + $0x8] sm:$0xff]
        %v2115 = vld [vmem:[%s965 + $0x10] sm:$0xff]
        %v2116 = vld [vmem:[%s965 + $0x18] sm:$0xff]
        %v2117 = vld [vmem:[%s965 + $0x20] sm:$0xff]
        %v2118 = vld [vmem:[%s965 + $0x28] sm:$0xff]
        %v2119 = vld [vmem:[%s965 + $0x30] sm:$0xff]
        %v2120 = vld [vmem:[%s965 + $0x38] sm:$0xff]
        %v2121 = vld [vmem:[%s965 + $0x40] sm:$0xff]
        %v2122 = vld [vmem:[%s965 + $0x48] sm:$0xff]
        %v2123 = vld [vmem:[%s965 + $0x50] sm:$0xff]
        %v2124 = vld [vmem:[%s965 + $0x58] sm:$0xff]
        %v2125 = vld [vmem:[%s965 + $0x60] sm:$0xff]
        %v2126 = vld [vmem:[%s965 + $0x68] sm:$0xff]
        %v2127 = vld [vmem:[%s965 + $0x70] sm:$0xff]
        %v2128 = vld [vmem:[%s965 + $0x78] sm:$0xff]
        %v2129 = vld [vmem:[%s965 + $0x80] sm:$0xff]
        %v2130 = vld [vmem:[%s965 + $0x88] sm:$0xff]
        %v2131 = vld [vmem:[%s965 + $0x90] sm:$0xff]
        %v2132 = vld [vmem:[%s965 + $0x98] sm:$0xff]
        %v2133 = vld [vmem:[%s965 + $0xa0] sm:$0xff]
        %v2134 = vld [vmem:[%s965 + $0xa8] sm:$0xff]
        %v2135 = vld [vmem:[%s965 + $0xb0] sm:$0xff]
        %v2136 = vld [vmem:[%s965 + $0xb8] sm:$0xff]
        %v2137 = vld [vmem:[%s965 + $0xc0] sm:$0xff]
        %v2138 = vld [vmem:[%s965 + $0xc8] sm:$0xff]
        %v2139 = vld [vmem:[%s965 + $0xd0] sm:$0xff]
        %v2140 = vld [vmem:[%s965 + $0xd8] sm:$0xff]
        %v2141 = vld [vmem:[%s965 + $0xe0] sm:$0xff]
        %v2142 = vld [vmem:[%s965 + $0xe8] sm:$0xff]
        %v2143 = vld [vmem:[%s965 + $0xf0] sm:$0xff]
        %v2144 = vld [vmem:[%s965 + $0xf8] sm:$0xff]
        %v2145 = vld [vmem:[%s1123] sm:$0xf]
        %v2147 = vlaneseq
        %v2148 = vshrl.u32 %v2147, 7
        %v2149 = vsub.s32 0, %v2148
        %v2150 = vrot.slane %v2145, %v2149
        %v2151 = vlaneseq
        %v2152 = vshrl.u32 %v2151, 7
        %v2153 = vsub.s32 1, %v2152
        %v2154 = vrot.slane %v2145, %v2153
        %v2155 = vlaneseq
        %v2156 = vshrl.u32 %v2155, 7
        %v2157 = vsub.s32 2, %v2156
        %v2158 = vrot.slane %v2145, %v2157
        %v2159 = vlaneseq
        %v2160 = vshrl.u32 %v2159, 7
        %v2161 = vsub.s32 3, %v2160
        %v2162 = vrot.slane %v2145, %v2161
        %v2199 = vunpack.c.l.b16 %v2113
        %v2200 = vunpack.c.h.b16 %v2113
        %v2201 = vunpack.c.l.b16 %v2114
        %v2202 = vunpack.c.h.b16 %v2114
        %v2203 = vunpack.c.l.b16 %v2115
        %v2204 = vunpack.c.h.b16 %v2115
        %v2205 = vunpack.c.l.b16 %v2116
        %v2206 = vunpack.c.h.b16 %v2116
        %v2207 = vunpack.c.l.b16 %v2117
        %v2208 = vunpack.c.h.b16 %v2117
        %v2209 = vunpack.c.l.b16 %v2118
        %v2210 = vunpack.c.h.b16 %v2118
        %v2211 = vunpack.c.l.b16 %v2119
        %v2212 = vunpack.c.h.b16 %v2119
        %v2213 = vunpack.c.l.b16 %v2120
        %v2214 = vunpack.c.h.b16 %v2120
        %v2215 = vunpack.c.l.b16 %v2121
        %v2216 = vunpack.c.h.b16 %v2121
        %v2217 = vunpack.c.l.b16 %v2122
        %v2218 = vunpack.c.h.b16 %v2122
        %v2219 = vunpack.c.l.b16 %v2123
        %v2220 = vunpack.c.h.b16 %v2123
        %v2221 = vunpack.c.l.b16 %v2124
        %v2222 = vunpack.c.h.b16 %v2124
        %v2223 = vunpack.c.l.b16 %v2125
        %v2224 = vunpack.c.h.b16 %v2125
        %v2225 = vunpack.c.l.b16 %v2126
        %v2226 = vunpack.c.h.b16 %v2126
        %v2227 = vunpack.c.l.b16 %v2127
        %v2228 = vunpack.c.h.b16 %v2127
        %v2229 = vunpack.c.l.b16 %v2128
        %v2230 = vunpack.c.h.b16 %v2128
        %v2231 = vunpack.c.l.b16 %v2129
        %v2232 = vunpack.c.h.b16 %v2129
        %v2233 = vunpack.c.l.b16 %v2130
        %v2234 = vunpack.c.h.b16 %v2130
        %v2235 = vunpack.c.l.b16 %v2131
        %v2236 = vunpack.c.h.b16 %v2131
        %v2237 = vunpack.c.l.b16 %v2132
        %v2238 = vunpack.c.h.b16 %v2132
        %v2239 = vunpack.c.l.b16 %v2133
        %v2240 = vunpack.c.h.b16 %v2133
        %v2241 = vunpack.c.l.b16 %v2134
        %v2242 = vunpack.c.h.b16 %v2134
        %v2243 = vunpack.c.l.b16 %v2135
        %v2244 = vunpack.c.h.b16 %v2135
        %v2245 = vunpack.c.l.b16 %v2136
        %v2246 = vunpack.c.h.b16 %v2136
        %v2247 = vunpack.c.l.b16 %v2137
        %v2248 = vunpack.c.h.b16 %v2137
        %v2249 = vunpack.c.l.b16 %v2138
        %v2250 = vunpack.c.h.b16 %v2138
        %v2251 = vunpack.c.l.b16 %v2139
        %v2252 = vunpack.c.h.b16 %v2139
        %v2253 = vunpack.c.l.b16 %v2140
        %v2254 = vunpack.c.h.b16 %v2140
        %v2255 = vunpack.c.l.b16 %v2141
        %v2256 = vunpack.c.h.b16 %v2141
        %v2257 = vunpack.c.l.b16 %v2142
        %v2258 = vunpack.c.h.b16 %v2142
        %v2259 = vunpack.c.l.b16 %v2143
        %v2260 = vunpack.c.h.b16 %v2143
        %v2261 = vunpack.c.l.b16 %v2144
        %v2262 = vunpack.c.h.b16 %v2144
        %v2263 = vpack.c.b16 %v2203, %v2199
        %v2264 = vpack.c.b16 %v2204, %v2200
        %v2265 = vpack.c.b16 %v2205, %v2201
        %v2266 = vpack.c.b16 %v2206, %v2202
        %v2267 = vpack.c.b16 %v2211, %v2207
        %v2268 = vpack.c.b16 %v2212, %v2208
        %v2269 = vpack.c.b16 %v2213, %v2209
        %v2270 = vpack.c.b16 %v2214, %v2210
        %v2271 = vpack.c.b16 %v2219, %v2215
        %v2272 = vpack.c.b16 %v2220, %v2216
        %v2273 = vpack.c.b16 %v2221, %v2217
        %v2274 = vpack.c.b16 %v2222, %v2218
        %v2275 = vpack.c.b16 %v2227, %v2223
        %v2276 = vpack.c.b16 %v2228, %v2224
        %v2277 = vpack.c.b16 %v2229, %v2225
        %v2278 = vpack.c.b16 %v2230, %v2226
        %v2279 = vpack.c.b16 %v2235, %v2231
        %v2280 = vpack.c.b16 %v2236, %v2232
        %v2281 = vpack.c.b16 %v2237, %v2233
        %v2282 = vpack.c.b16 %v2238, %v2234
        %v2283 = vpack.c.b16 %v2243, %v2239
        %v2284 = vpack.c.b16 %v2244, %v2240
        %v2285 = vpack.c.b16 %v2245, %v2241
        %v2286 = vpack.c.b16 %v2246, %v2242
        %v2287 = vpack.c.b16 %v2251, %v2247
        %v2288 = vpack.c.b16 %v2252, %v2248
        %v2289 = vpack.c.b16 %v2253, %v2249
        %v2290 = vpack.c.b16 %v2254, %v2250
        %v2291 = vpack.c.b16 %v2259, %v2255
        %v2292 = vpack.c.b16 %v2260, %v2256
        %v2293 = vpack.c.b16 %v2261, %v2257
        %v2294 = vpack.c.b16 %v2262, %v2258
        %2327 = vmatprep.subr.bf16.mxu0 %v2264
        %2328 = vmatpush1.bf16.msra.mxu0 %v2263
        %2329 = vmatprep.subr.bf16.mxu0 %v2268
        %2330 = vmatpush1.bf16.msra.mxu0 %v2267
        %2331 = vmatprep.subr.bf16.mxu0 %v2272
        %2332 = vmatpush1.bf16.msra.mxu0 %v2271
        %2333 = vmatprep.subr.bf16.mxu0 %v2276
        %2334 = vmatpush1.bf16.msra.mxu0 %v2275
        %2335 = vmatprep.subr.bf16.mxu0 %v2280
        %2336 = vmatpush1.bf16.msra.mxu0 %v2279
        %2337 = vmatprep.subr.bf16.mxu0 %v2284
        %2338 = vmatpush1.bf16.msra.mxu0 %v2283
        %2339 = vmatprep.subr.bf16.mxu0 %v2288
        %2340 = vmatpush1.bf16.msra.mxu0 %v2287
        %2341 = vmatprep.subr.bf16.mxu0 %v2292
        %2342 = vmatpush1.bf16.msra.mxu0 %v2291
        %2343 = vmatprep.subr.bf16.mxu0 0
        %2344 = vmatpush1.bf16.msra.mxu0 0
        %2345 = vmatprep.subr.bf16.mxu0 0
        %2346 = vmatpush1.bf16.msra.mxu0 0
        %2347 = vmatprep.subr.bf16.mxu0 0
        %2348 = vmatpush1.bf16.msra.mxu0 0
        %2349 = vmatprep.subr.bf16.mxu0 0
        %2350 = vmatpush1.bf16.msra.mxu0 0
        %2351 = vmatprep.subr.bf16.mxu0 0
        %2352 = vmatpush1.bf16.msra.mxu0 0
        %2353 = vmatprep.subr.bf16.mxu0 0
        %2354 = vmatpush1.bf16.msra.mxu0 0
        %2355 = vmatprep.subr.bf16.mxu0 0
        %2356 = vmatpush1.bf16.msra.mxu0 0
        %2357 = vmatprep.subr.bf16.mxu0 0
        %2358 = vmatpush1.bf16.msra.mxu0 0
        %2359 = vmatprep.mubr.bf16.mxu0 0
        %2360 = vmatmul.mubr.bf16.gmra.mrb[0].mxu0 %v2112
        %v2361 = vpop.f32.mrb[0].mxu0
        %v2362 = vadd.f32 %v2150, %v2361
        %v2363 = vpop.f32.mrb[0].mxu0
        %v2364 = vadd.f32 %v2154, %v2363
        %v2365 = vpop.f32.mrb[0].mxu0
        %v2366 = vadd.f32 %v2150, %v2365
        %v2367 = vpop.f32.mrb[0].mxu0
        %v2368 = vadd.f32 %v2154, %v2367
        %2369 = vdwg.mxu0
        %2370 = vmatprep.subr.bf16.mxu0 %v2266
        %2371 = vmatpush1.bf16.msra.mxu0 %v2265
        %2372 = vmatprep.subr.bf16.mxu0 %v2270
        %2373 = vmatpush1.bf16.msra.mxu0 %v2269
        %2374 = vmatprep.subr.bf16.mxu0 %v2274
        %2375 = vmatpush1.bf16.msra.mxu0 %v2273
        %2376 = vmatprep.subr.bf16.mxu0 %v2278
        %2377 = vmatpush1.bf16.msra.mxu0 %v2277
        %2378 = vmatprep.subr.bf16.mxu0 %v2282
        %2379 = vmatpush1.bf16.msra.mxu0 %v2281
        %2380 = vmatprep.subr.bf16.mxu0 %v2286
        %2381 = vmatpush1.bf16.msra.mxu0 %v2285
        %2382 = vmatprep.subr.bf16.mxu0 %v2290
        %2383 = vmatpush1.bf16.msra.mxu0 %v2289
        %2384 = vmatprep.subr.bf16.mxu0 %v2294
        %2385 = vmatpush1.bf16.msra.mxu0 %v2293
        %2386 = vmatprep.subr.bf16.mxu0 0
        %2387 = vmatpush1.bf16.msra.mxu0 0
        %2388 = vmatprep.subr.bf16.mxu0 0
        %2389 = vmatpush1.bf16.msra.mxu0 0
        %2390 = vmatprep.subr.bf16.mxu0 0
        %2391 = vmatpush1.bf16.msra.mxu0 0
        %2392 = vmatprep.subr.bf16.mxu0 0
        %2393 = vmatpush1.bf16.msra.mxu0 0
        %2394 = vmatprep.subr.bf16.mxu0 0
        %2395 = vmatpush1.bf16.msra.mxu0 0
        %2396 = vmatprep.subr.bf16.mxu0 0
        %2397 = vmatpush1.bf16.msra.mxu0 0
        %2398 = vmatprep.subr.bf16.mxu0 0
        %2399 = vmatpush1.bf16.msra.mxu0 0
        %2400 = vmatprep.subr.bf16.mxu0 0
        %2401 = vmatpush1.bf16.msra.mxu0 0
        %2402 = vmatprep.mubr.bf16.mxu0 0
        %2403 = vmatmul.mubr.bf16.gmra.mrb[0].mxu0 %v2112
        %v2404 = vpop.f32.mrb[0].mxu0
        %v2405 = vadd.f32 %v2158, %v2404
        %v2406 = vpop.f32.mrb[0].mxu0
        %v2407 = vadd.f32 %v2162, %v2406
        %v2408 = vpop.f32.mrb[0].mxu0
        %v2409 = vadd.f32 %v2158, %v2408
        %v2410 = vpop.f32.mrb[0].mxu0
        %v2411 = vadd.f32 %v2162, %v2410
        %2412 = vdwg.mxu0
        %v2413 = vmul.f32 %v2362, %v2362
        %v2414 = vmul.f32 %v2364, %v2364
        %v2415 = vmul.f32 %v2405, %v2405
        %v2416 = vmul.f32 %v2407, %v2407
        %v2417 = vmul.f32 %v2366, %v2366
        %v2418 = vmul.f32 %v2368, %v2368
        %v2419 = vmul.f32 %v2409, %v2409
        %v2420 = vmul.f32 %v2411, %v2411
        %v2421 = vmul.f32 %v2362, %v2413
        %v2422 = vmul.f32 %v2364, %v2414
        %v2423 = vmul.f32 %v2405, %v2415
        %v2424 = vmul.f32 %v2407, %v2416
        %v2425 = vmul.f32 %v2366, %v2417
        %v2426 = vmul.f32 %v2368, %v2418
        %v2427 = vmul.f32 %v2409, %v2419
        %v2428 = vmul.f32 %v2411, %v2420
        %v2429 = vmul.f32 %v2421, 0.044715
        %v2430 = vmul.f32 %v2422, 0.044715
        %v2431 = vmul.f32 %v2423, 0.044715
        %v2432 = vmul.f32 %v2424, 0.044715
        %v2433 = vmul.f32 %v2425, 0.044715
        %v2434 = vmul.f32 %v2426, 0.044715
        %v2435 = vmul.f32 %v2427, 0.044715
        %v2436 = vmul.f32 %v2428, 0.044715
        %v2437 = vadd.f32 %v2362, %v2429
        %v2438 = vadd.f32 %v2364, %v2430
        %v2439 = vadd.f32 %v2405, %v2431
        %v2440 = vadd.f32 %v2407, %v2432
        %v2441 = vadd.f32 %v2366, %v2433
        %v2442 = vadd.f32 %v2368, %v2434
        %v2443 = vadd.f32 %v2409, %v2435
        %v2444 = vadd.f32 %v2411, %v2436
        %v2445 = vmul.f32 %v2437, 0.7978846
        %v2446 = vmul.f32 %v2438, 0.7978846
        %v2447 = vmul.f32 %v2439, 0.7978846
        %v2448 = vmul.f32 %v2440, 0.7978846
        %v2449 = vmul.f32 %v2441, 0.7978846
        %v2450 = vmul.f32 %v2442, 0.7978846
        %v2451 = vmul.f32 %v2443, 0.7978846
        %v2452 = vmul.f32 %v2444, 0.7978846
        %v2453 = vtanh.pop %v2445
        %v2454 = vtanh.pop %v2446
        %v2455 = vtanh.pop %v2447
        %v2456 = vtanh.pop %v2448
        %v2457 = vtanh.pop %v2449
        %v2458 = vtanh.pop %v2450
        %v2459 = vtanh.pop %v2451
        %v2460 = vtanh.pop %v2452
        %v2461 = vadd.f32 %v2453, 1.0
        %v2462 = vadd.f32 %v2454, 1.0
        %v2463 = vadd.f32 %v2455, 1.0
        %v2464 = vadd.f32 %v2456, 1.0
        %v2465 = vadd.f32 %v2457, 1.0
        %v2466 = vadd.f32 %v2458, 1.0
        %v2467 = vadd.f32 %v2459, 1.0
        %v2468 = vadd.f32 %v2460, 1.0
        %v2469 = vmul.f32 %v2461, 0.5
        %v2470 = vmul.f32 %v2462, 0.5
        %v2471 = vmul.f32 %v2463, 0.5
        %v2472 = vmul.f32 %v2464, 0.5
        %v2473 = vmul.f32 %v2465, 0.5
        %v2474 = vmul.f32 %v2466, 0.5
        %v2475 = vmul.f32 %v2467, 0.5
        %v2476 = vmul.f32 %v2468, 0.5
        %v2477 = vmul.f32 %v2362, %v2469
        %v2478 = vmul.f32 %v2364, %v2470
        %v2479 = vmul.f32 %v2405, %v2471
        %v2480 = vmul.f32 %v2407, %v2472
        %v2481 = vmul.f32 %v2366, %v2473
        %v2482 = vmul.f32 %v2368, %v2474
        %v2483 = vmul.f32 %v2409, %v2475
        %v2484 = vmul.f32 %v2411, %v2476
        %v2485 = vpack.c.bf16 %v2481, %v2477
        %v2486 = vpack.c.bf16 %v2482, %v2478
        %v2487 = vpack.c.bf16 %v2483, %v2479
        %v2488 = vpack.c.bf16 %v2484, %v2480
        %v2489 = vld [vmem:[%s974] sm:$0xf]
        %v2490 = vld [vmem:[%s974 + $0x4] sm:$0xf]
        %v2491 = vld [vmem:[%s974 + $0x8] sm:$0xf]
        %v2492 = vld [vmem:[%s974 + $0xc] sm:$0xf]
        %v2493 = vld [vmem:[%s974 + $0x10] sm:$0xf]
        %v2494 = vld [vmem:[%s974 + $0x14] sm:$0xf]
        %v2495 = vld [vmem:[%s974 + $0x18] sm:$0xf]
        %v2496 = vld [vmem:[%s974 + $0x1c] sm:$0xf]
        %v2497 = vld [vmem:[%s974 + $0x20] sm:$0xf]
        %v2498 = vld [vmem:[%s974 + $0x24] sm:$0xf]
        %v2499 = vld [vmem:[%s974 + $0x28] sm:$0xf]
        %v2500 = vld [vmem:[%s974 + $0x2c] sm:$0xf]
        %v2501 = vld [vmem:[%s974 + $0x30] sm:$0xf]
        %v2502 = vld [vmem:[%s974 + $0x34] sm:$0xf]
        %v2503 = vld [vmem:[%s974 + $0x38] sm:$0xf]
        %v2504 = vld [vmem:[%s974 + $0x3c] sm:$0xf]
        %v2505 = vld [vmem:[%s974 + $0x40] sm:$0xf]
        %v2506 = vld [vmem:[%s974 + $0x44] sm:$0xf]
        %v2507 = vld [vmem:[%s974 + $0x48] sm:$0xf]
        %v2508 = vld [vmem:[%s974 + $0x4c] sm:$0xf]
        %v2509 = vld [vmem:[%s974 + $0x50] sm:$0xf]
        %v2510 = vld [vmem:[%s974 + $0x54] sm:$0xf]
        %v2511 = vld [vmem:[%s974 + $0x58] sm:$0xf]
        %v2512 = vld [vmem:[%s974 + $0x5c] sm:$0xf]
        %v2513 = vld [vmem:[%s974 + $0x60] sm:$0xf]
        %v2514 = vld [vmem:[%s974 + $0x64] sm:$0xf]
        %v2515 = vld [vmem:[%s974 + $0x68] sm:$0xf]
        %v2516 = vld [vmem:[%s974 + $0x6c] sm:$0xf]
        %v2517 = vld [vmem:[%s974 + $0x70] sm:$0xf]
        %v2518 = vld [vmem:[%s974 + $0x74] sm:$0xf]
        %v2519 = vld [vmem:[%s974 + $0x78] sm:$0xf]
        %v2520 = vld [vmem:[%s974 + $0x7c] sm:$0xf]
        %v2521 = vld [vmem:[%s974 + $0x80] sm:$0xf]
        %v2522 = vld [vmem:[%s974 + $0x84] sm:$0xf]
        %v2523 = vld [vmem:[%s974 + $0x88] sm:$0xf]
        %v2524 = vld [vmem:[%s974 + $0x8c] sm:$0xf]
        %v2525 = vld [vmem:[%s974 + $0x90] sm:$0xf]
        %v2526 = vld [vmem:[%s974 + $0x94] sm:$0xf]
        %v2527 = vld [vmem:[%s974 + $0x98] sm:$0xf]
        %v2528 = vld [vmem:[%s974 + $0x9c] sm:$0xf]
        %v2529 = vld [vmem:[%s974 + $0xa0] sm:$0xf]
        %v2530 = vld [vmem:[%s974 + $0xa4] sm:$0xf]
        %v2531 = vld [vmem:[%s974 + $0xa8] sm:$0xf]
        %v2532 = vld [vmem:[%s974 + $0xac] sm:$0xf]
        %v2533 = vld [vmem:[%s974 + $0xb0] sm:$0xf]
        %v2534 = vld [vmem:[%s974 + $0xb4] sm:$0xf]
        %v2535 = vld [vmem:[%s974 + $0xb8] sm:$0xf]
        %v2536 = vld [vmem:[%s974 + $0xbc] sm:$0xf]
        %v2537 = vld [vmem:[%s974 + $0xc0] sm:$0xf]
        %v2538 = vld [vmem:[%s974 + $0xc4] sm:$0xf]
        %v2539 = vld [vmem:[%s974 + $0xc8] sm:$0xf]
        %v2540 = vld [vmem:[%s974 + $0xcc] sm:$0xf]
        %v2541 = vld [vmem:[%s974 + $0xd0] sm:$0xf]
        %v2542 = vld [vmem:[%s974 + $0xd4] sm:$0xf]
        %v2543 = vld [vmem:[%s974 + $0xd8] sm:$0xf]
        %v2544 = vld [vmem:[%s974 + $0xdc] sm:$0xf]
        %v2545 = vld [vmem:[%s974 + $0xe0] sm:$0xf]
        %v2546 = vld [vmem:[%s974 + $0xe4] sm:$0xf]
        %v2547 = vld [vmem:[%s974 + $0xe8] sm:$0xf]
        %v2548 = vld [vmem:[%s974 + $0xec] sm:$0xf]
        %v2549 = vld [vmem:[%s974 + $0xf0] sm:$0xf]
        %v2550 = vld [vmem:[%s974 + $0xf4] sm:$0xf]
        %v2551 = vld [vmem:[%s974 + $0xf8] sm:$0xf]
        %v2552 = vld [vmem:[%s974 + $0xfc] sm:$0xf]
        %v2553 = vld [vmem:[%s1126] sm:$0x1]
        %v2555 = vlaneseq
        %v2556 = vshrl.u32 %v2555, 7
        %v2557 = vsub.s32 0, %v2556
        %v2558 = vrot.slane %v2553, %v2557
        %v2624 = vunpack.c.l.b16 %v2489
        %v2625 = vunpack.c.l.b16 %v2490
        %v2626 = vunpack.c.l.b16 %v2491
        %v2627 = vunpack.c.l.b16 %v2492
        %v2628 = vunpack.c.l.b16 %v2493
        %v2629 = vunpack.c.l.b16 %v2494
        %v2630 = vunpack.c.l.b16 %v2495
        %v2631 = vunpack.c.l.b16 %v2496
        %v2632 = vunpack.c.l.b16 %v2497
        %v2633 = vunpack.c.l.b16 %v2498
        %v2634 = vunpack.c.l.b16 %v2499
        %v2635 = vunpack.c.l.b16 %v2500
        %v2636 = vunpack.c.l.b16 %v2501
        %v2637 = vunpack.c.l.b16 %v2502
        %v2638 = vunpack.c.l.b16 %v2503
        %v2639 = vunpack.c.l.b16 %v2504
        %v2640 = vunpack.c.l.b16 %v2505
        %v2641 = vunpack.c.l.b16 %v2506
        %v2642 = vunpack.c.l.b16 %v2507
        %v2643 = vunpack.c.l.b16 %v2508
        %v2644 = vunpack.c.l.b16 %v2509
        %v2645 = vunpack.c.l.b16 %v2510
        %v2646 = vunpack.c.l.b16 %v2511
        %v2647 = vunpack.c.l.b16 %v2512
        %v2648 = vunpack.c.l.b16 %v2513
        %v2649 = vunpack.c.l.b16 %v2514
        %v2650 = vunpack.c.l.b16 %v2515
        %v2651 = vunpack.c.l.b16 %v2516
        %v2652 = vunpack.c.l.b16 %v2517
        %v2653 = vunpack.c.l.b16 %v2518
        %v2654 = vunpack.c.l.b16 %v2519
        %v2655 = vunpack.c.l.b16 %v2520
        %v2656 = vunpack.c.l.b16 %v2521
        %v2657 = vunpack.c.l.b16 %v2522
        %v2658 = vunpack.c.l.b16 %v2523
        %v2659 = vunpack.c.l.b16 %v2524
        %v2660 = vunpack.c.l.b16 %v2525
        %v2661 = vunpack.c.l.b16 %v2526
        %v2662 = vunpack.c.l.b16 %v2527
        %v2663 = vunpack.c.l.b16 %v2528
        %v2664 = vunpack.c.l.b16 %v2529
        %v2665 = vunpack.c.l.b16 %v2530
        %v2666 = vunpack.c.l.b16 %v2531
        %v2667 = vunpack.c.l.b16 %v2532
        %v2668 = vunpack.c.l.b16 %v2533
        %v2669 = vunpack.c.l.b16 %v2534
        %v2670 = vunpack.c.l.b16 %v2535
        %v2671 = vunpack.c.l.b16 %v2536
        %v2672 = vunpack.c.l.b16 %v2537
        %v2673 = vunpack.c.l.b16 %v2538
        %v2674 = vunpack.c.l.b16 %v2539
        %v2675 = vunpack.c.l.b16 %v2540
        %v2676 = vunpack.c.l.b16 %v2541
        %v2677 = vunpack.c.l.b16 %v2542
        %v2678 = vunpack.c.l.b16 %v2543
        %v2679 = vunpack.c.l.b16 %v2544
        %v2680 = vunpack.c.l.b16 %v2545
        %v2681 = vunpack.c.l.b16 %v2546
        %v2682 = vunpack.c.l.b16 %v2547
        %v2683 = vunpack.c.l.b16 %v2548
        %v2684 = vunpack.c.l.b16 %v2549
        %v2685 = vunpack.c.l.b16 %v2550
        %v2686 = vunpack.c.l.b16 %v2551
        %v2687 = vunpack.c.l.b16 %v2552
        %v2688 = vpack.c.b16 %v2625, %v2624
        %v2689 = vpack.c.b16 %v2627, %v2626
        %v2690 = vpack.c.b16 %v2629, %v2628
        %v2691 = vpack.c.b16 %v2631, %v2630
        %v2692 = vpack.c.b16 %v2633, %v2632
        %v2693 = vpack.c.b16 %v2635, %v2634
        %v2694 = vpack.c.b16 %v2637, %v2636
        %v2695 = vpack.c.b16 %v2639, %v2638
        %v2696 = vpack.c.b16 %v2641, %v2640
        %v2697 = vpack.c.b16 %v2643, %v2642
        %v2698 = vpack.c.b16 %v2645, %v2644
        %v2699 = vpack.c.b16 %v2647, %v2646
        %v2700 = vpack.c.b16 %v2649, %v2648
        %v2701 = vpack.c.b16 %v2651, %v2650
        %v2702 = vpack.c.b16 %v2653, %v2652
        %v2703 = vpack.c.b16 %v2655, %v2654
        %v2704 = vpack.c.b16 %v2657, %v2656
        %v2705 = vpack.c.b16 %v2659, %v2658
        %v2706 = vpack.c.b16 %v2661, %v2660
        %v2707 = vpack.c.b16 %v2663, %v2662
        %v2708 = vpack.c.b16 %v2665, %v2664
        %v2709 = vpack.c.b16 %v2667, %v2666
        %v2710 = vpack.c.b16 %v2669, %v2668
        %v2711 = vpack.c.b16 %v2671, %v2670
        %v2712 = vpack.c.b16 %v2673, %v2672
        %v2713 = vpack.c.b16 %v2675, %v2674
        %v2714 = vpack.c.b16 %v2677, %v2676
        %v2715 = vpack.c.b16 %v2679, %v2678
        %v2716 = vpack.c.b16 %v2681, %v2680
        %v2717 = vpack.c.b16 %v2683, %v2682
        %v2718 = vpack.c.b16 %v2685, %v2684
        %v2719 = vpack.c.b16 %v2687, %v2686
        %2752 = vmatprep.subr.bf16.mxu0 0
        %2753 = vmatpush1.bf16.msra.mxu0 %v2688
        %2754 = vmatprep.subr.bf16.mxu0 0
        %2755 = vmatpush1.bf16.msra.mxu0 %v2689
        %2756 = vmatprep.subr.bf16.mxu0 0
        %2757 = vmatpush1.bf16.msra.mxu0 %v2690
        %2758 = vmatprep.subr.bf16.mxu0 0
        %2759 = vmatpush1.bf16.msra.mxu0 %v2691
        %2760 = vmatprep.subr.bf16.mxu0 0
        %2761 = vmatpush1.bf16.msra.mxu0 %v2692
        %2762 = vmatprep.subr.bf16.mxu0 0
        %2763 = vmatpush1.bf16.msra.mxu0 %v2693
        %2764 = vmatprep.subr.bf16.mxu0 0
        %2765 = vmatpush1.bf16.msra.mxu0 %v2694
        %2766 = vmatprep.subr.bf16.mxu0 0
        %2767 = vmatpush1.bf16.msra.mxu0 %v2695
        %2768 = vmatprep.subr.bf16.mxu0 0
        %2769 = vmatpush1.bf16.msra.mxu0 %v2696
        %2770 = vmatprep.subr.bf16.mxu0 0
        %2771 = vmatpush1.bf16.msra.mxu0 %v2697
        %2772 = vmatprep.subr.bf16.mxu0 0
        %2773 = vmatpush1.bf16.msra.mxu0 %v2698
        %2774 = vmatprep.subr.bf16.mxu0 0
        %2775 = vmatpush1.bf16.msra.mxu0 %v2699
        %2776 = vmatprep.subr.bf16.mxu0 0
        %2777 = vmatpush1.bf16.msra.mxu0 %v2700
        %2778 = vmatprep.subr.bf16.mxu0 0
        %2779 = vmatpush1.bf16.msra.mxu0 %v2701
        %2780 = vmatprep.subr.bf16.mxu0 0
        %2781 = vmatpush1.bf16.msra.mxu0 %v2702
        %2782 = vmatprep.subr.bf16.mxu0 0
        %2783 = vmatpush1.bf16.msra.mxu0 %v2703
        %2784 = vmatprep.mubr.bf16.mxu0 %v2486
        %2785 = vmatmul.mubr.bf16.gmra.mrb[0].mxu0 %v2485
        %v2786 = vpop.f32.mrb[0].mxu0
        %v2787 = vadd.f32 %v2558, %v2786
        %v2788 = vpop.f32.mrb[0].mxu0
        %v2789 = vpop.f32.mrb[0].mxu0
        %v2790 = vadd.f32 %v2558, %v2789
        %v2791 = vpop.f32.mrb[0].mxu0
        %2792 = vdwg.mxu0
        %2793 = vmatprep.subr.bf16.mxu0 0
        %2794 = vmatpush1.bf16.msra.mxu0 %v2704
        %2795 = vmatprep.subr.bf16.mxu0 0
        %2796 = vmatpush1.bf16.msra.mxu0 %v2705
        %2797 = vmatprep.subr.bf16.mxu0 0
        %2798 = vmatpush1.bf16.msra.mxu0 %v2706
        %2799 = vmatprep.subr.bf16.mxu0 0
        %2800 = vmatpush1.bf16.msra.mxu0 %v2707
        %2801 = vmatprep.subr.bf16.mxu0 0
        %2802 = vmatpush1.bf16.msra.mxu0 %v2708
        %2803 = vmatprep.subr.bf16.mxu0 0
        %2804 = vmatpush1.bf16.msra.mxu0 %v2709
        %2805 = vmatprep.subr.bf16.mxu0 0
        %2806 = vmatpush1.bf16.msra.mxu0 %v2710
        %2807 = vmatprep.subr.bf16.mxu0 0
        %2808 = vmatpush1.bf16.msra.mxu0 %v2711
        %2809 = vmatprep.subr.bf16.mxu0 0
        %2810 = vmatpush1.bf16.msra.mxu0 %v2712
        %2811 = vmatprep.subr.bf16.mxu0 0
        %2812 = vmatpush1.bf16.msra.mxu0 %v2713
        %2813 = vmatprep.subr.bf16.mxu0 0
        %2814 = vmatpush1.bf16.msra.mxu0 %v2714
        %2815 = vmatprep.subr.bf16.mxu0 0
        %2816 = vmatpush1.bf16.msra.mxu0 %v2715
        %2817 = vmatprep.subr.bf16.mxu0 0
        %2818 = vmatpush1.bf16.msra.mxu0 %v2716
        %2819 = vmatprep.subr.bf16.mxu0 0
        %2820 = vmatpush1.bf16.msra.mxu0 %v2717
        %2821 = vmatprep.subr.bf16.mxu0 0
        %2822 = vmatpush1.bf16.msra.mxu0 %v2718
        %2823 = vmatprep.subr.bf16.mxu0 0
        %2824 = vmatpush1.bf16.msra.mxu0 %v2719
        %2825 = vmatprep.mubr.bf16.mxu0 %v2488
        %2826 = vmatmul.mubr.bf16.gmra.mrb[0].mxu0 %v2487
        %v2827 = vpop.f32.mrb[0].mxu0
        %v2828 = vadd.f32 %v2787, %v2827
        %v2829 = vpop.f32.mrb[0].mxu0
        %v2830 = vpop.f32.mrb[0].mxu0
        %v2831 = vadd.f32 %v2790, %v2830
        %v2832 = vpop.f32.mrb[0].mxu0
        %2833 = vdwg.mxu0
        %v2834 = vadd.f32 %v2110, %v2828
        %v2835 = vadd.f32 %v2111, %v2831
        %v2836 = vld [vmem:[%s1129] sm:$0x1]
        %v2837 = vld [vmem:[%s1132] sm:$0x1]
        %2838 = vadd.xlane.f32.xlu0 %v2834
        %v2839 = vpop.xlane.xlu0 %2838
        %2840 = vadd.xlane.f32.xlu0 %v2835
        %v2841 = vpop.xlane.xlu0 %2840
        %v2842 = vmul.f32 %v2839, %v2077
        %v2843 = vmul.f32 %v2841, %v2077
        %v2844 = vsub.f32 %v2834, %v2842
        %v2845 = vsub.f32 %v2835, %v2843
        %v2846 = vmul.f32 %v2844, %v2844
        %v2847 = vmul.f32 %v2845, %v2845
        %2848 = vadd.xlane.f32.xlu0 %v2846
        %v2849 = vpop.xlane.xlu0 %2848
        %2850 = vadd.xlane.f32.xlu0 %v2847
        %v2851 = vpop.xlane.xlu0 %2850
        %v2852 = vmul.f32 %v2849, %v2077
        %v2853 = vmul.f32 %v2851, %v2077
        %v2854 = vadd.f32 %v2852, 1e-12
        %v2855 = vadd.f32 %v2853, 1e-12
        %v2856 = vrsqrt.pop %v2854
        %v2857 = vrsqrt.pop %v2855
        %v2858 = vmul.f32 %v2844, %v2856
        %v2859 = vmul.f32 %v2845, %v2857
        %v2861 = vlaneseq
        %v2862 = vshrl.u32 %v2861, 7
        %v2863 = vsub.s32 0, %v2862
        %v2864 = vrot.slane %v2836, %v2863
        %v2866 = vmul.f32 %v2858, %v2864
        %v2867 = vmul.f32 %v2859, %v2864
        %v2869 = vlaneseq
        %v2870 = vshrl.u32 %v2869, 7
        %v2871 = vsub.s32 0, %v2870
        %v2872 = vrot.slane %v2837, %v2871
        %v2874 = vadd.f32 %v2866, %v2872
        %v2875 = vadd.f32 %v2867, %v2872
        %2876 = vst [vmem:[#allocation2] sm:$0xff] %v2874
        %2877 = vst [vmem:[#allocation2 + $0x8] sm:$0xff] %v2875
        %p2878 = scmp.eq.s32.totalorder %s53, 1
        // Predicated region
        $region153: #{tpu_custom_call.1} parent=107 // pred_check
          %p2879 = pneg %p2878
        $region154: #{tpu_custom_call.1} parent=107 // pred_check_branch
          %2881 = sbr.rel (%p2879) target = $region156
        $region155: #{tpu_custom_call.1} parent=107 // pred_region
          %v2882 = vpack.c.bf16 %v2874, %v2874
          %v2883 = vpack.c.bf16 %v2875, %v2875
          %v2884 = vld [vmem:[#allocation17] sm:$0xff]
          %v2885 = vld [vmem:[#allocation17 + $0x8] sm:$0xff]
          %v2886 = vld [vmem:[#allocation17 + $0x10] sm:$0xff]
          %v2887 = vld [vmem:[#allocation17 + $0x18] sm:$0xff]
          %v2888 = vld [vmem:[#allocation17 + $0x20] sm:$0xff]
          %v2889 = vld [vmem:[#allocation17 + $0x28] sm:$0xff]
          %v2890 = vld [vmem:[#allocation17 + $0x30] sm:$0xff]
          %v2891 = vld [vmem:[#allocation17 + $0x38] sm:$0xff]
          %v2892 = vld [vmem:[#allocation17 + $0x40] sm:$0xff]
          %v2893 = vld [vmem:[#allocation17 + $0x48] sm:$0xff]
          %v2894 = vld [vmem:[#allocation17 + $0x50] sm:$0xff]
          %v2895 = vld [vmem:[#allocation17 + $0x58] sm:$0xff]
          %v2896 = vld [vmem:[#allocation17 + $0x60] sm:$0xff]
          %v2897 = vld [vmem:[#allocation17 + $0x68] sm:$0xff]
          %v2898 = vld [vmem:[#allocation17 + $0x70] sm:$0xff]
          %v2899 = vld [vmem:[#allocation17 + $0x78] sm:$0xff]
          %v2900 = vld [vmem:[#allocation17 + $0x80] sm:$0xff]
          %v2901 = vld [vmem:[#allocation17 + $0x88] sm:$0xff]
          %v2902 = vld [vmem:[#allocation17 + $0x90] sm:$0xff]
          %v2903 = vld [vmem:[#allocation17 + $0x98] sm:$0xff]
          %v2904 = vld [vmem:[#allocation17 + $0xa0] sm:$0xff]
          %v2905 = vld [vmem:[#allocation17 + $0xa8] sm:$0xff]
          %v2906 = vld [vmem:[#allocation17 + $0xb0] sm:$0xff]
          %v2907 = vld [vmem:[#allocation17 + $0xb8] sm:$0xff]
          %v2908 = vld [vmem:[#allocation17 + $0xc0] sm:$0xff]
          %v2909 = vld [vmem:[#allocation17 + $0xc8] sm:$0xff]
          %v2910 = vld [vmem:[#allocation17 + $0xd0] sm:$0xff]
          %v2911 = vld [vmem:[#allocation17 + $0xd8] sm:$0xff]
          %v2912 = vld [vmem:[#allocation17 + $0xe0] sm:$0xff]
          %v2913 = vld [vmem:[#allocation17 + $0xe8] sm:$0xff]
          %v2914 = vld [vmem:[#allocation17 + $0xf0] sm:$0xff]
          %v2915 = vld [vmem:[#allocation17 + $0xf8] sm:$0xff]
          %v2916 = vld [vmem:[%s19] sm:$0xf]
          %v2918 = vlaneseq
          %v2919 = vshrl.u32 %v2918, 7
          %v2920 = vsub.s32 0, %v2919
          %v2921 = vrot.slane %v2916, %v2920
          %v2922 = vlaneseq
          %v2923 = vshrl.u32 %v2922, 7
          %v2924 = vsub.s32 1, %v2923
          %v2925 = vrot.slane %v2916, %v2924
          %v2926 = vlaneseq
          %v2927 = vshrl.u32 %v2926, 7
          %v2928 = vsub.s32 2, %v2927
          %v2929 = vrot.slane %v2916, %v2928
          %v2930 = vlaneseq
          %v2931 = vshrl.u32 %v2930, 7
          %v2932 = vsub.s32 3, %v2931
          %v2933 = vrot.slane %v2916, %v2932
          %v2940 = vunpack.c.l.b16 %v2882
          %v2941 = vunpack.c.l.b16 %v2883
          %v2942 = vrot.slane %v2941, 7
          %vm2943 = vcmask 1041409
          %v2944 = vsel %vm2943, %v2942, %v2940
          %v2945 = vpack.c.b16 %v2944, %v2944
          %v2979 = vunpack.c.l.b16 %v2884
          %v2980 = vunpack.c.h.b16 %v2884
          %v2981 = vunpack.c.l.b16 %v2885
          %v2982 = vunpack.c.h.b16 %v2885
          %v2983 = vunpack.c.l.b16 %v2886
          %v2984 = vunpack.c.h.b16 %v2886
          %v2985 = vunpack.c.l.b16 %v2887
          %v2986 = vunpack.c.h.b16 %v2887
          %v2987 = vunpack.c.l.b16 %v2888
          %v2988 = vunpack.c.h.b16 %v2888
          %v2989 = vunpack.c.l.b16 %v2889
          %v2990 = vunpack.c.h.b16 %v2889
          %v2991 = vunpack.c.l.b16 %v2890
          %v2992 = vunpack.c.h.b16 %v2890
          %v2993 = vunpack.c.l.b16 %v2891
          %v2994 = vunpack.c.h.b16 %v2891
          %v2995 = vunpack.c.l.b16 %v2892
          %v2996 = vunpack.c.h.b16 %v2892
          %v2997 = vunpack.c.l.b16 %v2893
          %v2998 = vunpack.c.h.b16 %v2893
          %v2999 = vunpack.c.l.b16 %v2894
          %v3000 = vunpack.c.h.b16 %v2894
          %v3001 = vunpack.c.l.b16 %v2895
          %v3002 = vunpack.c.h.b16 %v2895
          %v3003 = vunpack.c.l.b16 %v2896
          %v3004 = vunpack.c.h.b16 %v2896
          %v3005 = vunpack.c.l.b16 %v2897
          %v3006 = vunpack.c.h.b16 %v2897
          %v3007 = vunpack.c.l.b16 %v2898
          %v3008 = vunpack.c.h.b16 %v2898
          %v3009 = vunpack.c.l.b16 %v2899
          %v3010 = vunpack.c.h.b16 %v2899
          %v3011 = vunpack.c.l.b16 %v2900
          %v3012 = vunpack.c.h.b16 %v2900
          %v3013 = vunpack.c.l.b16 %v2901
          %v3014 = vunpack.c.h.b16 %v2901
          %v3015 = vunpack.c.l.b16 %v2902
          %v3016 = vunpack.c.h.b16 %v2902
          %v3017 = vunpack.c.l.b16 %v2903
          %v3018 = vunpack.c.h.b16 %v2903
          %v3019 = vunpack.c.l.b16 %v2904
          %v3020 = vunpack.c.h.b16 %v2904
          %v3021 = vunpack.c.l.b16 %v2905
          %v3022 = vunpack.c.h.b16 %v2905
          %v3023 = vunpack.c.l.b16 %v2906
          %v3024 = vunpack.c.h.b16 %v2906
          %v3025 = vunpack.c.l.b16 %v2907
          %v3026 = vunpack.c.h.b16 %v2907
          %v3027 = vunpack.c.l.b16 %v2908
          %v3028 = vunpack.c.h.b16 %v2908
          %v3029 = vunpack.c.l.b16 %v2909
          %v3030 = vunpack.c.h.b16 %v2909
          %v3031 = vunpack.c.l.b16 %v2910
          %v3032 = vunpack.c.h.b16 %v2910
          %v3033 = vunpack.c.l.b16 %v2911
          %v3034 = vunpack.c.h.b16 %v2911
          %v3035 = vunpack.c.l.b16 %v2912
          %v3036 = vunpack.c.h.b16 %v2912
          %v3037 = vunpack.c.l.b16 %v2913
          %v3038 = vunpack.c.h.b16 %v2913
          %v3039 = vunpack.c.l.b16 %v2914
          %v3040 = vunpack.c.h.b16 %v2914
          %v3041 = vunpack.c.l.b16 %v2915
          %v3042 = vunpack.c.h.b16 %v2915
          %v3043 = vpack.c.b16 %v2983, %v2979
          %v3044 = vpack.c.b16 %v2984, %v2980
          %v3045 = vpack.c.b16 %v2985, %v2981
          %v3046 = vpack.c.b16 %v2986, %v2982
          %v3047 = vpack.c.b16 %v2991, %v2987
          %v3048 = vpack.c.b16 %v2992, %v2988
          %v3049 = vpack.c.b16 %v2993, %v2989
          %v3050 = vpack.c.b16 %v2994, %v2990
          %v3051 = vpack.c.b16 %v2999, %v2995
          %v3052 = vpack.c.b16 %v3000, %v2996
          %v3053 = vpack.c.b16 %v3001, %v2997
          %v3054 = vpack.c.b16 %v3002, %v2998
          %v3055 = vpack.c.b16 %v3007, %v3003
          %v3056 = vpack.c.b16 %v3008, %v3004
          %v3057 = vpack.c.b16 %v3009, %v3005
          %v3058 = vpack.c.b16 %v3010, %v3006
          %v3059 = vpack.c.b16 %v3015, %v3011
          %v3060 = vpack.c.b16 %v3016, %v3012
          %v3061 = vpack.c.b16 %v3017, %v3013
          %v3062 = vpack.c.b16 %v3018, %v3014
          %v3063 = vpack.c.b16 %v3023, %v3019
          %v3064 = vpack.c.b16 %v3024, %v3020
          %v3065 = vpack.c.b16 %v3025, %v3021
          %v3066 = vpack.c.b16 %v3026, %v3022
          %v3067 = vpack.c.b16 %v3031, %v3027
          %v3068 = vpack.c.b16 %v3032, %v3028
          %v3069 = vpack.c.b16 %v3033, %v3029
          %v3070 = vpack.c.b16 %v3034, %v3030
          %v3071 = vpack.c.b16 %v3039, %v3035
          %v3072 = vpack.c.b16 %v3040, %v3036
          %v3073 = vpack.c.b16 %v3041, %v3037
          %v3074 = vpack.c.b16 %v3042, %v3038
          %3107 = vmatprep.subr.bf16.mxu0 %v3044
          %3108 = vmatpush1.bf16.msra.mxu0 %v3043
          %3109 = vmatprep.subr.bf16.mxu0 %v3048
          %3110 = vmatpush1.bf16.msra.mxu0 %v3047
          %3111 = vmatprep.subr.bf16.mxu0 %v3052
          %3112 = vmatpush1.bf16.msra.mxu0 %v3051
          %3113 = vmatprep.subr.bf16.mxu0 %v3056
          %3114 = vmatpush1.bf16.msra.mxu0 %v3055
          %3115 = vmatprep.subr.bf16.mxu0 %v3060
          %3116 = vmatpush1.bf16.msra.mxu0 %v3059
          %3117 = vmatprep.subr.bf16.mxu0 %v3064
          %3118 = vmatpush1.bf16.msra.mxu0 %v3063
          %3119 = vmatprep.subr.bf16.mxu0 %v3068
          %3120 = vmatpush1.bf16.msra.mxu0 %v3067
          %3121 = vmatprep.subr.bf16.mxu0 %v3072
          %3122 = vmatpush1.bf16.msra.mxu0 %v3071
          %3123 = vmatprep.subr.bf16.mxu0 0
          %3124 = vmatpush1.bf16.msra.mxu0 0
          %3125 = vmatprep.subr.bf16.mxu0 0
          %3126 = vmatpush1.bf16.msra.mxu0 0
          %3127 = vmatprep.subr.bf16.mxu0 0
          %3128 = vmatpush1.bf16.msra.mxu0 0
          %3129 = vmatprep.subr.bf16.mxu0 0
          %3130 = vmatpush1.bf16.msra.mxu0 0
          %3131 = vmatprep.subr.bf16.mxu0 0
          %3132 = vmatpush1.bf16.msra.mxu0 0
          %3133 = vmatprep.subr.bf16.mxu0 0
          %3134 = vmatpush1.bf16.msra.mxu0 0
          %3135 = vmatprep.subr.bf16.mxu0 0
          %3136 = vmatpush1.bf16.msra.mxu0 0
          %3137 = vmatprep.subr.bf16.mxu0 0
          %3138 = vmatpush1.bf16.msra.mxu0 0
          %3139 = vmatprep.mubr.bf16.mxu0 0
          %3140 = vmatmul.mubr.bf16.gmra.mrb[0].mxu0 %v2945
          %v3141 = vpop.f32.mrb[0].mxu0
          %v3142 = vadd.f32 %v2921, %v3141
          %v3143 = vpop.f32.mrb[0].mxu0
          %v3144 = vadd.f32 %v2925, %v3143
          %v3145 = vpop.f32.mrb[0].mxu0
          %v3146 = vpop.f32.mrb[0].mxu0
          %3147 = vdwg.mxu0
          %3148 = vmatprep.subr.bf16.mxu0 %v3046
          %3149 = vmatpush1.bf16.msra.mxu0 %v3045
          %3150 = vmatprep.subr.bf16.mxu0 %v3050
          %3151 = vmatpush1.bf16.msra.mxu0 %v3049
          %3152 = vmatprep.subr.bf16.mxu0 %v3054
          %3153 = vmatpush1.bf16.msra.mxu0 %v3053
          %3154 = vmatprep.subr.bf16.mxu0 %v3058
          %3155 = vmatpush1.bf16.msra.mxu0 %v3057
          %3156 = vmatprep.subr.bf16.mxu0 %v3062
          %3157 = vmatpush1.bf16.msra.mxu0 %v3061
          %3158 = vmatprep.subr.bf16.mxu0 %v3066
          %3159 = vmatpush1.bf16.msra.mxu0 %v3065
          %3160 = vmatprep.subr.bf16.mxu0 %v3070
          %3161 = vmatpush1.bf16.msra.mxu0 %v3069
          %3162 = vmatprep.subr.bf16.mxu0 %v3074
          %3163 = vmatpush1.bf16.msra.mxu0 %v3073
          %3164 = vmatprep.subr.bf16.mxu0 0
          %3165 = vmatpush1.bf16.msra.mxu0 0
          %3166 = vmatprep.subr.bf16.mxu0 0
          %3167 = vmatpush1.bf16.msra.mxu0 0
          %3168 = vmatprep.subr.bf16.mxu0 0
          %3169 = vmatpush1.bf16.msra.mxu0 0
          %3170 = vmatprep.subr.bf16.mxu0 0
          %3171 = vmatpush1.bf16.msra.mxu0 0
          %3172 = vmatprep.subr.bf16.mxu0 0
          %3173 = vmatpush1.bf16.msra.mxu0 0
          %3174 = vmatprep.subr.bf16.mxu0 0
          %3175 = vmatpush1.bf16.msra.mxu0 0
          %3176 = vmatprep.subr.bf16.mxu0 0
          %3177 = vmatpush1.bf16.msra.mxu0 0
          %3178 = vmatprep.subr.bf16.mxu0 0
          %3179 = vmatpush1.bf16.msra.mxu0 0
          %3180 = vmatprep.mubr.bf16.mxu0 0
          %3181 = vmatmul.mubr.bf16.gmra.mrb[0].mxu0 %v2945
          %v3182 = vpop.f32.mrb[0].mxu0
          %v3183 = vadd.f32 %v2929, %v3182
          %v3184 = vpop.f32.mrb[0].mxu0
          %v3185 = vadd.f32 %v2933, %v3184
          %v3186 = vpop.f32.mrb[0].mxu0
          %v3187 = vpop.f32.mrb[0].mxu0
          %3188 = vdwg.mxu0
          %v3189 = vmax.f32 %v3142, 0.0
          %v3190 = vmax.f32 %v3144, 0.0
          %v3191 = vmax.f32 %v3183, 0.0
          %v3192 = vmax.f32 %v3185, 0.0
          %v3193 = vpack.c.bf16 %v3189, %v3189
          %v3194 = vpack.c.bf16 %v3190, %v3190
          %v3195 = vpack.c.bf16 %v3191, %v3191
          %v3196 = vpack.c.bf16 %v3192, %v3192
          %v3197 = vld [vmem:[#allocation18] sm:$0xf]
          %v3198 = vld [vmem:[#allocation18 + $0x4] sm:$0xf]
          %v3199 = vld [vmem:[#allocation18 + $0x8] sm:$0xf]
          %v3200 = vld [vmem:[#allocation18 + $0xc] sm:$0xf]
          %v3201 = vld [vmem:[#allocation18 + $0x10] sm:$0xf]
          %v3202 = vld [vmem:[#allocation18 + $0x14] sm:$0xf]
          %v3203 = vld [vmem:[#allocation18 + $0x18] sm:$0xf]
          %v3204 = vld [vmem:[#allocation18 + $0x1c] sm:$0xf]
          %v3205 = vld [vmem:[#allocation18 + $0x20] sm:$0xf]
          %v3206 = vld [vmem:[#allocation18 + $0x24] sm:$0xf]
          %v3207 = vld [vmem:[#allocation18 + $0x28] sm:$0xf]
          %v3208 = vld [vmem:[#allocation18 + $0x2c] sm:$0xf]
          %v3209 = vld [vmem:[#allocation18 + $0x30] sm:$0xf]
          %v3210 = vld [vmem:[#allocation18 + $0x34] sm:$0xf]
          %v3211 = vld [vmem:[#allocation18 + $0x38] sm:$0xf]
          %v3212 = vld [vmem:[#allocation18 + $0x3c] sm:$0xf]
          %v3213 = vld [vmem:[#allocation18 + $0x40] sm:$0xf]
          %v3214 = vld [vmem:[#allocation18 + $0x44] sm:$0xf]
          %v3215 = vld [vmem:[#allocation18 + $0x48] sm:$0xf]
          %v3216 = vld [vmem:[#allocation18 + $0x4c] sm:$0xf]
          %v3217 = vld [vmem:[#allocation18 + $0x50] sm:$0xf]
          %v3218 = vld [vmem:[#allocation18 + $0x54] sm:$0xf]
          %v3219 = vld [vmem:[#allocation18 + $0x58] sm:$0xf]
          %v3220 = vld [vmem:[#allocation18 + $0x5c] sm:$0xf]
          %v3221 = vld [vmem:[#allocation18 + $0x60] sm:$0xf]
          %v3222 = vld [vmem:[#allocation18 + $0x64] sm:$0xf]
          %v3223 = vld [vmem:[#allocation18 + $0x68] sm:$0xf]
          %v3224 = vld [vmem:[#allocation18 + $0x6c] sm:$0xf]
          %v3225 = vld [vmem:[#allocation18 + $0x70] sm:$0xf]
          %v3226 = vld [vmem:[#allocation18 + $0x74] sm:$0xf]
          %v3227 = vld [vmem:[#allocation18 + $0x78] sm:$0xf]
          %v3228 = vld [vmem:[#allocation18 + $0x7c] sm:$0xf]
          %v3229 = vld [vmem:[#allocation18 + $0x80] sm:$0xf]
          %v3230 = vld [vmem:[#allocation18 + $0x84] sm:$0xf]
          %v3231 = vld [vmem:[#allocation18 + $0x88] sm:$0xf]
          %v3232 = vld [vmem:[#allocation18 + $0x8c] sm:$0xf]
          %v3233 = vld [vmem:[#allocation18 + $0x90] sm:$0xf]
          %v3234 = vld [vmem:[#allocation18 + $0x94] sm:$0xf]
          %v3235 = vld [vmem:[#allocation18 + $0x98] sm:$0xf]
          %v3236 = vld [vmem:[#allocation18 + $0x9c] sm:$0xf]
          %v3237 = vld [vmem:[#allocation18 + $0xa0] sm:$0xf]
          %v3238 = vld [vmem:[#allocation18 + $0xa4] sm:$0xf]
          %v3239 = vld [vmem:[#allocation18 + $0xa8] sm:$0xf]
          %v3240 = vld [vmem:[#allocation18 + $0xac] sm:$0xf]
          %v3241 = vld [vmem:[#allocation18 + $0xb0] sm:$0xf]
          %v3242 = vld [vmem:[#allocation18 + $0xb4] sm:$0xf]
          %v3243 = vld [vmem:[#allocation18 + $0xb8] sm:$0xf]
          %v3244 = vld [vmem:[#allocation18 + $0xbc] sm:$0xf]
          %v3245 = vld [vmem:[#allocation18 + $0xc0] sm:$0xf]
          %v3246 = vld [vmem:[#allocation18 + $0xc4] sm:$0xf]
          %v3247 = vld [vmem:[#allocation18 + $0xc8] sm:$0xf]
          %v3248 = vld [vmem:[#allocation18 + $0xcc] sm:$0xf]
          %v3249 = vld [vmem:[#allocation18 + $0xd0] sm:$0xf]
          %v3250 = vld [vmem:[#allocation18 + $0xd4] sm:$0xf]
          %v3251 = vld [vmem:[#allocation18 + $0xd8] sm:$0xf]
          %v3252 = vld [vmem:[#allocation18 + $0xdc] sm:$0xf]
          %v3253 = vld [vmem:[#allocation18 + $0xe0] sm:$0xf]
          %v3254 = vld [vmem:[#allocation18 + $0xe4] sm:$0xf]
          %v3255 = vld [vmem:[#allocation18 + $0xe8] sm:$0xf]
          %v3256 = vld [vmem:[#allocation18 + $0xec] sm:$0xf]
          %v3257 = vld [vmem:[#allocation18 + $0xf0] sm:$0xf]
          %v3258 = vld [vmem:[#allocation18 + $0xf4] sm:$0xf]
          %v3259 = vld [vmem:[#allocation18 + $0xf8] sm:$0xf]
          %v3260 = vld [vmem:[#allocation18 + $0xfc] sm:$0xf]
          %v3261 = vld [vmem:[%s21] sm:$0x1]
          %v3263 = vlaneseq
          %v3264 = vshrl.u32 %v3263, 7
          %v3265 = vsub.s32 0, %v3264
          %v3266 = vrot.slane %v3261, %v3265
          %v3332 = vunpack.c.l.b16 %v3197
          %v3333 = vunpack.c.l.b16 %v3198
          %v3334 = vunpack.c.l.b16 %v3199
          %v3335 = vunpack.c.l.b16 %v3200
          %v3336 = vunpack.c.l.b16 %v3201
          %v3337 = vunpack.c.l.b16 %v3202
          %v3338 = vunpack.c.l.b16 %v3203
          %v3339 = vunpack.c.l.b16 %v3204
          %v3340 = vunpack.c.l.b16 %v3205
          %v3341 = vunpack.c.l.b16 %v3206
          %v3342 = vunpack.c.l.b16 %v3207
          %v3343 = vunpack.c.l.b16 %v3208
          %v3344 = vunpack.c.l.b16 %v3209
          %v3345 = vunpack.c.l.b16 %v3210
          %v3346 = vunpack.c.l.b16 %v3211
          %v3347 = vunpack.c.l.b16 %v3212
          %v3348 = vunpack.c.l.b16 %v3213
          %v3349 = vunpack.c.l.b16 %v3214
          %v3350 = vunpack.c.l.b16 %v3215
          %v3351 = vunpack.c.l.b16 %v3216
          %v3352 = vunpack.c.l.b16 %v3217
          %v3353 = vunpack.c.l.b16 %v3218
          %v3354 = vunpack.c.l.b16 %v3219
          %v3355 = vunpack.c.l.b16 %v3220
          %v3356 = vunpack.c.l.b16 %v3221
          %v3357 = vunpack.c.l.b16 %v3222
          %v3358 = vunpack.c.l.b16 %v3223
          %v3359 = vunpack.c.l.b16 %v3224
          %v3360 = vunpack.c.l.b16 %v3225
          %v3361 = vunpack.c.l.b16 %v3226
          %v3362 = vunpack.c.l.b16 %v3227
          %v3363 = vunpack.c.l.b16 %v3228
          %v3364 = vunpack.c.l.b16 %v3229
          %v3365 = vunpack.c.l.b16 %v3230
          %v3366 = vunpack.c.l.b16 %v3231
          %v3367 = vunpack.c.l.b16 %v3232
          %v3368 = vunpack.c.l.b16 %v3233
          %v3369 = vunpack.c.l.b16 %v3234
          %v3370 = vunpack.c.l.b16 %v3235
          %v3371 = vunpack.c.l.b16 %v3236
          %v3372 = vunpack.c.l.b16 %v3237
          %v3373 = vunpack.c.l.b16 %v3238
          %v3374 = vunpack.c.l.b16 %v3239
          %v3375 = vunpack.c.l.b16 %v3240
          %v3376 = vunpack.c.l.b16 %v3241
          %v3377 = vunpack.c.l.b16 %v3242
          %v3378 = vunpack.c.l.b16 %v3243
          %v3379 = vunpack.c.l.b16 %v3244
          %v3380 = vunpack.c.l.b16 %v3245
          %v3381 = vunpack.c.l.b16 %v3246
          %v3382 = vunpack.c.l.b16 %v3247
          %v3383 = vunpack.c.l.b16 %v3248
          %v3384 = vunpack.c.l.b16 %v3249
          %v3385 = vunpack.c.l.b16 %v3250
          %v3386 = vunpack.c.l.b16 %v3251
          %v3387 = vunpack.c.l.b16 %v3252
          %v3388 = vunpack.c.l.b16 %v3253
          %v3389 = vunpack.c.l.b16 %v3254
          %v3390 = vunpack.c.l.b16 %v3255
          %v3391 = vunpack.c.l.b16 %v3256
          %v3392 = vunpack.c.l.b16 %v3257
          %v3393 = vunpack.c.l.b16 %v3258
          %v3394 = vunpack.c.l.b16 %v3259
          %v3395 = vunpack.c.l.b16 %v3260
          %v3396 = vpack.c.b16 %v3333, %v3332
          %v3397 = vpack.c.b16 %v3335, %v3334
          %v3398 = vpack.c.b16 %v3337, %v3336
          %v3399 = vpack.c.b16 %v3339, %v3338
          %v3400 = vpack.c.b16 %v3341, %v3340
          %v3401 = vpack.c.b16 %v3343, %v3342
          %v3402 = vpack.c.b16 %v3345, %v3344
          %v3403 = vpack.c.b16 %v3347, %v3346
          %v3404 = vpack.c.b16 %v3349, %v3348
          %v3405 = vpack.c.b16 %v3351, %v3350
          %v3406 = vpack.c.b16 %v3353, %v3352
          %v3407 = vpack.c.b16 %v3355, %v3354
          %v3408 = vpack.c.b16 %v3357, %v3356
          %v3409 = vpack.c.b16 %v3359, %v3358
          %v3410 = vpack.c.b16 %v3361, %v3360
          %v3411 = vpack.c.b16 %v3363, %v3362
          %v3412 = vpack.c.b16 %v3365, %v3364
          %v3413 = vpack.c.b16 %v3367, %v3366
          %v3414 = vpack.c.b16 %v3369, %v3368
          %v3415 = vpack.c.b16 %v3371, %v3370
          %v3416 = vpack.c.b16 %v3373, %v3372
          %v3417 = vpack.c.b16 %v3375, %v3374
          %v3418 = vpack.c.b16 %v3377, %v3376
          %v3419 = vpack.c.b16 %v3379, %v3378
          %v3420 = vpack.c.b16 %v3381, %v3380
          %v3421 = vpack.c.b16 %v3383, %v3382
          %v3422 = vpack.c.b16 %v3385, %v3384
          %v3423 = vpack.c.b16 %v3387, %v3386
          %v3424 = vpack.c.b16 %v3389, %v3388
          %v3425 = vpack.c.b16 %v3391, %v3390
          %v3426 = vpack.c.b16 %v3393, %v3392
          %v3427 = vpack.c.b16 %v3395, %v3394
          %3460 = vmatprep.subr.bf16.mxu0 0
          %3461 = vmatpush1.bf16.msra.mxu0 %v3396
          %3462 = vmatprep.subr.bf16.mxu0 0
          %3463 = vmatpush1.bf16.msra.mxu0 %v3397
          %3464 = vmatprep.subr.bf16.mxu0 0
          %3465 = vmatpush1.bf16.msra.mxu0 %v3398
          %3466 = vmatprep.subr.bf16.mxu0 0
          %3467 = vmatpush1.bf16.msra.mxu0 %v3399
          %3468 = vmatprep.subr.bf16.mxu0 0
          %3469 = vmatpush1.bf16.msra.mxu0 %v3400
          %3470 = vmatprep.subr.bf16.mxu0 0
          %3471 = vmatpush1.bf16.msra.mxu0 %v3401
          %3472 = vmatprep.subr.bf16.mxu0 0
          %3473 = vmatpush1.bf16.msra.mxu0 %v3402
          %3474 = vmatprep.subr.bf16.mxu0 0
          %3475 = vmatpush1.bf16.msra.mxu0 %v3403
          %3476 = vmatprep.subr.bf16.mxu0 0
          %3477 = vmatpush1.bf16.msra.mxu0 %v3404
          %3478 = vmatprep.subr.bf16.mxu0 0
          %3479 = vmatpush1.bf16.msra.mxu0 %v3405
          %3480 = vmatprep.subr.bf16.mxu0 0
          %3481 = vmatpush1.bf16.msra.mxu0 %v3406
          %3482 = vmatprep.subr.bf16.mxu0 0
          %3483 = vmatpush1.bf16.msra.mxu0 %v3407
          %3484 = vmatprep.subr.bf16.mxu0 0
          %3485 = vmatpush1.bf16.msra.mxu0 %v3408
          %3486 = vmatprep.subr.bf16.mxu0 0
          %3487 = vmatpush1.bf16.msra.mxu0 %v3409
          %3488 = vmatprep.subr.bf16.mxu0 0
          %3489 = vmatpush1.bf16.msra.mxu0 %v3410
          %3490 = vmatprep.subr.bf16.mxu0 0
          %3491 = vmatpush1.bf16.msra.mxu0 %v3411
          %3492 = vmatprep.mubr.bf16.mxu0 %v3194
          %3493 = vmatmul.mubr.bf16.gmra.mrb[0].mxu0 %v3193
          %v3494 = vpop.f32.mrb[0].mxu0
          %v3495 = vadd.f32 %v3266, %v3494
          %v3496 = vpop.f32.mrb[0].mxu0
          %v3497 = vpop.f32.mrb[0].mxu0
          %v3498 = vpop.f32.mrb[0].mxu0
          %3499 = vdwg.mxu0
          %3500 = vmatprep.subr.bf16.mxu0 0
          %3501 = vmatpush1.bf16.msra.mxu0 %v3412
          %3502 = vmatprep.subr.bf16.mxu0 0
          %3503 = vmatpush1.bf16.msra.mxu0 %v3413
          %3504 = vmatprep.subr.bf16.mxu0 0
          %3505 = vmatpush1.bf16.msra.mxu0 %v3414
          %3506 = vmatprep.subr.bf16.mxu0 0
          %3507 = vmatpush1.bf16.msra.mxu0 %v3415
          %3508 = vmatprep.subr.bf16.mxu0 0
          %3509 = vmatpush1.bf16.msra.mxu0 %v3416
          %3510 = vmatprep.subr.bf16.mxu0 0
          %3511 = vmatpush1.bf16.msra.mxu0 %v3417
          %3512 = vmatprep.subr.bf16.mxu0 0
          %3513 = vmatpush1.bf16.msra.mxu0 %v3418
          %3514 = vmatprep.subr.bf16.mxu0 0
          %3515 = vmatpush1.bf16.msra.mxu0 %v3419
          %3516 = vmatprep.subr.bf16.mxu0 0
          %3517 = vmatpush1.bf16.msra.mxu0 %v3420
          %3518 = vmatprep.subr.bf16.mxu0 0
          %3519 = vmatpush1.bf16.msra.mxu0 %v3421
          %3520 = vmatprep.subr.bf16.mxu0 0
          %3521 = vmatpush1.bf16.msra.mxu0 %v3422
          %3522 = vmatprep.subr.bf16.mxu0 0
          %3523 = vmatpush1.bf16.msra.mxu0 %v3423
          %3524 = vmatprep.subr.bf16.mxu0 0
          %3525 = vmatpush1.bf16.msra.mxu0 %v3424
          %3526 = vmatprep.subr.bf16.mxu0 0
          %3527 = vmatpush1.bf16.msra.mxu0 %v3425
          %3528 = vmatprep.subr.bf16.mxu0 0
          %3529 = vmatpush1.bf16.msra.mxu0 %v3426
          %3530 = vmatprep.subr.bf16.mxu0 0
          %3531 = vmatpush1.bf16.msra.mxu0 %v3427
          %3532 = vmatprep.mubr.bf16.mxu0 %v3196
          %3533 = vmatmul.mubr.bf16.gmra.mrb[0].mxu0 %v3195
          %v3534 = vpop.f32.mrb[0].mxu0
          %v3535 = vadd.f32 %v3495, %v3534
          %v3536 = vpop.f32.mrb[0].mxu0
          %v3537 = vpop.f32.mrb[0].mxu0
          %v3538 = vpop.f32.mrb[0].mxu0
          %3539 = vdwg.mxu0
          %3540 = vst [vmem:[#allocation20] sm:$0x3] %v3535
        $region156: #{tpu_custom_call.1} parent=107 // pred_fallthru
          _
        // Predicated region
        $region157: #{tpu_custom_call.1} parent=107 // pred_check
          %p3541 = pneg %p630
        $region158: #{tpu_custom_call.1} parent=107 // pred_check_branch
          %3543 = sbr.rel (%p3541) target = $region160
        $region159: #{tpu_custom_call.1} parent=107 // pred_region
          %s3545 = ssub.s32 32, 32
          %3546 = vsyncadd [#allocation5], %s3545
          %s3547 = smul.addr %s52, 32
          %s3548 = scalar_lea.hbm %s22, %s3547
          %s3550 = sshll.u32 [#allocation20], 4
          %s3551 = int_to_ptr.vmem [resolvable:$true] %s3550
          %3553 = dma.vmem_to_hbm [thread:$0]  %s3551, 32, %s3548, [#allocation5]
        $region160: #{tpu_custom_call.1} parent=107 // pred_fallthru
          _
        // Predicated region
        $region161: #{tpu_custom_call.1} parent=107 // pred_check
          %p3554 = pneg %p630
        $region162: #{tpu_custom_call.1} parent=107 // pred_check_branch
          %3556 = sbr.rel (%p3554) target = $region164
        $region163: #{tpu_custom_call.1} parent=107 // pred_region
          %3557 = dma.done [#allocation5], 32
        $region164: #{tpu_custom_call.1} parent=107 // pred_fallthru
          _
      $region108: #{tpu_custom_call.1} parent=5 // pred_fallthru
        _
      %p3558 = scmp.le.s32.totalorder 2, %s43
      // Predicated region
      $region165: #{tpu_custom_call.1} parent=5 // pred_check
        %p3559 = pneg %p3558
      $region166: #{tpu_custom_call.1} parent=5 // pred_check_branch
        %3561 = sbr.rel (%p3559) target = $region168
      $region167: #{tpu_custom_call.1} parent=5 // pred_region
        %s3562 = ssub.s32 %s43, 2
      $region168: #{tpu_custom_call.1} parent=5 // pred_fallthru
        _
    $region6: #{tpu_custom_call.1} parent=1 // loop_footer
      %s47 = sadd.s32 1, %s43
    $region7: #{tpu_custom_call.1} parent=1 // loop_footer_branch
      %42 = sbr.rel target = $region3
    $region8: #{tpu_custom_call.1} parent=1 // loop_exit
      _
    %3563 = vsyncpa [#allocation4], 1
    %s3564 = scalar_lea.sflag [#allocation4], 1
    %3565 = vsyncpa %s3564, 1
    %3566 = vsyncpa [#allocation7], 1
    %s3567 = scalar_lea.sflag [#allocation7], 1
    %3568 = vsyncpa %s3567, 1
    %3569 = vsyncpa [#allocation10], 1
    %s3570 = scalar_lea.sflag [#allocation10], 1
    %3571 = vsyncpa %s3570, 1
    %3572 = vsyncpa [#allocation13], 1
    %s3573 = scalar_lea.sflag [#allocation13], 1
    %3574 = vsyncpa %s3573, 1
    %3575 = vsyncpa [#allocation16], 1
    %s3576 = scalar_lea.sflag [#allocation16], 1
    %3577 = vsyncpa %s3576, 1
    %3578 = vsyncpa [#allocation19], 1
    %3579 = vsyncpa [#allocation5], 1
    %s3580 = scalar_lea.sflag [#allocation5], 1
    %3581 = vsyncpa %s3580, 1

</llo_original>
